<compile_context>
chip_gen: v5e
topology: v5e:2x2
jax: 0.10.0
libtpu: 0.0.40
codegen_flags: <defaults>
</compile_context>

<pallas_src>
import functools
import math
import re

import jax
import jax.numpy as jnp
from jax import lax
from jax.experimental import pallas as pl
from jax.experimental.pallas import tpu as pltpu


# ----------------------------------------------------------------------------
# Tiling helpers (per TPU generation)
# ----------------------------------------------------------------------------
def _round_up(x, m):
    return ((x + m - 1) // m) * m


def _tpu_generation():
    try:
        kind = jax.devices()[0].device_kind.lower()
    except Exception:
        return 0
    mobj = re.search(r"v(\d+)", kind)
    return int(mobj.group(1)) if mobj else 0


_GEN = _tpu_generation()
# v6e/v7x MXU is 2x256x256 -> 256-wide K/N tiles; v5e (4x128x128) keeps 128-wide tiles.
_MAX_TKN = 256 if _GEN >= 6 else 128


def _pick_tile(d):
    """K/N tile: 256 on v6e/v7x when it adds no padding over a 128-wide tile, else 128."""
    if _MAX_TKN >= 256 and _round_up(d, 256) == _round_up(d, 128):
        return 256
    return 128


def _pick_tm(M):
    """Largest row tile that still leaves >=2 parallel M tiles (keeps both v7x cores busy)."""
    for tm in (1024, 512, 256, 128, 64, 32, 16, 8):
        if M >= 2 * tm:
            return tm
    return 8


# ----------------------------------------------------------------------------
# Pallas kernel: tiled matmul (bf16 in, f32 accumulate) + bias + optional SiLU
# ----------------------------------------------------------------------------
def _mm_kernel(x_ref, w_ref, b_ref, o_ref, acc_ref, *, act):
    @pl.when(pl.program_id(2) == 0)
    def _init():
        acc_ref[...] = jnp.zeros_like(acc_ref)

    acc_ref[...] += jnp.dot(x_ref[...], w_ref[...],
                            preferred_element_type=jnp.float32)

    @pl.when(pl.program_id(2) == pl.num_programs(2) - 1)
    def _finalize():
        y = acc_ref[...] + b_ref[...]
        if act:
            # SiLU: exp and the approximate reciprocal both go to the EUP (off the VALU slots)
            y = y * pl.reciprocal(1.0 + jnp.exp(-y), approx=True)
        o_ref[...] = y.astype(o_ref.dtype)


@functools.lru_cache(maxsize=None)
def _get_mm(Mp, Kp, Np, tm, tk, tn, act):
    grid = (Mp // tm, Np // tn, Kp // tk)
    return pl.pallas_call(
        functools.partial(_mm_kernel, act=act),
        out_shape=jax.ShapeDtypeStruct((Mp, Np), jnp.bfloat16),
        grid_spec=pltpu.PrefetchScalarGridSpec(
            num_scalar_prefetch=0,
            grid=grid,
            in_specs=[
                pl.BlockSpec((tm, tk), lambda i, j, k: (i, k)),
                pl.BlockSpec((tk, tn), lambda i, j, k: (k, j)),
                pl.BlockSpec((1, tn), lambda i, j, k: (0, j)),
            ],
            out_specs=pl.BlockSpec((tm, tn), lambda i, j, k: (i, j)),
            scratch_shapes=[pltpu.VMEM((tm, tn), jnp.float32)],
        ),
        compiler_params=pltpu.CompilerParams(
            dimension_semantics=("parallel", "parallel", "arbitrary")),
    )


def mm_bias_act(x2d, p):
    """bf16 [M,K] @ pre-padded bf16 [Kp,Np] + f32 bias (+SiLU) -> bf16 [M, n]."""
    M, K = x2d.shape
    Kp, Np = p["wp"].shape
    n = p["n"]
    if M < 128:
        # Tiny matmul: a (1,1,k) grid would be pure pallas_call/DMA setup overhead -> XLA.
        y = jnp.dot(x2d, p["wp"][:K, :n],
                    preferred_element_type=jnp.float32) + p["bp"][0, :n]
        if p["act"]:
            y = y * jax.nn.sigmoid(y)
        return y.astype(jnp.bfloat16)
    tm = _pick_tm(M)
    Mp = _round_up(M, tm)
    if Mp != M or Kp != K:
        # Zero-padded K columns are matched by zero-padded weight rows (numerically inert).
        x2d = jnp.pad(x2d, ((0, Mp - M), (0, Kp - K)))
    out = _get_mm(Mp, Kp, Np, tm, p["tk"], p["tn"], bool(p["act"]))(x2d, p["wp"], p["bp"])
    return out[:M, :n]


# ----------------------------------------------------------------------------
# Conv / C2f / SPPF / Proto building blocks (glue in plain JAX, matmul in Pallas)
# ----------------------------------------------------------------------------
def im2col(x, k, s, p):
    """x: NHWC (bf16) -> patches [B*Ho*Wo, k*k*C] (kh, kw major, channel minor)."""
    B, H, W, C = x.shape
    Ho = (H + 2 * p - k) // s + 1
    Wo = (W + 2 * p - k) // s + 1
    if k == 1 and s == 1 and p == 0:
        return x.reshape(B * H * W, C), Ho, Wo
    xp = jnp.pad(x, ((0, 0), (p, p), (p, p), (0, 0)))
    cols = []
    for kh in range(k):
        for kw in range(k):
            patch = lax.slice(
                xp, (0, kh, kw, 0),
                (B, kh + (Ho - 1) * s + 1, kw + (Wo - 1) * s + 1, C),
                (1, s, s, 1))
            cols.append(patch)
    cols = jnp.concatenate(cols, axis=-1)
    return cols.reshape(B * Ho * Wo, k * k * C), Ho, Wo


class ParamGen:
    """Deterministic synthetic parameter generator."""

    def __init__(self, seed=0):
        self.key = jax.random.PRNGKey(seed)

    def take(self, shape, scale):
        self.key, sub = jax.random.split(self.key)
        return jax.random.normal(sub, shape, jnp.float32) * scale


def make_conv(pg, cin, cout, k, s=1, act=True):
    """Conv-BN-SiLU (BN folded).  Weights are pre-cast to bf16 and pre-padded to the
    tile grid once at build time; biases pre-padded as f32 rows."""
    K = k * k * cin
    w = pg.take((K, cout), 1.0 / math.sqrt(K))
    b = pg.take((cout,), 0.02)
    tk, tn = _pick_tile(K), _pick_tile(cout)
    Kp, Np = _round_up(K, tk), _round_up(cout, tn)
    return dict(
        wp=jnp.pad(w, ((0, Kp - K), (0, Np - cout))).astype(jnp.bfloat16),
        bp=jnp.pad(b, (0, Np - cout)).reshape(1, Np).astype(jnp.float32),
        k=k, s=s, act=act, kin=K, n=cout, tk=tk, tn=tn)


def apply_conv(p, x):
    B = x.shape[0]
    cols, Ho, Wo = im2col(x, p["k"], p["s"], p["k"] // 2)
    y = mm_bias_act(cols, p)
    return y.reshape(B, Ho, Wo, p["n"])


def apply_seq(seq, x):
    for p in seq:
        x = apply_conv(p, x)
    return x


def make_c2f(pg, c1, c2, n, shortcut):
    c = c2 // 2
    return dict(
        cv1=make_conv(pg, c1, 2 * c, 1),
        cv2=make_conv(pg, (2 + n) * c, c2, 1),
        m=[dict(cv1=make_conv(pg, c, c, 3), cv2=make_conv(pg, c, c, 3))
           for _ in range(n)],
        shortcut=shortcut, c=c)


def apply_bottleneck(p, x, shortcut):
    y = apply_conv(p["cv2"], apply_conv(p["cv1"], x))
    return x + y if shortcut else y


def apply_c2f(p, x):
    y = apply_conv(p["cv1"], x)
    c = p["c"]
    ys = [y[..., :c], y[..., c:]]
    for m in p["m"]:
        ys.append(apply_bottleneck(m, ys[-1], p["shortcut"]))
    return apply_conv(p["cv2"], jnp.concatenate(ys, axis=-1))


def make_sppf(pg, c1, c2, k=5):
    c_ = c1 // 2
    return dict(cv1=make_conv(pg, c1, c_, 1), cv2=make_conv(pg, c_ * 4, c2, 1), k=k)


def apply_sppf(p, x):
    # max-pool (k=5, s=1, pad=2) kept in plain-JAX glue (reduce_window)
    k = p["k"]
    y = [apply_conv(p["cv1"], x)]
    neg_inf = jnp.array(-jnp.inf, dtype=y[0].dtype)
    for _ in range(3):
        y.append(lax.reduce_window(
            y[-1], neg_inf, lax.max, (1, k, k, 1), (1, 1, 1, 1),
            [(0, 0), (k // 2, k // 2), (k // 2, k // 2), (0, 0)]))
    return apply_conv(p["cv2"], jnp.concatenate(y, axis=-1))


def make_proto(pg, c1, c_, c2):
    return dict(
        cv1=make_conv(pg, c1, c_, 3),
        # ConvTranspose2d(C, C, 2, 2) == 1x1 matmul to 4*C channels + pixel shuffle
        up=make_conv(pg, c_, 4 * c_, 1, act=False),
        cv2=make_conv(pg, c_, c_, 3),
        cv3=make_conv(pg, c_, c2, 1))


def apply_proto(p, x):
    x = apply_conv(p["cv1"], x)
    B, H, W, C = x.shape
    y = mm_bias_act(x.reshape(B * H * W, C), p["up"])
    y = y.reshape(B, H, W, 2, 2, C).transpose(0, 1, 3, 2, 4, 5).reshape(B, 2 * H, 2 * W, C)
    y = apply_conv(p["cv2"], y)
    return apply_conv(p["cv3"], y)


def upsample2(x):  # nn.Upsample(scale_factor=2, mode='nearest'), NHWC
    return jnp.repeat(jnp.repeat(x, 2, axis=1), 2, axis=2)


# ----------------------------------------------------------------------------
# YOLOv8n-seg model (width=0.25, depth=0.33, max_channels=1024 already applied)
# ----------------------------------------------------------------------------
def build_yolov8n_seg(pg, nc=80):
    m = {}
    # backbone
    m["b0"] = make_conv(pg, 3, 16, 3, 2)
    m["b1"] = make_conv(pg, 16, 32, 3, 2)
    m["b2"] = make_c2f(pg, 32, 32, 1, True)
    m["b3"] = make_conv(pg, 32, 64, 3, 2)
    m["b4"] = make_c2f(pg, 64, 64, 2, True)
    m["b5"] = make_conv(pg, 64, 128, 3, 2)
    m["b6"] = make_c2f(pg, 128, 128, 2, True)
    m["b7"] = make_conv(pg, 128, 256, 3, 2)
    m["b8"] = make_c2f(pg, 256, 256, 1, True)
    m["b9"] = make_sppf(pg, 256, 256, 5)
    # head (PAN)
    m["h12"] = make_c2f(pg, 384, 128, 1, False)
    m["h15"] = make_c2f(pg, 192, 64, 1, False)
    m["h16"] = make_conv(pg, 64, 64, 3, 2)
    m["h18"] = make_c2f(pg, 192, 128, 1, False)
    m["h19"] = make_conv(pg, 128, 128, 3, 2)
    m["h21"] = make_c2f(pg, 384, 256, 1, False)
    # Segment head
    chs = (64, 128, 256)
    reg_max, nm, npr = 16, 32, 64
    c2 = max(16, chs[0] // 4, reg_max * 4)      # 64
    c3 = max(chs[0], min(nc, 100))              # 80
    c4 = max(chs[0] // 4, nm)                   # 32
    # Fused head stems: the first 3x3 of cv2/cv3/cv4 share the same input feature map,
    # so build them as ONE conv with concatenated output channels (64+80+32=176):
    # one im2col read and one (well-padded) matmul per scale instead of three.
    m["stem"] = [make_conv(pg, c, c2 + c3 + c4, 3) for c in chs]
    m["cv2"] = [[make_conv(pg, c2, c2, 3), make_conv(pg, c2, 4 * reg_max, 1, act=False)]
                for _ in chs]
    m["cv3"] = [[make_conv(pg, c3, c3, 3), make_conv(pg, c3, nc, 1, act=False)]
                for _ in chs]
    m["cv4"] = [[make_conv(pg, c4, c4, 3), make_conv(pg, c4, nm, 1, act=False)]
                for _ in chs]
    m["proto"] = make_proto(pg, chs[0], npr, nm)
    m["nm"] = nm
    m["split"] = (c2, c3, c4)
    return m


def yolo_v8_forward(m, x_nchw):
    """Input NCHW (like PyTorch); returns training-mode Segment outputs in NCHW (f32)."""
    x = jnp.transpose(x_nchw, (0, 2, 3, 1)).astype(jnp.bfloat16)  # -> NHWC, bf16 activations
    # backbone
    x = apply_conv(m["b0"], x)
    x = apply_conv(m["b1"], x)
    x = apply_c2f(m["b2"], x)
    x = apply_conv(m["b3"], x)
    p3 = apply_c2f(m["b4"], x)
    x = apply_conv(m["b5"], p3)
    p4 = apply_c2f(m["b6"], x)
    x = apply_conv(m["b7"], p4)
    x = apply_c2f(m["b8"], x)
    p5 = apply_sppf(m["b9"], x)
    # neck
    x = jnp.concatenate([upsample2(p5), p4], axis=-1)
    n4 = apply_c2f(m["h12"], x)
    x = jnp.concatenate([upsample2(n4), p3], axis=-1)
    o3 = apply_c2f(m["h15"], x)                      # P3/8
    x = jnp.concatenate([apply_conv(m["h16"], o3), n4], axis=-1)
    o4 = apply_c2f(m["h18"], x)                      # P4/16
    x = jnp.concatenate([apply_conv(m["h19"], o4), p5], axis=-1)
    o5 = apply_c2f(m["h21"], x)                      # P5/32
    feats = [o3, o4, o5]
    # Segment head (training-mode raw outputs)
    B = x_nchw.shape[0]
    proto = jnp.transpose(apply_proto(m["proto"], feats[0]), (0, 3, 1, 2)).astype(jnp.float32)
    c2, c3, c4 = m["split"]
    dets, mc = [], []
    for i, f in enumerate(feats):
        stem = apply_conv(m["stem"][i], f)                      # fused cv2/cv3/cv4 stems
        box = apply_seq(m["cv2"][i], stem[..., :c2])            # [B,H,W,64]
        cls = apply_seq(m["cv3"][i], stem[..., c2:c2 + c3])     # [B,H,W,nc]
        coef = apply_seq(m["cv4"][i], stem[..., c2 + c3:])      # [B,H,W,32]
        dets.append(jnp.transpose(jnp.concatenate([box, cls], -1),
                                  (0, 3, 1, 2)).astype(jnp.float32))
        mc.append(jnp.transpose(coef, (0, 3, 1, 2)).reshape(B, m["nm"], -1))
    mc = jnp.concatenate(mc, axis=2).astype(jnp.float32)
    return dets, mc, proto


if __name__ == "__main__":
    pg = ParamGen(seed=0)
    model = build_yolov8n_seg(pg, nc=80)

    key = jax.random.PRNGKey(0)
    x = jax.random.normal(key, (2, 3, 64, 64), jnp.float32)  # NCHW like PyTorch

    dets, mc, proto = yolo_v8_forward(model, x)
    jax.block_until_ready((dets, mc, proto))

    assert dets[0].shape == (2, 144, 8, 8)
    assert dets[1].shape == (2, 144, 4, 4)
    assert dets[2].shape == (2, 144, 2, 2)
    assert mc.shape == (2, 32, 8 * 8 + 4 * 4 + 2 * 2)
    assert proto.shape == (2, 32, 16, 16)
    print("KERNEL_OK")
</pallas_src>

<mosaic_0001>
module attributes {stable_mosaic.version = 11 : i64} {
  func.func @_mm_kernel(%arg0: i32, %arg1: i32, %arg2: i32, %arg3: memref<1024x128xbf16, #tpu.memory_space<vmem>>, %arg4: memref<128x128xbf16, #tpu.memory_space<vmem>>, %arg5: memref<1x128xf32, #tpu.memory_space<vmem>>, %arg6: memref<1024x128xbf16, #tpu.memory_space<vmem>>, %arg7: memref<1024x128xf32, #tpu.memory_space<vmem>>) attributes {dimension_semantics = [#tpu.dimension_semantics<parallel>, #tpu.dimension_semantics<parallel>, #tpu.dimension_semantics<arbitrary>], iteration_bounds = array<i64: 2, 1, 1>, scalar_prefetch = 0 : i64, scratch_operands = 1 : i64, tpu.core_type = #tpu.core_type<tc>, window_params = [{transform_indices = @transform_0, window_bounds = array<i64: 1024, 128>}, {transform_indices = @transform_1, window_bounds = array<i64: 128, 128>}, {transform_indices = @transform_2, window_bounds = array<i64: 1, 128>}, {transform_indices = @transform_3, window_bounds = array<i64: 1024, 128>}]} {
    %c0_i32 = arith.constant 0 : i32
    %0 = arith.cmpi eq, %arg2, %c0_i32 : i32
    %1 = arith.extui %0 : i1 to i32
    %c0_i32_0 = arith.constant 0 : i32
    %2 = arith.cmpi ne, %1, %c0_i32_0 : i32
    scf.if %2 {
      %cst_10 = arith.constant 0.000000e+00 : f32
      %12 = vector.broadcast %cst_10 : f32 to vector<1024x128xf32>
      %c0_11 = arith.constant 0 : index
      %c0_12 = arith.constant 0 : index
      %13 = vector.load %arg7[%c0_11, %c0_12] : memref<1024x128xf32, #tpu.memory_space<vmem>>, vector<1024x128xf32>
      tpu.vector_store %arg7[%c0_11, %c0_12], %12 {strides = array<i32>} : memref<1024x128xf32, #tpu.memory_space<vmem>>, vector<1024x128xf32>,
    } else {
    }
    %c0 = arith.constant 0 : index
    %c0_1 = arith.constant 0 : index
    %3 = vector.load %arg7[%c0, %c0_1] : memref<1024x128xf32, #tpu.memory_space<vmem>>, vector<1024x128xf32>
    %c0_2 = arith.constant 0 : index
    %c0_3 = arith.constant 0 : index
    %4 = vector.load %arg3[%c0_2, %c0_3] : memref<1024x128xbf16, #tpu.memory_space<vmem>>, vector<1024x128xbf16>
    %c0_4 = arith.constant 0 : index
    %c0_5 = arith.constant 0 : index
    %5 = vector.load %arg4[%c0_4, %c0_5] : memref<128x128xbf16, #tpu.memory_space<vmem>>, vector<128x128xbf16>
    %cst = arith.constant dense<0.000000e+00> : vector<1024x128xf32>
    %6 = tpu.matmul %4, %5, %cst {dimension_numbers = #tpu.dot_dimension_numbers<[1], [0], [0], [1], [0, 0, 1, 1], [], []>} : vector<1024x128xbf16>, vector<128x128xbf16>, vector<1024x128xf32> -> vector<1024x128xf32>
    %7 = arith.addf %3, %6 : vector<1024x128xf32>
    %c0_6 = arith.constant 0 : index
    %c0_7 = arith.constant 0 : index
    %8 = vector.load %arg7[%c0_6, %c0_7] : memref<1024x128xf32, #tpu.memory_space<vmem>>, vector<1024x128xf32>
    tpu.vector_store %arg7[%c0_6, %c0_7], %7 {strides = array<i32>} : memref<1024x128xf32, #tpu.memory_space<vmem>>, vector<1024x128xf32>,
    %c0_i32_8 = arith.constant 0 : i32
    %9 = arith.cmpi eq, %arg2, %c0_i32_8 : i32
    %10 = arith.extui %9 : i1 to i32
    %c0_i32_9 = arith.constant 0 : i32
    %11 = arith.cmpi ne, %10, %c0_i32_9 : i32
    scf.if %11 {
      %c0_10 = arith.constant 0 : index
      %c0_11 = arith.constant 0 : index
      %12 = vector.load %arg7[%c0_10, %c0_11] : memref<1024x128xf32, #tpu.memory_space<vmem>>, vector<1024x128xf32>
      %c0_12 = arith.constant 0 : index
      %c0_13 = arith.constant 0 : index
      %13 = vector.load %arg5[%c0_12, %c0_13] : memref<1x128xf32, #tpu.memory_space<vmem>>, vector<1x128xf32>
      %14 = vector.broadcast %13 : vector<1x128xf32> to vector<1024x128xf32>
      %15 = arith.addf %12, %14 : vector<1024x128xf32>
      %cst_14 = arith.constant 0.000000e+00 : f32
      %16 = vector.broadcast %cst_14 : f32 to vector<1024x128xf32>
      %17 = arith.subf %16, %15 : vector<1024x128xf32>
      %18 = math.exp %17 : vector<1024x128xf32>
      %cst_15 = arith.constant 1.000000e+00 : f32
      %19 = vector.broadcast %cst_15 : f32 to vector<1024x128xf32>
      %20 = arith.addf %19, %18 : vector<1024x128xf32>
      %21 = tpu.reciprocal %20 {approx = true} : vector<1024x128xf32> -> vector<1024x128xf32>
      %22 = arith.mulf %15, %21 : vector<1024x128xf32>
      %23 = arith.truncf %22 : vector<1024x128xf32> to vector<1024x128xbf16>
      %c0_16 = arith.constant 0 : index
      %c0_17 = arith.constant 0 : index
      %24 = vector.load %arg6[%c0_16, %c0_17] : memref<1024x128xbf16, #tpu.memory_space<vmem>>, vector<1024x128xbf16>
      tpu.vector_store %arg6[%c0_16, %c0_17], %23 {strides = array<i32>} : memref<1024x128xbf16, #tpu.memory_space<vmem>>, vector<1024x128xbf16>,
    } else {
    }
    return
  }
  func.func @transform_0(%arg0: i32, %arg1: i32, %arg2: i32) -> (i32, i32) {
    %c0_i32 = arith.constant 0 : i32
    return %arg0, %arg2 : i32, i32
  }
  func.func @transform_1(%arg0: i32, %arg1: i32, %arg2: i32) -> (i32, i32) {
    %c0_i32 = arith.constant 0 : i32
    return %arg2, %arg1 : i32, i32
  }
  func.func @transform_2(%arg0: i32, %arg1: i32, %arg2: i32) -> (i32, i32) {
    %c0_i32 = arith.constant 0 : i32
    %c0_i32_0 = arith.constant 0 : i32
    return %c0_i32, %arg1 : i32, i32
  }
  func.func @transform_3(%arg0: i32, %arg1: i32, %arg2: i32) -> (i32, i32) {
    %c0_i32 = arith.constant 0 : i32
    return %arg0, %arg1 : i32, i32
  }
}

</mosaic_0001>

<llo_original>
// kernel: tpu_custom_call.1
$region0: #{tpu_custom_call.1}
  #allocation0 [shape = 'u32[]', space=smem, size = 0x4, offset = 0x4, fixed_abs, tag = 'smem constant byte address 0x4 - core index']
  #allocation1 [shape = 'u32[72,128]{1,0:T(1,128)}', space=vmem, size = 0x9000, scoped, tag = 'internal scratch']
  #allocation2 [shape = 'f32[1024,128]{1,0:T(8,128)}', space=vmem, size = 0x80000, scoped, tag = 'scratch operand']
  %s0 = inlined_call_operand.hbm [shape: bf16[2048,128], index: 0, kind: input, shape index: {}]
  %s1 = inlined_call_operand.hbm [shape: bf16[128,128], index: 1, kind: input, shape index: {}]
  %s2 = inlined_call_operand.vmem [shape: f32[1,128], index: 2, kind: input, shape index: {}]
  %s3 = inlined_call_operand.hbm [shape: bf16[2048,128], index: 3, kind: output, shape index: {}]
  %s4 = sld [smem:[#allocation0]]
  $region61: #{tpu_custom_call.1} parent=0
    _
  %s6 = ssub.s32 1, %s4
  %s7 = scalar_select 0, %s6, %s4
  $region1: #{tpu_custom_call.1} parent=0
    #allocation3 [shape = 'u8[524288]{0}', space=vmem, size = 0x80000, scoped, tag = 'input window, operand 0']
    #allocation4 [shape = 's32[2]{0}', space=sflag, size = 0x8, scoped, tag = 'scoped memory for tpu_custom_call.1']
    #allocation5 [shape = 's32[2]{0}', space=sflag, size = 0x8, scoped, tag = 'scoped memory for tpu_custom_call.1']
    #allocation6 [shape = 'u8[32768]{0}', space=vmem, size = 0x8000, scoped, tag = 'input window, operand 1, single buffered']
    #allocation7 [shape = 's32[1]{0}', space=sflag, size = 0x4, scoped, tag = 'scoped memory for tpu_custom_call.1']
    #allocation8 [shape = 'u8[524288]{0}', space=vmem, size = 0x80000, scoped, tag = 'output window, operand 0']
    %8 = vsyncpa [#allocation4], 0
    %s9 = scalar_lea.sflag [#allocation4], 1
    %10 = vsyncpa %s9, 0
    %11 = vsyncpa [#allocation7], 0
    %12 = vsyncpa [#allocation5], 0
    %s13 = scalar_lea.sflag [#allocation5], 1
    %14 = vsyncpa %s13, 0
    loop: start=0, step=1, limit=4
    $region2: #{tpu_custom_call.1} parent=1 // loop_pre_header
      _
    $region3: #{tpu_custom_call.1} parent=1 // loop_header
      %s16 = sphi 0, %s20
      %p17 = scmp.ge.s32.totalorder %s16, 4
      %s23 = sphi 0, %s42
      %s24 = sphi 0, %s38
      %s25 = sphi 0, %s34
      %s26 = sphi 0, %s23
      %s27 = sphi 0, %s24
      %s28 = sphi 0, %s25
      %s29 = sphi 0, %s26
      %s30 = sphi 0, %s27
      %s31 = sphi 0, %s28
      %s47 = sphi 0, %s49
      %s50 = sphi 0, %s47
      %s51 = sphi 0, %s50
      %s67 = sphi 0, %s51
      %s75 = sphi 0, %s77
      %s78 = sphi 0, %s75
      %s79 = sphi 0, %s78
      %s95 = sphi 0, %s79
      %s101 = sphi 0, %s103
      %s104 = sphi 0, %s101
      %s105 = sphi 0, %s104
      %s121 = sphi 0, %s105
      %s129 = sphi 0, %s131
      %s132 = sphi 0, %s129
      %s133 = sphi 0, %s132
      %s149 = sphi 0, %s133
    $region4: #{tpu_custom_call.1} parent=1 // loop_header_branch
      %19 = sbr.rel (%p17) target = $region8
    $region5: #{tpu_custom_call.1} parent=1 // loop_body
      %s21 = ssub.s32 %s16, 1
      %s22 = ssub.s32 %s16, 2
      %s32 = sadd.s32 1, %s25
      %p33 = scmp.ge.s32.totalorder %s32, 1
      %s34 = scalar_select %p33, 0, %s32
      %s35 = sadd.s32 1, %s24
      %s36 = scalar_select %p33, %s35, %s24
      %p37 = scmp.ge.s32.totalorder %s36, 1
      %s38 = scalar_select %p37, 0, %s36
      %s39 = sadd.s32 1, %s23
      %s40 = scalar_select %p37, %s39, %s23
      %p41 = scmp.ge.s32.totalorder %s40, 2
      %s42 = scalar_select %p41, 0, %s40
      %s43 = ssub.s32 %s23, %s42
      %s44 = ssub.s32 %s25, %s34
      %s45 = sor.u32 %s43, %s44
      %p46 = scmp.eq.s32.totalorder %s45, 0
      %s48 = sadd.s32 %s47, 1
      %s49 = scalar_select %p46, %s47, %s48
      %p52 = pneg %p46
      %p53 = scmp.eq.s32.totalorder %s16, 1
      %p54 = por %p52, %p53
      %p55 = scmp.ne.s32.totalorder %s47, %s50
      %p56 = scmp.eq.s32.totalorder %s16, 0
      %p57 = por %p55, %p56
      %p58 = scmp.ne.s32.totalorder %s47, %s50
      %p59 = scmp.eq.s32.totalorder %s21, 1
      %p60 = por %p58, %p59
      %p61 = scmp.ne.s32.totalorder %s50, %s51
      %p62 = scmp.eq.s32.totalorder %s21, 0
      %p63 = por %p61, %p62
      %p64 = scmp.ne.s32.totalorder %s50, %s51
      %p65 = scmp.eq.s32.totalorder %s22, 1
      %p66 = por %p64, %p65
      %p68 = scmp.ne.s32.totalorder %s51, %s67
      %p69 = scmp.eq.s32.totalorder %s22, 0
      %p70 = por %p68, %p69
      %s71 = ssub.s32 %s25, %s34
      %s72 = ssub.s32 %s24, %s38
      %s73 = sor.u32 %s71, %s72
      %p74 = scmp.eq.s32.totalorder %s73, 0
      %s76 = sadd.s32 %s75, 1
      %s77 = scalar_select %p74, %s75, %s76
      %p80 = pneg %p74
      %p81 = scmp.eq.s32.totalorder %s16, 1
      %p82 = por %p80, %p81
      %p83 = scmp.ne.s32.totalorder %s75, %s78
      %p84 = scmp.eq.s32.totalorder %s16, 0
      %p85 = por %p83, %p84
      %p86 = scmp.ne.s32.totalorder %s75, %s78
      %p87 = scmp.eq.s32.totalorder %s21, 1
      %p88 = por %p86, %p87
      %p89 = scmp.ne.s32.totalorder %s78, %s79
      %p90 = scmp.eq.s32.totalorder %s21, 0
      %p91 = por %p89, %p90
      %p92 = scmp.ne.s32.totalorder %s78, %s79
      %p93 = scmp.eq.s32.totalorder %s22, 1
      %p94 = por %p92, %p93
      %p96 = scmp.ne.s32.totalorder %s79, %s95
      %p97 = scmp.eq.s32.totalorder %s22, 0
      %p98 = por %p96, %p97
      %s99 = ssub.s32 %s24, %s38
      %p100 = scmp.eq.s32.totalorder %s99, 0
      %s102 = sadd.s32 %s101, 1
      %s103 = scalar_select %p100, %s101, %s102
      %p106 = pneg %p100
      %p107 = scmp.eq.s32.totalorder %s16, 1
      %p108 = por %p106, %p107
      %p109 = scmp.ne.s32.totalorder %s101, %s104
      %p110 = scmp.eq.s32.totalorder %s16, 0
      %p111 = por %p109, %p110
      %p112 = scmp.ne.s32.totalorder %s101, %s104
      %p113 = scmp.eq.s32.totalorder %s21, 1
      %p114 = por %p112, %p113
      %p115 = scmp.ne.s32.totalorder %s104, %s105
      %p116 = scmp.eq.s32.totalorder %s21, 0
      %p117 = por %p115, %p116
      %p118 = scmp.ne.s32.totalorder %s104, %s105
      %p119 = scmp.eq.s32.totalorder %s22, 1
      %p120 = por %p118, %p119
      %p122 = scmp.ne.s32.totalorder %s105, %s121
      %p123 = scmp.eq.s32.totalorder %s22, 0
      %p124 = por %p122, %p123
      %s125 = ssub.s32 %s23, %s42
      %s126 = ssub.s32 %s24, %s38
      %s127 = sor.u32 %s125, %s126
      %p128 = scmp.eq.s32.totalorder %s127, 0
      %s130 = sadd.s32 %s129, 1
      %s131 = scalar_select %p128, %s129, %s130
      %p134 = pneg %p128
      %p135 = scmp.eq.s32.totalorder %s16, 1
      %p136 = por %p134, %p135
      %p137 = scmp.ne.s32.totalorder %s129, %s132
      %p138 = scmp.eq.s32.totalorder %s16, 0
      %p139 = por %p137, %p138
      %p140 = scmp.ne.s32.totalorder %s129, %s132
      %p141 = scmp.eq.s32.totalorder %s21, 1
      %p142 = por %p140, %p141
      %p143 = scmp.ne.s32.totalorder %s132, %s133
      %p144 = scmp.eq.s32.totalorder %s21, 0
      %p145 = por %p143, %p144
      %p146 = scmp.ne.s32.totalorder %s132, %s133
      %p147 = scmp.eq.s32.totalorder %s22, 1
      %p148 = por %p146, %p147
      %p150 = scmp.ne.s32.totalorder %s133, %s149
      %p151 = scmp.eq.s32.totalorder %s22, 0
      %p152 = por %p150, %p151
      %p153 = scmp.le.s32.totalorder 1, %s16
      %p154 = scmp.lt.s32.totalorder %s16, 3
      %p155 = pnand %p153, %p154
      %p156 = pneg %p155
      // Predicated region
      $region9: #{tpu_custom_call.1} parent=5 // pred_check
        _
      $region10: #{tpu_custom_call.1} parent=5 // pred_check_branch
        %158 = sbr.rel (%p155) target = $region12
      $region11: #{tpu_custom_call.1} parent=5 // pred_region
        %s159 = ssub.s32 %s16, 1
        // Predicated region
        $region13: #{tpu_custom_call.1} parent=11 // pred_check
          %p160 = pneg %p91
        $region14: #{tpu_custom_call.1} parent=11 // pred_check_branch
          %162 = sbr.rel (%p160) target = $region16
        $region15: #{tpu_custom_call.1} parent=11 // pred_region
          %s163 = smul.u32 16, %s28
          %165 = vsyncadd [#allocation7], 0
          %s166 = sadd.s32 %s27, %s163
          %s167 = smul.addr %s166, 4
          %s168 = scalar_lea.hbm %s1, %s167
          %s169 = sshll.u32 %s168, 4
          %s170 = int_to_ptr.hbm [resolvable:$true] %s169
          %s171 = sshll.u32 [#allocation6], 4
          %s172 = int_to_ptr.vmem [resolvable:$true] %s171
          %177 = dma.hbm_to_vmem [thread:$0]  %s170, 1024, %s172, [#allocation7], 64, 64, 4
        $region16: #{tpu_custom_call.1} parent=11 // pred_fallthru
          _
        // Predicated region
        $region17: #{tpu_custom_call.1} parent=11 // pred_check
          %p178 = pneg %p117
        $region18: #{tpu_custom_call.1} parent=11 // pred_check_branch
          %180 = sbr.rel (%p178) target = $region20
        $region19: #{tpu_custom_call.1} parent=11 // pred_region
          %p181 = scmp.lt.s32.totalorder %s27, 0
          %s182 = scalar_select %p181, %s27, 0
          %s183 = scalar_lea.vmem %s2, %s182
        $region20: #{tpu_custom_call.1} parent=11 // pred_fallthru
          _
      $region12: #{tpu_custom_call.1} parent=5 // pred_fallthru
        _
      %p184 = scmp.lt.s32.totalorder %s16, 2
      // Predicated region
      $region21: #{tpu_custom_call.1} parent=5 // pred_check
        %p185 = pneg %p184
      $region22: #{tpu_custom_call.1} parent=5 // pred_check_branch
        %187 = sbr.rel (%p185) target = $region24
      $region23: #{tpu_custom_call.1} parent=5 // pred_region
        // Predicated region
        $region25: #{tpu_custom_call.1} parent=23 // pred_check
          %p188 = pneg %p57
        $region26: #{tpu_custom_call.1} parent=23 // pred_check_branch
          %190 = sbr.rel (%p188) target = $region28
        $region27: #{tpu_custom_call.1} parent=23 // pred_region
          %s191 = sand.u32 %s47, 1
          %s192 = scalar_lea.sflag [#allocation4], %s191
          %s193 = sand.u32 %s47, 1
          %s194 = smul.addr %s193, 512
          %s195 = scalar_lea.vmem [#allocation3], %s194
          %s196 = smul.u32 128, %s23
          %198 = vsyncadd %s192, 0
          %s199 = sadd.s32 %s25, %s196
          %s200 = smul.addr %s199, 4
          %s201 = scalar_lea.hbm %s0, %s200
          %s202 = sshll.u32 %s201, 4
          %s203 = int_to_ptr.hbm [resolvable:$true] %s202
          %s204 = sshll.u32 %s195, 4
          %s205 = int_to_ptr.vmem [resolvable:$true] %s204
          %210 = dma.hbm_to_vmem [thread:$0]  %s203, 8192, %s205, %s192, 64, 64, 4
        $region28: #{tpu_custom_call.1} parent=23 // pred_fallthru
          _
      $region24: #{tpu_custom_call.1} parent=5 // pred_fallthru
        _
      %p211 = scmp.le.s32.totalorder 1, %s16
      %p212 = scmp.lt.s32.totalorder %s16, 3
      %p213 = pnand %p211, %p212
      %p214 = pneg %p213
      // Predicated region
      $region29: #{tpu_custom_call.1} parent=5 // pred_check
        _
      $region30: #{tpu_custom_call.1} parent=5 // pred_check_branch
        %216 = sbr.rel (%p213) target = $region32
      $region31: #{tpu_custom_call.1} parent=5 // pred_region
        %s217 = ssub.s32 %s16, 1
        %s218 = sand.u32 %s50, 1
        %s219 = scalar_lea.sflag [#allocation4], %s218
        %s220 = sand.u32 %s50, 1
        %s221 = smul.addr %s220, 512
        %s222 = scalar_lea.vmem [#allocation3], %s221
        // Predicated region
        $region33: #{tpu_custom_call.1} parent=31 // pred_check
          %p223 = pneg %p63
        $region34: #{tpu_custom_call.1} parent=31 // pred_check_branch
          %225 = sbr.rel (%p223) target = $region36
        $region35: #{tpu_custom_call.1} parent=31 // pred_region
          %227 = dma.done %s219, 8192
        $region36: #{tpu_custom_call.1} parent=31 // pred_fallthru
          _
        // Predicated region
        $region37: #{tpu_custom_call.1} parent=31 // pred_check
          %p228 = pneg %p91
        $region38: #{tpu_custom_call.1} parent=31 // pred_check_branch
          %230 = sbr.rel (%p228) target = $region40
        $region39: #{tpu_custom_call.1} parent=31 // pred_region
          %232 = dma.done [#allocation7], 1024
        $region40: #{tpu_custom_call.1} parent=31 // pred_fallthru
          _
        %s233 = sand.u32 %s50, 1
        %s234 = scalar_lea.sflag [#allocation4], %s233
        %s235 = sand.u32 %s50, 1
        %s236 = smul.addr %s235, 512
        %s237 = scalar_lea.vmem [#allocation3], %s236
        %p238 = pneg %p63
        %p239 = pneg %p60
        %p240 = pneg %p91
        %p241 = pneg %p88
        %p242 = scmp.lt.s32.totalorder %s27, 0
        %s243 = scalar_select %p242, %s27, 0
        %s244 = scalar_lea.vmem %s2, %s243
        %p245 = pneg %p117
        %p246 = pneg %p114
        %p247 = pneg %p145
        %p248 = pneg %p142
        %s249 = sand.u32 %s132, 1
        %s250 = scalar_lea.sflag [#allocation5], %s249
        %s251 = sand.u32 %s132, 1
        %s252 = smul.addr %s251, 512
        %s253 = scalar_lea.vmem [#allocation8], %s252
        %s254 = smul.u32 128, %s26
        %s255 = smul.u32 16, %s28
        %p256 = scmp.lt.s32.totalorder %s27, 0
        %s257 = scalar_select %p256, %s27, 0
        %s258 = scalar_lea.vmem %s2, %s257
        %s259 = smul.u32 128, %s26
        %p260 = scmp.eq.s32.totalorder %s28, 0
        // Predicated region
        $region41: #{tpu_custom_call.1} parent=31 // pred_check
          %p261 = pneg %p260
        $region42: #{tpu_custom_call.1} parent=31 // pred_check_branch
          %263 = sbr.rel (%p261) target = $region44
        $region43: #{tpu_custom_call.1} parent=31 // pred_region
          %264 = vst [vmem:[#allocation2] sm:$0xff] 0.0
          %265 = vst [vmem:[#allocation2 + $0x8] sm:$0xff] 0.0
          %266 = vst [vmem:[#allocation2 + $0x10] sm:$0xff] 0.0
          %267 = vst [vmem:[#allocation2 + $0x18] sm:$0xff] 0.0
          %268 = vst [vmem:[#allocation2 + $0x20] sm:$0xff] 0.0
          %269 = vst [vmem:[#allocation2 + $0x28] sm:$0xff] 0.0
          %270 = vst [vmem:[#allocation2 + $0x30] sm:$0xff] 0.0
          %271 = vst [vmem:[#allocation2 + $0x38] sm:$0xff] 0.0
          %272 = vst [vmem:[#allocation2 + $0x40] sm:$0xff] 0.0
          %273 = vst [vmem:[#allocation2 + $0x48] sm:$0xff] 0.0
          %274 = vst [vmem:[#allocation2 + $0x50] sm:$0xff] 0.0
          %275 = vst [vmem:[#allocation2 + $0x58] sm:$0xff] 0.0
          %276 = vst [vmem:[#allocation2 + $0x60] sm:$0xff] 0.0
          %277 = vst [vmem:[#allocation2 + $0x68] sm:$0xff] 0.0
          %278 = vst [vmem:[#allocation2 + $0x70] sm:$0xff] 0.0
          %279 = vst [vmem:[#allocation2 + $0x78] sm:$0xff] 0.0
          %280 = vst [vmem:[#allocation2 + $0x80] sm:$0xff] 0.0
          %281 = vst [vmem:[#allocation2 + $0x88] sm:$0xff] 0.0
          %282 = vst [vmem:[#allocation2 + $0x90] sm:$0xff] 0.0
          %283 = vst [vmem:[#allocation2 + $0x98] sm:$0xff] 0.0
          %284 = vst [vmem:[#allocation2 + $0xa0] sm:$0xff] 0.0
          %285 = vst [vmem:[#allocation2 + $0xa8] sm:$0xff] 0.0
          %286 = vst [vmem:[#allocation2 + $0xb0] sm:$0xff] 0.0
          %287 = vst [vmem:[#allocation2 + $0xb8] sm:$0xff] 0.0
          %288 = vst [vmem:[#allocation2 + $0xc0] sm:$0xff] 0.0
          %289 = vst [vmem:[#allocation2 + $0xc8] sm:$0xff] 0.0
          %290 = vst [vmem:[#allocation2 + $0xd0] sm:$0xff] 0.0
          %291 = vst [vmem:[#allocation2 + $0xd8] sm:$0xff] 0.0
          %292 = vst [vmem:[#allocation2 + $0xe0] sm:$0xff] 0.0
          %293 = vst [vmem:[#allocation2 + $0xe8] sm:$0xff] 0.0
          %294 = vst [vmem:[#allocation2 + $0xf0] sm:$0xff] 0.0
          %295 = vst [vmem:[#allocation2 + $0xf8] sm:$0xff] 0.0
          %296 = vst [vmem:[#allocation2 + $0x100] sm:$0xff] 0.0
          %297 = vst [vmem:[#allocation2 + $0x108] sm:$0xff] 0.0
          %298 = vst [vmem:[#allocation2 + $0x110] sm:$0xff] 0.0
          %299 = vst [vmem:[#allocation2 + $0x118] sm:$0xff] 0.0
          %300 = vst [vmem:[#allocation2 + $0x120] sm:$0xff] 0.0
          %301 = vst [vmem:[#allocation2 + $0x128] sm:$0xff] 0.0
          %302 = vst [vmem:[#allocation2 + $0x130] sm:$0xff] 0.0
          %303 = vst [vmem:[#allocation2 + $0x138] sm:$0xff] 0.0
          %304 = vst [vmem:[#allocation2 + $0x140] sm:$0xff] 0.0
          %305 = vst [vmem:[#allocation2 + $0x148] sm:$0xff] 0.0
          %306 = vst [vmem:[#allocation2 + $0x150] sm:$0xff] 0.0
          %307 = vst [vmem:[#allocation2 + $0x158] sm:$0xff] 0.0
          %308 = vst [vmem:[#allocation2 + $0x160] sm:$0xff] 0.0
          %309 = vst [vmem:[#allocation2 + $0x168] sm:$0xff] 0.0
          %310 = vst [vmem:[#allocation2 + $0x170] sm:$0xff] 0.0
          %311 = vst [vmem:[#allocation2 + $0x178] sm:$0xff] 0.0
          %312 = vst [vmem:[#allocation2 + $0x180] sm:$0xff] 0.0
          %313 = vst [vmem:[#allocation2 + $0x188] sm:$0xff] 0.0
          %314 = vst [vmem:[#allocation2 + $0x190] sm:$0xff] 0.0
          %315 = vst [vmem:[#allocation2 + $0x198] sm:$0xff] 0.0
          %316 = vst [vmem:[#allocation2 + $0x1a0] sm:$0xff] 0.0
          %317 = vst [vmem:[#allocation2 + $0x1a8] sm:$0xff] 0.0
          %318 = vst [vmem:[#allocation2 + $0x1b0] sm:$0xff] 0.0
          %319 = vst [vmem:[#allocation2 + $0x1b8] sm:$0xff] 0.0
          %320 = vst [vmem:[#allocation2 + $0x1c0] sm:$0xff] 0.0
          %321 = vst [vmem:[#allocation2 + $0x1c8] sm:$0xff] 0.0
          %322 = vst [vmem:[#allocation2 + $0x1d0] sm:$0xff] 0.0
          %323 = vst [vmem:[#allocation2 + $0x1d8] sm:$0xff] 0.0
          %324 = vst [vmem:[#allocation2 + $0x1e0] sm:$0xff] 0.0
          %325 = vst [vmem:[#allocation2 + $0x1e8] sm:$0xff] 0.0
          %326 = vst [vmem:[#allocation2 + $0x1f0] sm:$0xff] 0.0
          %327 = vst [vmem:[#allocation2 + $0x1f8] sm:$0xff] 0.0
          %328 = vst [vmem:[#allocation2 + $0x200] sm:$0xff] 0.0
          %329 = vst [vmem:[#allocation2 + $0x208] sm:$0xff] 0.0
          %330 = vst [vmem:[#allocation2 + $0x210] sm:$0xff] 0.0
          %331 = vst [vmem:[#allocation2 + $0x218] sm:$0xff] 0.0
          %332 = vst [vmem:[#allocation2 + $0x220] sm:$0xff] 0.0
          %333 = vst [vmem:[#allocation2 + $0x228] sm:$0xff] 0.0
          %334 = vst [vmem:[#allocation2 + $0x230] sm:$0xff] 0.0
          %335 = vst [vmem:[#allocation2 + $0x238] sm:$0xff] 0.0
          %336 = vst [vmem:[#allocation2 + $0x240] sm:$0xff] 0.0
          %337 = vst [vmem:[#allocation2 + $0x248] sm:$0xff] 0.0
          %338 = vst [vmem:[#allocation2 + $0x250] sm:$0xff] 0.0
          %339 = vst [vmem:[#allocation2 + $0x258] sm:$0xff] 0.0
          %340 = vst [vmem:[#allocation2 + $0x260] sm:$0xff] 0.0
          %341 = vst [vmem:[#allocation2 + $0x268] sm:$0xff] 0.0
          %342 = vst [vmem:[#allocation2 + $0x270] sm:$0xff] 0.0
          %343 = vst [vmem:[#allocation2 + $0x278] sm:$0xff] 0.0
          %344 = vst [vmem:[#allocation2 + $0x280] sm:$0xff] 0.0
          %345 = vst [vmem:[#allocation2 + $0x288] sm:$0xff] 0.0
          %346 = vst [vmem:[#allocation2 + $0x290] sm:$0xff] 0.0
          %347 = vst [vmem:[#allocation2 + $0x298] sm:$0xff] 0.0
          %348 = vst [vmem:[#allocation2 + $0x2a0] sm:$0xff] 0.0
          %349 = vst [vmem:[#allocation2 + $0x2a8] sm:$0xff] 0.0
          %350 = vst [vmem:[#allocation2 + $0x2b0] sm:$0xff] 0.0
          %351 = vst [vmem:[#allocation2 + $0x2b8] sm:$0xff] 0.0
          %352 = vst [vmem:[#allocation2 + $0x2c0] sm:$0xff] 0.0
          %353 = vst [vmem:[#allocation2 + $0x2c8] sm:$0xff] 0.0
          %354 = vst [vmem:[#allocation2 + $0x2d0] sm:$0xff] 0.0
          %355 = vst [vmem:[#allocation2 + $0x2d8] sm:$0xff] 0.0
          %356 = vst [vmem:[#allocation2 + $0x2e0] sm:$0xff] 0.0
          %357 = vst [vmem:[#allocation2 + $0x2e8] sm:$0xff] 0.0
          %358 = vst [vmem:[#allocation2 + $0x2f0] sm:$0xff] 0.0
          %359 = vst [vmem:[#allocation2 + $0x2f8] sm:$0xff] 0.0
          %360 = vst [vmem:[#allocation2 + $0x300] sm:$0xff] 0.0
          %361 = vst [vmem:[#allocation2 + $0x308] sm:$0xff] 0.0
          %362 = vst [vmem:[#allocation2 + $0x310] sm:$0xff] 0.0
          %363 = vst [vmem:[#allocation2 + $0x318] sm:$0xff] 0.0
          %364 = vst [vmem:[#allocation2 + $0x320] sm:$0xff] 0.0
          %365 = vst [vmem:[#allocation2 + $0x328] sm:$0xff] 0.0
          %366 = vst [vmem:[#allocation2 + $0x330] sm:$0xff] 0.0
          %367 = vst [vmem:[#allocation2 + $0x338] sm:$0xff] 0.0
          %368 = vst [vmem:[#allocation2 + $0x340] sm:$0xff] 0.0
          %369 = vst [vmem:[#allocation2 + $0x348] sm:$0xff] 0.0
          %370 = vst [vmem:[#allocation2 + $0x350] sm:$0xff] 0.0
          %371 = vst [vmem:[#allocation2 + $0x358] sm:$0xff] 0.0
          %372 = vst [vmem:[#allocation2 + $0x360] sm:$0xff] 0.0
          %373 = vst [vmem:[#allocation2 + $0x368] sm:$0xff] 0.0
          %374 = vst [vmem:[#allocation2 + $0x370] sm:$0xff] 0.0
          %375 = vst [vmem:[#allocation2 + $0x378] sm:$0xff] 0.0
          %376 = vst [vmem:[#allocation2 + $0x380] sm:$0xff] 0.0
          %377 = vst [vmem:[#allocation2 + $0x388] sm:$0xff] 0.0
          %378 = vst [vmem:[#allocation2 + $0x390] sm:$0xff] 0.0
          %379 = vst [vmem:[#allocation2 + $0x398] sm:$0xff] 0.0
          %380 = vst [vmem:[#allocation2 + $0x3a0] sm:$0xff] 0.0
          %381 = vst [vmem:[#allocation2 + $0x3a8] sm:$0xff] 0.0
          %382 = vst [vmem:[#allocation2 + $0x3b0] sm:$0xff] 0.0
          %383 = vst [vmem:[#allocation2 + $0x3b8] sm:$0xff] 0.0
          %384 = vst [vmem:[#allocation2 + $0x3c0] sm:$0xff] 0.0
          %385 = vst [vmem:[#allocation2 + $0x3c8] sm:$0xff] 0.0
          %386 = vst [vmem:[#allocation2 + $0x3d0] sm:$0xff] 0.0
          %387 = vst [vmem:[#allocation2 + $0x3d8] sm:$0xff] 0.0
          %388 = vst [vmem:[#allocation2 + $0x3e0] sm:$0xff] 0.0
          %389 = vst [vmem:[#allocation2 + $0x3e8] sm:$0xff] 0.0
          %390 = vst [vmem:[#allocation2 + $0x3f0] sm:$0xff] 0.0
          %391 = vst [vmem:[#allocation2 + $0x3f8] sm:$0xff] 0.0
        $region44: #{tpu_custom_call.1} parent=31 // pred_fallthru
          _
        %v392 = vld [vmem:[#allocation2] sm:$0xff]
        %v393 = vld [vmem:[#allocation2 + $0x8] sm:$0xff]
        %v394 = vld [vmem:[#allocation2 + $0x10] sm:$0xff]
        %v395 = vld [vmem:[#allocation2 + $0x18] sm:$0xff]
        %v396 = vld [vmem:[#allocation2 + $0x20] sm:$0xff]
        %v397 = vld [vmem:[#allocation2 + $0x28] sm:$0xff]
        %v398 = vld [vmem:[#allocation2 + $0x30] sm:$0xff]
        %v399 = vld [vmem:[#allocation2 + $0x38] sm:$0xff]
        %v400 = vld [vmem:[#allocation2 + $0x40] sm:$0xff]
        %v401 = vld [vmem:[#allocation2 + $0x48] sm:$0xff]
        %v402 = vld [vmem:[#allocation2 + $0x50] sm:$0xff]
        %v403 = vld [vmem:[#allocation2 + $0x58] sm:$0xff]
        %v404 = vld [vmem:[#allocation2 + $0x60] sm:$0xff]
        %v405 = vld [vmem:[#allocation2 + $0x68] sm:$0xff]
        %v406 = vld [vmem:[#allocation2 + $0x70] sm:$0xff]
        %v407 = vld [vmem:[#allocation2 + $0x78] sm:$0xff]
        %v408 = vld [vmem:[#allocation2 + $0x80] sm:$0xff]
        %v409 = vld [vmem:[#allocation2 + $0x88] sm:$0xff]
        %v410 = vld [vmem:[#allocation2 + $0x90] sm:$0xff]
        %v411 = vld [vmem:[#allocation2 + $0x98] sm:$0xff]
        %v412 = vld [vmem:[#allocation2 + $0xa0] sm:$0xff]
        %v413 = vld [vmem:[#allocation2 + $0xa8] sm:$0xff]
        %v414 = vld [vmem:[#allocation2 + $0xb0] sm:$0xff]
        %v415 = vld [vmem:[#allocation2 + $0xb8] sm:$0xff]
        %v416 = vld [vmem:[#allocation2 + $0xc0] sm:$0xff]
        %v417 = vld [vmem:[#allocation2 + $0xc8] sm:$0xff]
        %v418 = vld [vmem:[#allocation2 + $0xd0] sm:$0xff]
        %v419 = vld [vmem:[#allocation2 + $0xd8] sm:$0xff]
        %v420 = vld [vmem:[#allocation2 + $0xe0] sm:$0xff]
        %v421 = vld [vmem:[#allocation2 + $0xe8] sm:$0xff]
        %v422 = vld [vmem:[#allocation2 + $0xf0] sm:$0xff]
        %v423 = vld [vmem:[#allocation2 + $0xf8] sm:$0xff]
        %v424 = vld [vmem:[#allocation2 + $0x100] sm:$0xff]
        %v425 = vld [vmem:[#allocation2 + $0x108] sm:$0xff]
        %v426 = vld [vmem:[#allocation2 + $0x110] sm:$0xff]
        %v427 = vld [vmem:[#allocation2 + $0x118] sm:$0xff]
        %v428 = vld [vmem:[#allocation2 + $0x120] sm:$0xff]
        %v429 = vld [vmem:[#allocation2 + $0x128] sm:$0xff]
        %v430 = vld [vmem:[#allocation2 + $0x130] sm:$0xff]
        %v431 = vld [vmem:[#allocation2 + $0x138] sm:$0xff]
        %v432 = vld [vmem:[#allocation2 + $0x140] sm:$0xff]
        %v433 = vld [vmem:[#allocation2 + $0x148] sm:$0xff]
        %v434 = vld [vmem:[#allocation2 + $0x150] sm:$0xff]
        %v435 = vld [vmem:[#allocation2 + $0x158] sm:$0xff]
        %v436 = vld [vmem:[#allocation2 + $0x160] sm:$0xff]
        %v437 = vld [vmem:[#allocation2 + $0x168] sm:$0xff]
        %v438 = vld [vmem:[#allocation2 + $0x170] sm:$0xff]
        %v439 = vld [vmem:[#allocation2 + $0x178] sm:$0xff]
        %v440 = vld [vmem:[#allocation2 + $0x180] sm:$0xff]
        %v441 = vld [vmem:[#allocation2 + $0x188] sm:$0xff]
        %v442 = vld [vmem:[#allocation2 + $0x190] sm:$0xff]
        %v443 = vld [vmem:[#allocation2 + $0x198] sm:$0xff]
        %v444 = vld [vmem:[#allocation2 + $0x1a0] sm:$0xff]
        %v445 = vld [vmem:[#allocation2 + $0x1a8] sm:$0xff]
        %v446 = vld [vmem:[#allocation2 + $0x1b0] sm:$0xff]
        %v447 = vld [vmem:[#allocation2 + $0x1b8] sm:$0xff]
        %v448 = vld [vmem:[#allocation2 + $0x1c0] sm:$0xff]
        %v449 = vld [vmem:[#allocation2 + $0x1c8] sm:$0xff]
        %v450 = vld [vmem:[#allocation2 + $0x1d0] sm:$0xff]
        %v451 = vld [vmem:[#allocation2 + $0x1d8] sm:$0xff]
        %v452 = vld [vmem:[#allocation2 + $0x1e0] sm:$0xff]
        %v453 = vld [vmem:[#allocation2 + $0x1e8] sm:$0xff]
        %v454 = vld [vmem:[#allocation2 + $0x1f0] sm:$0xff]
        %v455 = vld [vmem:[#allocation2 + $0x1f8] sm:$0xff]
        %v456 = vld [vmem:[#allocation2 + $0x200] sm:$0xff]
        %v457 = vld [vmem:[#allocation2 + $0x208] sm:$0xff]
        %v458 = vld [vmem:[#allocation2 + $0x210] sm:$0xff]
        %v459 = vld [vmem:[#allocation2 + $0x218] sm:$0xff]
        %v460 = vld [vmem:[#allocation2 + $0x220] sm:$0xff]
        %v461 = vld [vmem:[#allocation2 + $0x228] sm:$0xff]
        %v462 = vld [vmem:[#allocation2 + $0x230] sm:$0xff]
        %v463 = vld [vmem:[#allocation2 + $0x238] sm:$0xff]
        %v464 = vld [vmem:[#allocation2 + $0x240] sm:$0xff]
        %v465 = vld [vmem:[#allocation2 + $0x248] sm:$0xff]
        %v466 = vld [vmem:[#allocation2 + $0x250] sm:$0xff]
        %v467 = vld [vmem:[#allocation2 + $0x258] sm:$0xff]
        %v468 = vld [vmem:[#allocation2 + $0x260] sm:$0xff]
        %v469 = vld [vmem:[#allocation2 + $0x268] sm:$0xff]
        %v470 = vld [vmem:[#allocation2 + $0x270] sm:$0xff]
        %v471 = vld [vmem:[#allocation2 + $0x278] sm:$0xff]
        %v472 = vld [vmem:[#allocation2 + $0x280] sm:$0xff]
        %v473 = vld [vmem:[#allocation2 + $0x288] sm:$0xff]
        %v474 = vld [vmem:[#allocation2 + $0x290] sm:$0xff]
        %v475 = vld [vmem:[#allocation2 + $0x298] sm:$0xff]
        %v476 = vld [vmem:[#allocation2 + $0x2a0] sm:$0xff]
        %v477 = vld [vmem:[#allocation2 + $0x2a8] sm:$0xff]
        %v478 = vld [vmem:[#allocation2 + $0x2b0] sm:$0xff]
        %v479 = vld [vmem:[#allocation2 + $0x2b8] sm:$0xff]
        %v480 = vld [vmem:[#allocation2 + $0x2c0] sm:$0xff]
        %v481 = vld [vmem:[#allocation2 + $0x2c8] sm:$0xff]
        %v482 = vld [vmem:[#allocation2 + $0x2d0] sm:$0xff]
        %v483 = vld [vmem:[#allocation2 + $0x2d8] sm:$0xff]
        %v484 = vld [vmem:[#allocation2 + $0x2e0] sm:$0xff]
        %v485 = vld [vmem:[#allocation2 + $0x2e8] sm:$0xff]
        %v486 = vld [vmem:[#allocation2 + $0x2f0] sm:$0xff]
        %v487 = vld [vmem:[#allocation2 + $0x2f8] sm:$0xff]
        %v488 = vld [vmem:[#allocation2 + $0x300] sm:$0xff]
        %v489 = vld [vmem:[#allocation2 + $0x308] sm:$0xff]
        %v490 = vld [vmem:[#allocation2 + $0x310] sm:$0xff]
        %v491 = vld [vmem:[#allocation2 + $0x318] sm:$0xff]
        %v492 = vld [vmem:[#allocation2 + $0x320] sm:$0xff]
        %v493 = vld [vmem:[#allocation2 + $0x328] sm:$0xff]
        %v494 = vld [vmem:[#allocation2 + $0x330] sm:$0xff]
        %v495 = vld [vmem:[#allocation2 + $0x338] sm:$0xff]
        %v496 = vld [vmem:[#allocation2 + $0x340] sm:$0xff]
        %v497 = vld [vmem:[#allocation2 + $0x348] sm:$0xff]
        %v498 = vld [vmem:[#allocation2 + $0x350] sm:$0xff]
        %v499 = vld [vmem:[#allocation2 + $0x358] sm:$0xff]
        %v500 = vld [vmem:[#allocation2 + $0x360] sm:$0xff]
        %v501 = vld [vmem:[#allocation2 + $0x368] sm:$0xff]
        %v502 = vld [vmem:[#allocation2 + $0x370] sm:$0xff]
        %v503 = vld [vmem:[#allocation2 + $0x378] sm:$0xff]
        %v504 = vld [vmem:[#allocation2 + $0x380] sm:$0xff]
        %v505 = vld [vmem:[#allocation2 + $0x388] sm:$0xff]
        %v506 = vld [vmem:[#allocation2 + $0x390] sm:$0xff]
        %v507 = vld [vmem:[#allocation2 + $0x398] sm:$0xff]
        %v508 = vld [vmem:[#allocation2 + $0x3a0] sm:$0xff]
        %v509 = vld [vmem:[#allocation2 + $0x3a8] sm:$0xff]
        %v510 = vld [vmem:[#allocation2 + $0x3b0] sm:$0xff]
        %v511 = vld [vmem:[#allocation2 + $0x3b8] sm:$0xff]
        %v512 = vld [vmem:[#allocation2 + $0x3c0] sm:$0xff]
        %v513 = vld [vmem:[#allocation2 + $0x3c8] sm:$0xff]
        %v514 = vld [vmem:[#allocation2 + $0x3d0] sm:$0xff]
        %v515 = vld [vmem:[#allocation2 + $0x3d8] sm:$0xff]
        %v516 = vld [vmem:[#allocation2 + $0x3e0] sm:$0xff]
        %v517 = vld [vmem:[#allocation2 + $0x3e8] sm:$0xff]
        %v518 = vld [vmem:[#allocation2 + $0x3f0] sm:$0xff]
        %v519 = vld [vmem:[#allocation2 + $0x3f8] sm:$0xff]
        %v520 = vld [vmem:[%s222] sm:$0xf]
        %v521 = vld [vmem:[%s222 + $0x4] sm:$0xf]
        %v522 = vld [vmem:[%s222 + $0x8] sm:$0xf]
        %v523 = vld [vmem:[%s222 + $0xc] sm:$0xf]
        %v524 = vld [vmem:[%s222 + $0x10] sm:$0xf]
        %v525 = vld [vmem:[%s222 + $0x14] sm:$0xf]
        %v526 = vld [vmem:[%s222 + $0x18] sm:$0xf]
        %v527 = vld [vmem:[%s222 + $0x1c] sm:$0xf]
        %v528 = vld [vmem:[%s222 + $0x20] sm:$0xf]
        %v529 = vld [vmem:[%s222 + $0x24] sm:$0xf]
        %v530 = vld [vmem:[%s222 + $0x28] sm:$0xf]
        %v531 = vld [vmem:[%s222 + $0x2c] sm:$0xf]
        %v532 = vld [vmem:[%s222 + $0x30] sm:$0xf]
        %v533 = vld [vmem:[%s222 + $0x34] sm:$0xf]
        %v534 = vld [vmem:[%s222 + $0x38] sm:$0xf]
        %v535 = vld [vmem:[%s222 + $0x3c] sm:$0xf]
        %v536 = vld [vmem:[%s222 + $0x40] sm:$0xf]
        %v537 = vld [vmem:[%s222 + $0x44] sm:$0xf]
        %v538 = vld [vmem:[%s222 + $0x48] sm:$0xf]
        %v539 = vld [vmem:[%s222 + $0x4c] sm:$0xf]
        %v540 = vld [vmem:[%s222 + $0x50] sm:$0xf]
        %v541 = vld [vmem:[%s222 + $0x54] sm:$0xf]
        %v542 = vld [vmem:[%s222 + $0x58] sm:$0xf]
        %v543 = vld [vmem:[%s222 + $0x5c] sm:$0xf]
        %v544 = vld [vmem:[%s222 + $0x60] sm:$0xf]
        %v545 = vld [vmem:[%s222 + $0x64] sm:$0xf]
        %v546 = vld [vmem:[%s222 + $0x68] sm:$0xf]
        %v547 = vld [vmem:[%s222 + $0x6c] sm:$0xf]
        %v548 = vld [vmem:[%s222 + $0x70] sm:$0xf]
        %v549 = vld [vmem:[%s222 + $0x74] sm:$0xf]
        %v550 = vld [vmem:[%s222 + $0x78] sm:$0xf]
        %v551 = vld [vmem:[%s222 + $0x7c] sm:$0xf]
        %v552 = vld [vmem:[%s222 + $0x80] sm:$0xf]
        %v553 = vld [vmem:[%s222 + $0x84] sm:$0xf]
        %v554 = vld [vmem:[%s222 + $0x88] sm:$0xf]
        %v555 = vld [vmem:[%s222 + $0x8c] sm:$0xf]
        %v556 = vld [vmem:[%s222 + $0x90] sm:$0xf]
        %v557 = vld [vmem:[%s222 + $0x94] sm:$0xf]
        %v558 = vld [vmem:[%s222 + $0x98] sm:$0xf]
        %v559 = vld [vmem:[%s222 + $0x9c] sm:$0xf]
        %v560 = vld [vmem:[%s222 + $0xa0] sm:$0xf]
        %v561 = vld [vmem:[%s222 + $0xa4] sm:$0xf]
        %v562 = vld [vmem:[%s222 + $0xa8] sm:$0xf]
        %v563 = vld [vmem:[%s222 + $0xac] sm:$0xf]
        %v564 = vld [vmem:[%s222 + $0xb0] sm:$0xf]
        %v565 = vld [vmem:[%s222 + $0xb4] sm:$0xf]
        %v566 = vld [vmem:[%s222 + $0xb8] sm:$0xf]
        %v567 = vld [vmem:[%s222 + $0xbc] sm:$0xf]
        %v568 = vld [vmem:[%s222 + $0xc0] sm:$0xf]
        %v569 = vld [vmem:[%s222 + $0xc4] sm:$0xf]
        %v570 = vld [vmem:[%s222 + $0xc8] sm:$0xf]
        %v571 = vld [vmem:[%s222 + $0xcc] sm:$0xf]
        %v572 = vld [vmem:[%s222 + $0xd0] sm:$0xf]
        %v573 = vld [vmem:[%s222 + $0xd4] sm:$0xf]
        %v574 = vld [vmem:[%s222 + $0xd8] sm:$0xf]
        %v575 = vld [vmem:[%s222 + $0xdc] sm:$0xf]
        %v576 = vld [vmem:[%s222 + $0xe0] sm:$0xf]
        %v577 = vld [vmem:[%s222 + $0xe4] sm:$0xf]
        %v578 = vld [vmem:[%s222 + $0xe8] sm:$0xf]
        %v579 = vld [vmem:[%s222 + $0xec] sm:$0xf]
        %v580 = vld [vmem:[%s222 + $0xf0] sm:$0xf]
        %v581 = vld [vmem:[%s222 + $0xf4] sm:$0xf]
        %v582 = vld [vmem:[%s222 + $0xf8] sm:$0xf]
        %v583 = vld [vmem:[%s222 + $0xfc] sm:$0xf]
        %v584 = vld [vmem:[%s222 + $0x100] sm:$0xf]
        %v585 = vld [vmem:[%s222 + $0x104] sm:$0xf]
        %v586 = vld [vmem:[%s222 + $0x108] sm:$0xf]
        %v587 = vld [vmem:[%s222 + $0x10c] sm:$0xf]
        %v588 = vld [vmem:[%s222 + $0x110] sm:$0xf]
        %v589 = vld [vmem:[%s222 + $0x114] sm:$0xf]
        %v590 = vld [vmem:[%s222 + $0x118] sm:$0xf]
        %v591 = vld [vmem:[%s222 + $0x11c] sm:$0xf]
        %v592 = vld [vmem:[%s222 + $0x120] sm:$0xf]
        %v593 = vld [vmem:[%s222 + $0x124] sm:$0xf]
        %v594 = vld [vmem:[%s222 + $0x128] sm:$0xf]
        %v595 = vld [vmem:[%s222 + $0x12c] sm:$0xf]
        %v596 = vld [vmem:[%s222 + $0x130] sm:$0xf]
        %v597 = vld [vmem:[%s222 + $0x134] sm:$0xf]
        %v598 = vld [vmem:[%s222 + $0x138] sm:$0xf]
        %v599 = vld [vmem:[%s222 + $0x13c] sm:$0xf]
        %v600 = vld [vmem:[%s222 + $0x140] sm:$0xf]
        %v601 = vld [vmem:[%s222 + $0x144] sm:$0xf]
        %v602 = vld [vmem:[%s222 + $0x148] sm:$0xf]
        %v603 = vld [vmem:[%s222 + $0x14c] sm:$0xf]
        %v604 = vld [vmem:[%s222 + $0x150] sm:$0xf]
        %v605 = vld [vmem:[%s222 + $0x154] sm:$0xf]
        %v606 = vld [vmem:[%s222 + $0x158] sm:$0xf]
        %v607 = vld [vmem:[%s222 + $0x15c] sm:$0xf]
        %v608 = vld [vmem:[%s222 + $0x160] sm:$0xf]
        %v609 = vld [vmem:[%s222 + $0x164] sm:$0xf]
        %v610 = vld [vmem:[%s222 + $0x168] sm:$0xf]
        %v611 = vld [vmem:[%s222 + $0x16c] sm:$0xf]
        %v612 = vld [vmem:[%s222 + $0x170] sm:$0xf]
        %v613 = vld [vmem:[%s222 + $0x174] sm:$0xf]
        %v614 = vld [vmem:[%s222 + $0x178] sm:$0xf]
        %v615 = vld [vmem:[%s222 + $0x17c] sm:$0xf]
        %v616 = vld [vmem:[%s222 + $0x180] sm:$0xf]
        %v617 = vld [vmem:[%s222 + $0x184] sm:$0xf]
        %v618 = vld [vmem:[%s222 + $0x188] sm:$0xf]
        %v619 = vld [vmem:[%s222 + $0x18c] sm:$0xf]
        %v620 = vld [vmem:[%s222 + $0x190] sm:$0xf]
        %v621 = vld [vmem:[%s222 + $0x194] sm:$0xf]
        %v622 = vld [vmem:[%s222 + $0x198] sm:$0xf]
        %v623 = vld [vmem:[%s222 + $0x19c] sm:$0xf]
        %v624 = vld [vmem:[%s222 + $0x1a0] sm:$0xf]
        %v625 = vld [vmem:[%s222 + $0x1a4] sm:$0xf]
        %v626 = vld [vmem:[%s222 + $0x1a8] sm:$0xf]
        %v627 = vld [vmem:[%s222 + $0x1ac] sm:$0xf]
        %v628 = vld [vmem:[%s222 + $0x1b0] sm:$0xf]
        %v629 = vld [vmem:[%s222 + $0x1b4] sm:$0xf]
        %v630 = vld [vmem:[%s222 + $0x1b8] sm:$0xf]
        %v631 = vld [vmem:[%s222 + $0x1bc] sm:$0xf]
        %v632 = vld [vmem:[%s222 + $0x1c0] sm:$0xf]
        %v633 = vld [vmem:[%s222 + $0x1c4] sm:$0xf]
        %v634 = vld [vmem:[%s222 + $0x1c8] sm:$0xf]
        %v635 = vld [vmem:[%s222 + $0x1cc] sm:$0xf]
        %v636 = vld [vmem:[%s222 + $0x1d0] sm:$0xf]
        %v637 = vld [vmem:[%s222 + $0x1d4] sm:$0xf]
        %v638 = vld [vmem:[%s222 + $0x1d8] sm:$0xf]
        %v639 = vld [vmem:[%s222 + $0x1dc] sm:$0xf]
        %v640 = vld [vmem:[%s222 + $0x1e0] sm:$0xf]
        %v641 = vld [vmem:[%s222 + $0x1e4] sm:$0xf]
        %v642 = vld [vmem:[%s222 + $0x1e8] sm:$0xf]
        %v643 = vld [vmem:[%s222 + $0x1ec] sm:$0xf]
        %v644 = vld [vmem:[%s222 + $0x1f0] sm:$0xf]
        %v645 = vld [vmem:[%s222 + $0x1f4] sm:$0xf]
        %v646 = vld [vmem:[%s222 + $0x1f8] sm:$0xf]
        %v647 = vld [vmem:[%s222 + $0x1fc] sm:$0xf]
        %v648 = vld [vmem:[#allocation6] sm:$0xf]
        %v649 = vld [vmem:[#allocation6 + $0x4] sm:$0xf]
        %v650 = vld [vmem:[#allocation6 + $0x8] sm:$0xf]
        %v651 = vld [vmem:[#allocation6 + $0xc] sm:$0xf]
        %v652 = vld [vmem:[#allocation6 + $0x10] sm:$0xf]
        %v653 = vld [vmem:[#allocation6 + $0x14] sm:$0xf]
        %v654 = vld [vmem:[#allocation6 + $0x18] sm:$0xf]
        %v655 = vld [vmem:[#allocation6 + $0x1c] sm:$0xf]
        %v656 = vld [vmem:[#allocation6 + $0x20] sm:$0xf]
        %v657 = vld [vmem:[#allocation6 + $0x24] sm:$0xf]
        %v658 = vld [vmem:[#allocation6 + $0x28] sm:$0xf]
        %v659 = vld [vmem:[#allocation6 + $0x2c] sm:$0xf]
        %v660 = vld [vmem:[#allocation6 + $0x30] sm:$0xf]
        %v661 = vld [vmem:[#allocation6 + $0x34] sm:$0xf]
        %v662 = vld [vmem:[#allocation6 + $0x38] sm:$0xf]
        %v663 = vld [vmem:[#allocation6 + $0x3c] sm:$0xf]
        %v792 = vunpack.c.l.b16 %v520
        %v793 = vunpack.c.l.b16 %v521
        %v794 = vunpack.c.l.b16 %v522
        %v795 = vunpack.c.l.b16 %v523
        %v796 = vunpack.c.l.b16 %v524
        %v797 = vunpack.c.l.b16 %v525
        %v798 = vunpack.c.l.b16 %v526
        %v799 = vunpack.c.l.b16 %v527
        %v800 = vunpack.c.l.b16 %v528
        %v801 = vunpack.c.l.b16 %v529
        %v802 = vunpack.c.l.b16 %v530
        %v803 = vunpack.c.l.b16 %v531
        %v804 = vunpack.c.l.b16 %v532
        %v805 = vunpack.c.l.b16 %v533
        %v806 = vunpack.c.l.b16 %v534
        %v807 = vunpack.c.l.b16 %v535
        %v808 = vunpack.c.l.b16 %v536
        %v809 = vunpack.c.l.b16 %v537
        %v810 = vunpack.c.l.b16 %v538
        %v811 = vunpack.c.l.b16 %v539
        %v812 = vunpack.c.l.b16 %v540
        %v813 = vunpack.c.l.b16 %v541
        %v814 = vunpack.c.l.b16 %v542
        %v815 = vunpack.c.l.b16 %v543
        %v816 = vunpack.c.l.b16 %v544
        %v817 = vunpack.c.l.b16 %v545
        %v818 = vunpack.c.l.b16 %v546
        %v819 = vunpack.c.l.b16 %v547
        %v820 = vunpack.c.l.b16 %v548
        %v821 = vunpack.c.l.b16 %v549
        %v822 = vunpack.c.l.b16 %v550
        %v823 = vunpack.c.l.b16 %v551
        %v824 = vunpack.c.l.b16 %v552
        %v825 = vunpack.c.l.b16 %v553
        %v826 = vunpack.c.l.b16 %v554
        %v827 = vunpack.c.l.b16 %v555
        %v828 = vunpack.c.l.b16 %v556
        %v829 = vunpack.c.l.b16 %v557
        %v830 = vunpack.c.l.b16 %v558
        %v831 = vunpack.c.l.b16 %v559
        %v832 = vunpack.c.l.b16 %v560
        %v833 = vunpack.c.l.b16 %v561
        %v834 = vunpack.c.l.b16 %v562
        %v835 = vunpack.c.l.b16 %v563
        %v836 = vunpack.c.l.b16 %v564
        %v837 = vunpack.c.l.b16 %v565
        %v838 = vunpack.c.l.b16 %v566
        %v839 = vunpack.c.l.b16 %v567
        %v840 = vunpack.c.l.b16 %v568
        %v841 = vunpack.c.l.b16 %v569
        %v842 = vunpack.c.l.b16 %v570
        %v843 = vunpack.c.l.b16 %v571
        %v844 = vunpack.c.l.b16 %v572
        %v845 = vunpack.c.l.b16 %v573
        %v846 = vunpack.c.l.b16 %v574
        %v847 = vunpack.c.l.b16 %v575
        %v848 = vunpack.c.l.b16 %v576
        %v849 = vunpack.c.l.b16 %v577
        %v850 = vunpack.c.l.b16 %v578
        %v851 = vunpack.c.l.b16 %v579
        %v852 = vunpack.c.l.b16 %v580
        %v853 = vunpack.c.l.b16 %v581
        %v854 = vunpack.c.l.b16 %v582
        %v855 = vunpack.c.l.b16 %v583
        %v856 = vunpack.c.l.b16 %v584
        %v857 = vunpack.c.l.b16 %v585
        %v858 = vunpack.c.l.b16 %v586
        %v859 = vunpack.c.l.b16 %v587
        %v860 = vunpack.c.l.b16 %v588
        %v861 = vunpack.c.l.b16 %v589
        %v862 = vunpack.c.l.b16 %v590
        %v863 = vunpack.c.l.b16 %v591
        %v864 = vunpack.c.l.b16 %v592
        %v865 = vunpack.c.l.b16 %v593
        %v866 = vunpack.c.l.b16 %v594
        %v867 = vunpack.c.l.b16 %v595
        %v868 = vunpack.c.l.b16 %v596
        %v869 = vunpack.c.l.b16 %v597
        %v870 = vunpack.c.l.b16 %v598
        %v871 = vunpack.c.l.b16 %v599
        %v872 = vunpack.c.l.b16 %v600
        %v873 = vunpack.c.l.b16 %v601
        %v874 = vunpack.c.l.b16 %v602
        %v875 = vunpack.c.l.b16 %v603
        %v876 = vunpack.c.l.b16 %v604
        %v877 = vunpack.c.l.b16 %v605
        %v878 = vunpack.c.l.b16 %v606
        %v879 = vunpack.c.l.b16 %v607
        %v880 = vunpack.c.l.b16 %v608
        %v881 = vunpack.c.l.b16 %v609
        %v882 = vunpack.c.l.b16 %v610
        %v883 = vunpack.c.l.b16 %v611
        %v884 = vunpack.c.l.b16 %v612
        %v885 = vunpack.c.l.b16 %v613
        %v886 = vunpack.c.l.b16 %v614
        %v887 = vunpack.c.l.b16 %v615
        %v888 = vunpack.c.l.b16 %v616
        %v889 = vunpack.c.l.b16 %v617
        %v890 = vunpack.c.l.b16 %v618
        %v891 = vunpack.c.l.b16 %v619
        %v892 = vunpack.c.l.b16 %v620
        %v893 = vunpack.c.l.b16 %v621
        %v894 = vunpack.c.l.b16 %v622
        %v895 = vunpack.c.l.b16 %v623
        %v896 = vunpack.c.l.b16 %v624
        %v897 = vunpack.c.l.b16 %v625
        %v898 = vunpack.c.l.b16 %v626
        %v899 = vunpack.c.l.b16 %v627
        %v900 = vunpack.c.l.b16 %v628
        %v901 = vunpack.c.l.b16 %v629
        %v902 = vunpack.c.l.b16 %v630
        %v903 = vunpack.c.l.b16 %v631
        %v904 = vunpack.c.l.b16 %v632
        %v905 = vunpack.c.l.b16 %v633
        %v906 = vunpack.c.l.b16 %v634
        %v907 = vunpack.c.l.b16 %v635
        %v908 = vunpack.c.l.b16 %v636
        %v909 = vunpack.c.l.b16 %v637
        %v910 = vunpack.c.l.b16 %v638
        %v911 = vunpack.c.l.b16 %v639
        %v912 = vunpack.c.l.b16 %v640
        %v913 = vunpack.c.l.b16 %v641
        %v914 = vunpack.c.l.b16 %v642
        %v915 = vunpack.c.l.b16 %v643
        %v916 = vunpack.c.l.b16 %v644
        %v917 = vunpack.c.l.b16 %v645
        %v918 = vunpack.c.l.b16 %v646
        %v919 = vunpack.c.l.b16 %v647
        %v920 = vpack.c.b16 %v793, %v792
        %v921 = vpack.c.b16 %v795, %v794
        %v922 = vpack.c.b16 %v797, %v796
        %v923 = vpack.c.b16 %v799, %v798
        %v924 = vpack.c.b16 %v801, %v800
        %v925 = vpack.c.b16 %v803, %v802
        %v926 = vpack.c.b16 %v805, %v804
        %v927 = vpack.c.b16 %v807, %v806
        %v928 = vpack.c.b16 %v809, %v808
        %v929 = vpack.c.b16 %v811, %v810
        %v930 = vpack.c.b16 %v813, %v812
        %v931 = vpack.c.b16 %v815, %v814
        %v932 = vpack.c.b16 %v817, %v816
        %v933 = vpack.c.b16 %v819, %v818
        %v934 = vpack.c.b16 %v821, %v820
        %v935 = vpack.c.b16 %v823, %v822
        %v936 = vpack.c.b16 %v825, %v824
        %v937 = vpack.c.b16 %v827, %v826
        %v938 = vpack.c.b16 %v829, %v828
        %v939 = vpack.c.b16 %v831, %v830
        %v940 = vpack.c.b16 %v833, %v832
        %v941 = vpack.c.b16 %v835, %v834
        %v942 = vpack.c.b16 %v837, %v836
        %v943 = vpack.c.b16 %v839, %v838
        %v944 = vpack.c.b16 %v841, %v840
        %v945 = vpack.c.b16 %v843, %v842
        %v946 = vpack.c.b16 %v845, %v844
        %v947 = vpack.c.b16 %v847, %v846
        %v948 = vpack.c.b16 %v849, %v848
        %v949 = vpack.c.b16 %v851, %v850
        %v950 = vpack.c.b16 %v853, %v852
        %v951 = vpack.c.b16 %v855, %v854
        %v952 = vpack.c.b16 %v857, %v856
        %v953 = vpack.c.b16 %v859, %v858
        %v954 = vpack.c.b16 %v861, %v860
        %v955 = vpack.c.b16 %v863, %v862
        %v956 = vpack.c.b16 %v865, %v864
        %v957 = vpack.c.b16 %v867, %v866
        %v958 = vpack.c.b16 %v869, %v868
        %v959 = vpack.c.b16 %v871, %v870
        %v960 = vpack.c.b16 %v873, %v872
        %v961 = vpack.c.b16 %v875, %v874
        %v962 = vpack.c.b16 %v877, %v876
        %v963 = vpack.c.b16 %v879, %v878
        %v964 = vpack.c.b16 %v881, %v880
        %v965 = vpack.c.b16 %v883, %v882
        %v966 = vpack.c.b16 %v885, %v884
        %v967 = vpack.c.b16 %v887, %v886
        %v968 = vpack.c.b16 %v889, %v888
        %v969 = vpack.c.b16 %v891, %v890
        %v970 = vpack.c.b16 %v893, %v892
        %v971 = vpack.c.b16 %v895, %v894
        %v972 = vpack.c.b16 %v897, %v896
        %v973 = vpack.c.b16 %v899, %v898
        %v974 = vpack.c.b16 %v901, %v900
        %v975 = vpack.c.b16 %v903, %v902
        %v976 = vpack.c.b16 %v905, %v904
        %v977 = vpack.c.b16 %v907, %v906
        %v978 = vpack.c.b16 %v909, %v908
        %v979 = vpack.c.b16 %v911, %v910
        %v980 = vpack.c.b16 %v913, %v912
        %v981 = vpack.c.b16 %v915, %v914
        %v982 = vpack.c.b16 %v917, %v916
        %v983 = vpack.c.b16 %v919, %v918
        %v1064 = vunpack.c.l.b16 %v648
        %v1065 = vunpack.c.l.b16 %v649
        %v1066 = vunpack.c.l.b16 %v650
        %v1067 = vunpack.c.l.b16 %v651
        %v1068 = vunpack.c.l.b16 %v652
        %v1069 = vunpack.c.l.b16 %v653
        %v1070 = vunpack.c.l.b16 %v654
        %v1071 = vunpack.c.l.b16 %v655
        %v1072 = vunpack.c.l.b16 %v656
        %v1073 = vunpack.c.l.b16 %v657
        %v1074 = vunpack.c.l.b16 %v658
        %v1075 = vunpack.c.l.b16 %v659
        %v1076 = vunpack.c.l.b16 %v660
        %v1077 = vunpack.c.l.b16 %v661
        %v1078 = vunpack.c.l.b16 %v662
        %v1079 = vunpack.c.l.b16 %v663
        %v1080 = vpack.c.b16 %v1065, %v1064
        %v1081 = vpack.c.b16 %v1067, %v1066
        %v1082 = vpack.c.b16 %v1069, %v1068
        %v1083 = vpack.c.b16 %v1071, %v1070
        %v1084 = vpack.c.b16 %v1073, %v1072
        %v1085 = vpack.c.b16 %v1075, %v1074
        %v1086 = vpack.c.b16 %v1077, %v1076
        %v1087 = vpack.c.b16 %v1079, %v1078
        %1096 = vmatpush.bf16.msra.mxu0 %v1087
        %1097 = vmatpush.bf16.msra.mxu0 %v1086
        %1098 = vmatpush.bf16.msra.mxu0 %v1085
        %1099 = vmatpush.bf16.msra.mxu0 %v1084
        %1100 = vmatpush.bf16.msra.mxu0 %v1083
        %1101 = vmatpush.bf16.msra.mxu0 %v1082
        %1102 = vmatpush.bf16.msra.mxu0 %v1081
        %1103 = vmatpush.bf16.msra.mxu0 %v1080
        %1104 = vmatmul.bf16.gmra.mxu0 %v920
        %v1105 = vpop.f32.mrf.mxu0
        %v1106 = vadd.f32 0.0, %v1105
        %v1107 = vpop.f32.mrf.mxu0
        %v1108 = vadd.f32 0.0, %v1107
        %1109 = vmatmul.bf16.gmra.mxu0 %v921
        %v1110 = vpop.f32.mrf.mxu0
        %v1111 = vadd.f32 0.0, %v1110
        %v1112 = vpop.f32.mrf.mxu0
        %v1113 = vadd.f32 0.0, %v1112
        %1114 = vmatmul.bf16.gmra.mxu0 %v922
        %v1115 = vpop.f32.mrf.mxu0
        %v1116 = vadd.f32 0.0, %v1115
        %v1117 = vpop.f32.mrf.mxu0
        %v1118 = vadd.f32 0.0, %v1117
        %1119 = vmatmul.bf16.gmra.mxu0 %v923
        %v1120 = vpop.f32.mrf.mxu0
        %v1121 = vadd.f32 0.0, %v1120
        %v1122 = vpop.f32.mrf.mxu0
        %v1123 = vadd.f32 0.0, %v1122
        %1124 = vmatmul.bf16.gmra.mxu0 %v924
        %v1125 = vpop.f32.mrf.mxu0
        %v1126 = vadd.f32 0.0, %v1125
        %v1127 = vpop.f32.mrf.mxu0
        %v1128 = vadd.f32 0.0, %v1127
        %1129 = vmatmul.bf16.gmra.mxu0 %v925
        %v1130 = vpop.f32.mrf.mxu0
        %v1131 = vadd.f32 0.0, %v1130
        %v1132 = vpop.f32.mrf.mxu0
        %v1133 = vadd.f32 0.0, %v1132
        %1134 = vmatmul.bf16.gmra.mxu0 %v926
        %v1135 = vpop.f32.mrf.mxu0
        %v1136 = vadd.f32 0.0, %v1135
        %v1137 = vpop.f32.mrf.mxu0
        %v1138 = vadd.f32 0.0, %v1137
        %1139 = vmatmul.bf16.gmra.mxu0 %v927
        %v1140 = vpop.f32.mrf.mxu0
        %v1141 = vadd.f32 0.0, %v1140
        %v1142 = vpop.f32.mrf.mxu0
        %v1143 = vadd.f32 0.0, %v1142
        %1144 = vmatmul.bf16.gmra.mxu0 %v928
        %v1145 = vpop.f32.mrf.mxu0
        %v1146 = vadd.f32 0.0, %v1145
        %v1147 = vpop.f32.mrf.mxu0
        %v1148 = vadd.f32 0.0, %v1147
        %1149 = vmatmul.bf16.gmra.mxu0 %v929
        %v1150 = vpop.f32.mrf.mxu0
        %v1151 = vadd.f32 0.0, %v1150
        %v1152 = vpop.f32.mrf.mxu0
        %v1153 = vadd.f32 0.0, %v1152
        %1154 = vmatmul.bf16.gmra.mxu0 %v930
        %v1155 = vpop.f32.mrf.mxu0
        %v1156 = vadd.f32 0.0, %v1155
        %v1157 = vpop.f32.mrf.mxu0
        %v1158 = vadd.f32 0.0, %v1157
        %1159 = vmatmul.bf16.gmra.mxu0 %v931
        %v1160 = vpop.f32.mrf.mxu0
        %v1161 = vadd.f32 0.0, %v1160
        %v1162 = vpop.f32.mrf.mxu0
        %v1163 = vadd.f32 0.0, %v1162
        %1164 = vmatmul.bf16.gmra.mxu0 %v932
        %v1165 = vpop.f32.mrf.mxu0
        %v1166 = vadd.f32 0.0, %v1165
        %v1167 = vpop.f32.mrf.mxu0
        %v1168 = vadd.f32 0.0, %v1167
        %1169 = vmatmul.bf16.gmra.mxu0 %v933
        %v1170 = vpop.f32.mrf.mxu0
        %v1171 = vadd.f32 0.0, %v1170
        %v1172 = vpop.f32.mrf.mxu0
        %v1173 = vadd.f32 0.0, %v1172
        %1174 = vmatmul.bf16.gmra.mxu0 %v934
        %v1175 = vpop.f32.mrf.mxu0
        %v1176 = vadd.f32 0.0, %v1175
        %v1177 = vpop.f32.mrf.mxu0
        %v1178 = vadd.f32 0.0, %v1177
        %1179 = vmatmul.bf16.gmra.mxu0 %v935
        %v1180 = vpop.f32.mrf.mxu0
        %v1181 = vadd.f32 0.0, %v1180
        %v1182 = vpop.f32.mrf.mxu0
        %v1183 = vadd.f32 0.0, %v1182
        %1184 = vmatmul.bf16.gmra.mxu0 %v936
        %v1185 = vpop.f32.mrf.mxu0
        %v1186 = vadd.f32 0.0, %v1185
        %v1187 = vpop.f32.mrf.mxu0
        %v1188 = vadd.f32 0.0, %v1187
        %1189 = vmatmul.bf16.gmra.mxu0 %v937
        %v1190 = vpop.f32.mrf.mxu0
        %v1191 = vadd.f32 0.0, %v1190
        %v1192 = vpop.f32.mrf.mxu0
        %v1193 = vadd.f32 0.0, %v1192
        %1194 = vmatmul.bf16.gmra.mxu0 %v938
        %v1195 = vpop.f32.mrf.mxu0
        %v1196 = vadd.f32 0.0, %v1195
        %v1197 = vpop.f32.mrf.mxu0
        %v1198 = vadd.f32 0.0, %v1197
        %1199 = vmatmul.bf16.gmra.mxu0 %v939
        %v1200 = vpop.f32.mrf.mxu0
        %v1201 = vadd.f32 0.0, %v1200
        %v1202 = vpop.f32.mrf.mxu0
        %v1203 = vadd.f32 0.0, %v1202
        %1204 = vmatmul.bf16.gmra.mxu0 %v940
        %v1205 = vpop.f32.mrf.mxu0
        %v1206 = vadd.f32 0.0, %v1205
        %v1207 = vpop.f32.mrf.mxu0
        %v1208 = vadd.f32 0.0, %v1207
        %1209 = vmatmul.bf16.gmra.mxu0 %v941
        %v1210 = vpop.f32.mrf.mxu0
        %v1211 = vadd.f32 0.0, %v1210
        %v1212 = vpop.f32.mrf.mxu0
        %v1213 = vadd.f32 0.0, %v1212
        %1214 = vmatmul.bf16.gmra.mxu0 %v942
        %v1215 = vpop.f32.mrf.mxu0
        %v1216 = vadd.f32 0.0, %v1215
        %v1217 = vpop.f32.mrf.mxu0
        %v1218 = vadd.f32 0.0, %v1217
        %1219 = vmatmul.bf16.gmra.mxu0 %v943
        %v1220 = vpop.f32.mrf.mxu0
        %v1221 = vadd.f32 0.0, %v1220
        %v1222 = vpop.f32.mrf.mxu0
        %v1223 = vadd.f32 0.0, %v1222
        %1224 = vmatmul.bf16.gmra.mxu0 %v944
        %v1225 = vpop.f32.mrf.mxu0
        %v1226 = vadd.f32 0.0, %v1225
        %v1227 = vpop.f32.mrf.mxu0
        %v1228 = vadd.f32 0.0, %v1227
        %1229 = vmatmul.bf16.gmra.mxu0 %v945
        %v1230 = vpop.f32.mrf.mxu0
        %v1231 = vadd.f32 0.0, %v1230
        %v1232 = vpop.f32.mrf.mxu0
        %v1233 = vadd.f32 0.0, %v1232
        %1234 = vmatmul.bf16.gmra.mxu0 %v946
        %v1235 = vpop.f32.mrf.mxu0
        %v1236 = vadd.f32 0.0, %v1235
        %v1237 = vpop.f32.mrf.mxu0
        %v1238 = vadd.f32 0.0, %v1237
        %1239 = vmatmul.bf16.gmra.mxu0 %v947
        %v1240 = vpop.f32.mrf.mxu0
        %v1241 = vadd.f32 0.0, %v1240
        %v1242 = vpop.f32.mrf.mxu0
        %v1243 = vadd.f32 0.0, %v1242
        %1244 = vmatmul.bf16.gmra.mxu0 %v948
        %v1245 = vpop.f32.mrf.mxu0
        %v1246 = vadd.f32 0.0, %v1245
        %v1247 = vpop.f32.mrf.mxu0
        %v1248 = vadd.f32 0.0, %v1247
        %1249 = vmatmul.bf16.gmra.mxu0 %v949
        %v1250 = vpop.f32.mrf.mxu0
        %v1251 = vadd.f32 0.0, %v1250
        %v1252 = vpop.f32.mrf.mxu0
        %v1253 = vadd.f32 0.0, %v1252
        %1254 = vmatmul.bf16.gmra.mxu0 %v950
        %v1255 = vpop.f32.mrf.mxu0
        %v1256 = vadd.f32 0.0, %v1255
        %v1257 = vpop.f32.mrf.mxu0
        %v1258 = vadd.f32 0.0, %v1257
        %1259 = vmatmul.bf16.gmra.mxu0 %v951
        %v1260 = vpop.f32.mrf.mxu0
        %v1261 = vadd.f32 0.0, %v1260
        %v1262 = vpop.f32.mrf.mxu0
        %v1263 = vadd.f32 0.0, %v1262
        %1264 = vmatmul.bf16.gmra.mxu0 %v952
        %v1265 = vpop.f32.mrf.mxu0
        %v1266 = vadd.f32 0.0, %v1265
        %v1267 = vpop.f32.mrf.mxu0
        %v1268 = vadd.f32 0.0, %v1267
        %1269 = vmatmul.bf16.gmra.mxu0 %v953
        %v1270 = vpop.f32.mrf.mxu0
        %v1271 = vadd.f32 0.0, %v1270
        %v1272 = vpop.f32.mrf.mxu0
        %v1273 = vadd.f32 0.0, %v1272
        %1274 = vmatmul.bf16.gmra.mxu0 %v954
        %v1275 = vpop.f32.mrf.mxu0
        %v1276 = vadd.f32 0.0, %v1275
        %v1277 = vpop.f32.mrf.mxu0
        %v1278 = vadd.f32 0.0, %v1277
        %1279 = vmatmul.bf16.gmra.mxu0 %v955
        %v1280 = vpop.f32.mrf.mxu0
        %v1281 = vadd.f32 0.0, %v1280
        %v1282 = vpop.f32.mrf.mxu0
        %v1283 = vadd.f32 0.0, %v1282
        %1284 = vmatmul.bf16.gmra.mxu0 %v956
        %v1285 = vpop.f32.mrf.mxu0
        %v1286 = vadd.f32 0.0, %v1285
        %v1287 = vpop.f32.mrf.mxu0
        %v1288 = vadd.f32 0.0, %v1287
        %1289 = vmatmul.bf16.gmra.mxu0 %v957
        %v1290 = vpop.f32.mrf.mxu0
        %v1291 = vadd.f32 0.0, %v1290
        %v1292 = vpop.f32.mrf.mxu0
        %v1293 = vadd.f32 0.0, %v1292
        %1294 = vmatmul.bf16.gmra.mxu0 %v958
        %v1295 = vpop.f32.mrf.mxu0
        %v1296 = vadd.f32 0.0, %v1295
        %v1297 = vpop.f32.mrf.mxu0
        %v1298 = vadd.f32 0.0, %v1297
        %1299 = vmatmul.bf16.gmra.mxu0 %v959
        %v1300 = vpop.f32.mrf.mxu0
        %v1301 = vadd.f32 0.0, %v1300
        %v1302 = vpop.f32.mrf.mxu0
        %v1303 = vadd.f32 0.0, %v1302
        %1304 = vmatmul.bf16.gmra.mxu0 %v960
        %v1305 = vpop.f32.mrf.mxu0
        %v1306 = vadd.f32 0.0, %v1305
        %v1307 = vpop.f32.mrf.mxu0
        %v1308 = vadd.f32 0.0, %v1307
        %1309 = vmatmul.bf16.gmra.mxu0 %v961
        %v1310 = vpop.f32.mrf.mxu0
        %v1311 = vadd.f32 0.0, %v1310
        %v1312 = vpop.f32.mrf.mxu0
        %v1313 = vadd.f32 0.0, %v1312
        %1314 = vmatmul.bf16.gmra.mxu0 %v962
        %v1315 = vpop.f32.mrf.mxu0
        %v1316 = vadd.f32 0.0, %v1315
        %v1317 = vpop.f32.mrf.mxu0
        %v1318 = vadd.f32 0.0, %v1317
        %1319 = vmatmul.bf16.gmra.mxu0 %v963
        %v1320 = vpop.f32.mrf.mxu0
        %v1321 = vadd.f32 0.0, %v1320
        %v1322 = vpop.f32.mrf.mxu0
        %v1323 = vadd.f32 0.0, %v1322
        %1324 = vmatmul.bf16.gmra.mxu0 %v964
        %v1325 = vpop.f32.mrf.mxu0
        %v1326 = vadd.f32 0.0, %v1325
        %v1327 = vpop.f32.mrf.mxu0
        %v1328 = vadd.f32 0.0, %v1327
        %1329 = vmatmul.bf16.gmra.mxu0 %v965
        %v1330 = vpop.f32.mrf.mxu0
        %v1331 = vadd.f32 0.0, %v1330
        %v1332 = vpop.f32.mrf.mxu0
        %v1333 = vadd.f32 0.0, %v1332
        %1334 = vmatmul.bf16.gmra.mxu0 %v966
        %v1335 = vpop.f32.mrf.mxu0
        %v1336 = vadd.f32 0.0, %v1335
        %v1337 = vpop.f32.mrf.mxu0
        %v1338 = vadd.f32 0.0, %v1337
        %1339 = vmatmul.bf16.gmra.mxu0 %v967
        %v1340 = vpop.f32.mrf.mxu0
        %v1341 = vadd.f32 0.0, %v1340
        %v1342 = vpop.f32.mrf.mxu0
        %v1343 = vadd.f32 0.0, %v1342
        %1344 = vmatmul.bf16.gmra.mxu0 %v968
        %v1345 = vpop.f32.mrf.mxu0
        %v1346 = vadd.f32 0.0, %v1345
        %v1347 = vpop.f32.mrf.mxu0
        %v1348 = vadd.f32 0.0, %v1347
        %1349 = vmatmul.bf16.gmra.mxu0 %v969
        %v1350 = vpop.f32.mrf.mxu0
        %v1351 = vadd.f32 0.0, %v1350
        %v1352 = vpop.f32.mrf.mxu0
        %v1353 = vadd.f32 0.0, %v1352
        %1354 = vmatmul.bf16.gmra.mxu0 %v970
        %v1355 = vpop.f32.mrf.mxu0
        %v1356 = vadd.f32 0.0, %v1355
        %v1357 = vpop.f32.mrf.mxu0
        %v1358 = vadd.f32 0.0, %v1357
        %1359 = vmatmul.bf16.gmra.mxu0 %v971
        %v1360 = vpop.f32.mrf.mxu0
        %v1361 = vadd.f32 0.0, %v1360
        %v1362 = vpop.f32.mrf.mxu0
        %v1363 = vadd.f32 0.0, %v1362
        %1364 = vmatmul.bf16.gmra.mxu0 %v972
        %v1365 = vpop.f32.mrf.mxu0
        %v1366 = vadd.f32 0.0, %v1365
        %v1367 = vpop.f32.mrf.mxu0
        %v1368 = vadd.f32 0.0, %v1367
        %1369 = vmatmul.bf16.gmra.mxu0 %v973
        %v1370 = vpop.f32.mrf.mxu0
        %v1371 = vadd.f32 0.0, %v1370
        %v1372 = vpop.f32.mrf.mxu0
        %v1373 = vadd.f32 0.0, %v1372
        %1374 = vmatmul.bf16.gmra.mxu0 %v974
        %v1375 = vpop.f32.mrf.mxu0
        %v1376 = vadd.f32 0.0, %v1375
        %v1377 = vpop.f32.mrf.mxu0
        %v1378 = vadd.f32 0.0, %v1377
        %1379 = vmatmul.bf16.gmra.mxu0 %v975
        %v1380 = vpop.f32.mrf.mxu0
        %v1381 = vadd.f32 0.0, %v1380
        %v1382 = vpop.f32.mrf.mxu0
        %v1383 = vadd.f32 0.0, %v1382
        %1384 = vmatmul.bf16.gmra.mxu0 %v976
        %v1385 = vpop.f32.mrf.mxu0
        %v1386 = vadd.f32 0.0, %v1385
        %v1387 = vpop.f32.mrf.mxu0
        %v1388 = vadd.f32 0.0, %v1387
        %1389 = vmatmul.bf16.gmra.mxu0 %v977
        %v1390 = vpop.f32.mrf.mxu0
        %v1391 = vadd.f32 0.0, %v1390
        %v1392 = vpop.f32.mrf.mxu0
        %v1393 = vadd.f32 0.0, %v1392
        %1394 = vmatmul.bf16.gmra.mxu0 %v978
        %v1395 = vpop.f32.mrf.mxu0
        %v1396 = vadd.f32 0.0, %v1395
        %v1397 = vpop.f32.mrf.mxu0
        %v1398 = vadd.f32 0.0, %v1397
        %1399 = vmatmul.bf16.gmra.mxu0 %v979
        %v1400 = vpop.f32.mrf.mxu0
        %v1401 = vadd.f32 0.0, %v1400
        %v1402 = vpop.f32.mrf.mxu0
        %v1403 = vadd.f32 0.0, %v1402
        %1404 = vmatmul.bf16.gmra.mxu0 %v980
        %v1405 = vpop.f32.mrf.mxu0
        %v1406 = vadd.f32 0.0, %v1405
        %v1407 = vpop.f32.mrf.mxu0
        %v1408 = vadd.f32 0.0, %v1407
        %1409 = vmatmul.bf16.gmra.mxu0 %v981
        %v1410 = vpop.f32.mrf.mxu0
        %v1411 = vadd.f32 0.0, %v1410
        %v1412 = vpop.f32.mrf.mxu0
        %v1413 = vadd.f32 0.0, %v1412
        %1414 = vmatmul.bf16.gmra.mxu0 %v982
        %v1415 = vpop.f32.mrf.mxu0
        %v1416 = vadd.f32 0.0, %v1415
        %v1417 = vpop.f32.mrf.mxu0
        %v1418 = vadd.f32 0.0, %v1417
        %1419 = vmatmul.bf16.gmra.mxu0 %v983
        %v1420 = vpop.f32.mrf.mxu0
        %v1421 = vadd.f32 0.0, %v1420
        %v1422 = vpop.f32.mrf.mxu0
        %v1423 = vadd.f32 0.0, %v1422
        %1424 = vdwg.mxu0
        %v1425 = vadd.f32 %v392, %v1106
        %v1426 = vadd.f32 %v393, %v1108
        %v1427 = vadd.f32 %v394, %v1111
        %v1428 = vadd.f32 %v395, %v1113
        %v1429 = vadd.f32 %v396, %v1116
        %v1430 = vadd.f32 %v397, %v1118
        %v1431 = vadd.f32 %v398, %v1121
        %v1432 = vadd.f32 %v399, %v1123
        %v1433 = vadd.f32 %v400, %v1126
        %v1434 = vadd.f32 %v401, %v1128
        %v1435 = vadd.f32 %v402, %v1131
        %v1436 = vadd.f32 %v403, %v1133
        %v1437 = vadd.f32 %v404, %v1136
        %v1438 = vadd.f32 %v405, %v1138
        %v1439 = vadd.f32 %v406, %v1141
        %v1440 = vadd.f32 %v407, %v1143
        %v1441 = vadd.f32 %v408, %v1146
        %v1442 = vadd.f32 %v409, %v1148
        %v1443 = vadd.f32 %v410, %v1151
        %v1444 = vadd.f32 %v411, %v1153
        %v1445 = vadd.f32 %v412, %v1156
        %v1446 = vadd.f32 %v413, %v1158
        %v1447 = vadd.f32 %v414, %v1161
        %v1448 = vadd.f32 %v415, %v1163
        %v1449 = vadd.f32 %v416, %v1166
        %v1450 = vadd.f32 %v417, %v1168
        %v1451 = vadd.f32 %v418, %v1171
        %v1452 = vadd.f32 %v419, %v1173
        %v1453 = vadd.f32 %v420, %v1176
        %v1454 = vadd.f32 %v421, %v1178
        %v1455 = vadd.f32 %v422, %v1181
        %v1456 = vadd.f32 %v423, %v1183
        %v1457 = vadd.f32 %v424, %v1186
        %v1458 = vadd.f32 %v425, %v1188
        %v1459 = vadd.f32 %v426, %v1191
        %v1460 = vadd.f32 %v427, %v1193
        %v1461 = vadd.f32 %v428, %v1196
        %v1462 = vadd.f32 %v429, %v1198
        %v1463 = vadd.f32 %v430, %v1201
        %v1464 = vadd.f32 %v431, %v1203
        %v1465 = vadd.f32 %v432, %v1206
        %v1466 = vadd.f32 %v433, %v1208
        %v1467 = vadd.f32 %v434, %v1211
        %v1468 = vadd.f32 %v435, %v1213
        %v1469 = vadd.f32 %v436, %v1216
        %v1470 = vadd.f32 %v437, %v1218
        %v1471 = vadd.f32 %v438, %v1221
        %v1472 = vadd.f32 %v439, %v1223
        %v1473 = vadd.f32 %v440, %v1226
        %v1474 = vadd.f32 %v441, %v1228
        %v1475 = vadd.f32 %v442, %v1231
        %v1476 = vadd.f32 %v443, %v1233
        %v1477 = vadd.f32 %v444, %v1236
        %v1478 = vadd.f32 %v445, %v1238
        %v1479 = vadd.f32 %v446, %v1241
        %v1480 = vadd.f32 %v447, %v1243
        %v1481 = vadd.f32 %v448, %v1246
        %v1482 = vadd.f32 %v449, %v1248
        %v1483 = vadd.f32 %v450, %v1251
        %v1484 = vadd.f32 %v451, %v1253
        %v1485 = vadd.f32 %v452, %v1256
        %v1486 = vadd.f32 %v453, %v1258
        %v1487 = vadd.f32 %v454, %v1261
        %v1488 = vadd.f32 %v455, %v1263
        %v1489 = vadd.f32 %v456, %v1266
        %v1490 = vadd.f32 %v457, %v1268
        %v1491 = vadd.f32 %v458, %v1271
        %v1492 = vadd.f32 %v459, %v1273
        %v1493 = vadd.f32 %v460, %v1276
        %v1494 = vadd.f32 %v461, %v1278
        %v1495 = vadd.f32 %v462, %v1281
        %v1496 = vadd.f32 %v463, %v1283
        %v1497 = vadd.f32 %v464, %v1286
        %v1498 = vadd.f32 %v465, %v1288
        %v1499 = vadd.f32 %v466, %v1291
        %v1500 = vadd.f32 %v467, %v1293
        %v1501 = vadd.f32 %v468, %v1296
        %v1502 = vadd.f32 %v469, %v1298
        %v1503 = vadd.f32 %v470, %v1301
        %v1504 = vadd.f32 %v471, %v1303
        %v1505 = vadd.f32 %v472, %v1306
        %v1506 = vadd.f32 %v473, %v1308
        %v1507 = vadd.f32 %v474, %v1311
        %v1508 = vadd.f32 %v475, %v1313
        %v1509 = vadd.f32 %v476, %v1316
        %v1510 = vadd.f32 %v477, %v1318
        %v1511 = vadd.f32 %v478, %v1321
        %v1512 = vadd.f32 %v479, %v1323
        %v1513 = vadd.f32 %v480, %v1326
        %v1514 = vadd.f32 %v481, %v1328
        %v1515 = vadd.f32 %v482, %v1331
        %v1516 = vadd.f32 %v483, %v1333
        %v1517 = vadd.f32 %v484, %v1336
        %v1518 = vadd.f32 %v485, %v1338
        %v1519 = vadd.f32 %v486, %v1341
        %v1520 = vadd.f32 %v487, %v1343
        %v1521 = vadd.f32 %v488, %v1346
        %v1522 = vadd.f32 %v489, %v1348
        %v1523 = vadd.f32 %v490, %v1351
        %v1524 = vadd.f32 %v491, %v1353
        %v1525 = vadd.f32 %v492, %v1356
        %v1526 = vadd.f32 %v493, %v1358
        %v1527 = vadd.f32 %v494, %v1361
        %v1528 = vadd.f32 %v495, %v1363
        %v1529 = vadd.f32 %v496, %v1366
        %v1530 = vadd.f32 %v497, %v1368
        %v1531 = vadd.f32 %v498, %v1371
        %v1532 = vadd.f32 %v499, %v1373
        %v1533 = vadd.f32 %v500, %v1376
        %v1534 = vadd.f32 %v501, %v1378
        %v1535 = vadd.f32 %v502, %v1381
        %v1536 = vadd.f32 %v503, %v1383
        %v1537 = vadd.f32 %v504, %v1386
        %v1538 = vadd.f32 %v505, %v1388
        %v1539 = vadd.f32 %v506, %v1391
        %v1540 = vadd.f32 %v507, %v1393
        %v1541 = vadd.f32 %v508, %v1396
        %v1542 = vadd.f32 %v509, %v1398
        %v1543 = vadd.f32 %v510, %v1401
        %v1544 = vadd.f32 %v511, %v1403
        %v1545 = vadd.f32 %v512, %v1406
        %v1546 = vadd.f32 %v513, %v1408
        %v1547 = vadd.f32 %v514, %v1411
        %v1548 = vadd.f32 %v515, %v1413
        %v1549 = vadd.f32 %v516, %v1416
        %v1550 = vadd.f32 %v517, %v1418
        %v1551 = vadd.f32 %v518, %v1421
        %v1552 = vadd.f32 %v519, %v1423
        %1553 = vst [vmem:[#allocation2] sm:$0xff] %v1425
        %1554 = vst [vmem:[#allocation2 + $0x8] sm:$0xff] %v1426
        %1555 = vst [vmem:[#allocation2 + $0x10] sm:$0xff] %v1427
        %1556 = vst [vmem:[#allocation2 + $0x18] sm:$0xff] %v1428
        %1557 = vst [vmem:[#allocation2 + $0x20] sm:$0xff] %v1429
        %1558 = vst [vmem:[#allocation2 + $0x28] sm:$0xff] %v1430
        %1559 = vst [vmem:[#allocation2 + $0x30] sm:$0xff] %v1431
        %1560 = vst [vmem:[#allocation2 + $0x38] sm:$0xff] %v1432
        %1561 = vst [vmem:[#allocation2 + $0x40] sm:$0xff] %v1433
        %1562 = vst [vmem:[#allocation2 + $0x48] sm:$0xff] %v1434
        %1563 = vst [vmem:[#allocation2 + $0x50] sm:$0xff] %v1435
        %1564 = vst [vmem:[#allocation2 + $0x58] sm:$0xff] %v1436
        %1565 = vst [vmem:[#allocation2 + $0x60] sm:$0xff] %v1437
        %1566 = vst [vmem:[#allocation2 + $0x68] sm:$0xff] %v1438
        %1567 = vst [vmem:[#allocation2 + $0x70] sm:$0xff] %v1439
        %1568 = vst [vmem:[#allocation2 + $0x78] sm:$0xff] %v1440
        %1569 = vst [vmem:[#allocation2 + $0x80] sm:$0xff] %v1441
        %1570 = vst [vmem:[#allocation2 + $0x88] sm:$0xff] %v1442
        %1571 = vst [vmem:[#allocation2 + $0x90] sm:$0xff] %v1443
        %1572 = vst [vmem:[#allocation2 + $0x98] sm:$0xff] %v1444
        %1573 = vst [vmem:[#allocation2 + $0xa0] sm:$0xff] %v1445
        %1574 = vst [vmem:[#allocation2 + $0xa8] sm:$0xff] %v1446
        %1575 = vst [vmem:[#allocation2 + $0xb0] sm:$0xff] %v1447
        %1576 = vst [vmem:[#allocation2 + $0xb8] sm:$0xff] %v1448
        %1577 = vst [vmem:[#allocation2 + $0xc0] sm:$0xff] %v1449
        %1578 = vst [vmem:[#allocation2 + $0xc8] sm:$0xff] %v1450
        %1579 = vst [vmem:[#allocation2 + $0xd0] sm:$0xff] %v1451
        %1580 = vst [vmem:[#allocation2 + $0xd8] sm:$0xff] %v1452
        %1581 = vst [vmem:[#allocation2 + $0xe0] sm:$0xff] %v1453
        %1582 = vst [vmem:[#allocation2 + $0xe8] sm:$0xff] %v1454
        %1583 = vst [vmem:[#allocation2 + $0xf0] sm:$0xff] %v1455
        %1584 = vst [vmem:[#allocation2 + $0xf8] sm:$0xff] %v1456
        %1585 = vst [vmem:[#allocation2 + $0x100] sm:$0xff] %v1457
        %1586 = vst [vmem:[#allocation2 + $0x108] sm:$0xff] %v1458
        %1587 = vst [vmem:[#allocation2 + $0x110] sm:$0xff] %v1459
        %1588 = vst [vmem:[#allocation2 + $0x118] sm:$0xff] %v1460
        %1589 = vst [vmem:[#allocation2 + $0x120] sm:$0xff] %v1461
        %1590 = vst [vmem:[#allocation2 + $0x128] sm:$0xff] %v1462
        %1591 = vst [vmem:[#allocation2 + $0x130] sm:$0xff] %v1463
        %1592 = vst [vmem:[#allocation2 + $0x138] sm:$0xff] %v1464
        %1593 = vst [vmem:[#allocation2 + $0x140] sm:$0xff] %v1465
        %1594 = vst [vmem:[#allocation2 + $0x148] sm:$0xff] %v1466
        %1595 = vst [vmem:[#allocation2 + $0x150] sm:$0xff] %v1467
        %1596 = vst [vmem:[#allocation2 + $0x158] sm:$0xff] %v1468
        %1597 = vst [vmem:[#allocation2 + $0x160] sm:$0xff] %v1469
        %1598 = vst [vmem:[#allocation2 + $0x168] sm:$0xff] %v1470
        %1599 = vst [vmem:[#allocation2 + $0x170] sm:$0xff] %v1471
        %1600 = vst [vmem:[#allocation2 + $0x178] sm:$0xff] %v1472
        %1601 = vst [vmem:[#allocation2 + $0x180] sm:$0xff] %v1473
        %1602 = vst [vmem:[#allocation2 + $0x188] sm:$0xff] %v1474
        %1603 = vst [vmem:[#allocation2 + $0x190] sm:$0xff] %v1475
        %1604 = vst [vmem:[#allocation2 + $0x198] sm:$0xff] %v1476
        %1605 = vst [vmem:[#allocation2 + $0x1a0] sm:$0xff] %v1477
        %1606 = vst [vmem:[#allocation2 + $0x1a8] sm:$0xff] %v1478
        %1607 = vst [vmem:[#allocation2 + $0x1b0] sm:$0xff] %v1479
        %1608 = vst [vmem:[#allocation2 + $0x1b8] sm:$0xff] %v1480
        %1609 = vst [vmem:[#allocation2 + $0x1c0] sm:$0xff] %v1481
        %1610 = vst [vmem:[#allocation2 + $0x1c8] sm:$0xff] %v1482
        %1611 = vst [vmem:[#allocation2 + $0x1d0] sm:$0xff] %v1483
        %1612 = vst [vmem:[#allocation2 + $0x1d8] sm:$0xff] %v1484
        %1613 = vst [vmem:[#allocation2 + $0x1e0] sm:$0xff] %v1485
        %1614 = vst [vmem:[#allocation2 + $0x1e8] sm:$0xff] %v1486
        %1615 = vst [vmem:[#allocation2 + $0x1f0] sm:$0xff] %v1487
        %1616 = vst [vmem:[#allocation2 + $0x1f8] sm:$0xff] %v1488
        %1617 = vst [vmem:[#allocation2 + $0x200] sm:$0xff] %v1489
        %1618 = vst [vmem:[#allocation2 + $0x208] sm:$0xff] %v1490
        %1619 = vst [vmem:[#allocation2 + $0x210] sm:$0xff] %v1491
        %1620 = vst [vmem:[#allocation2 + $0x218] sm:$0xff] %v1492
        %1621 = vst [vmem:[#allocation2 + $0x220] sm:$0xff] %v1493
        %1622 = vst [vmem:[#allocation2 + $0x228] sm:$0xff] %v1494
        %1623 = vst [vmem:[#allocation2 + $0x230] sm:$0xff] %v1495
        %1624 = vst [vmem:[#allocation2 + $0x238] sm:$0xff] %v1496
        %1625 = vst [vmem:[#allocation2 + $0x240] sm:$0xff] %v1497
        %1626 = vst [vmem:[#allocation2 + $0x248] sm:$0xff] %v1498
        %1627 = vst [vmem:[#allocation2 + $0x250] sm:$0xff] %v1499
        %1628 = vst [vmem:[#allocation2 + $0x258] sm:$0xff] %v1500
        %1629 = vst [vmem:[#allocation2 + $0x260] sm:$0xff] %v1501
        %1630 = vst [vmem:[#allocation2 + $0x268] sm:$0xff] %v1502
        %1631 = vst [vmem:[#allocation2 + $0x270] sm:$0xff] %v1503
        %1632 = vst [vmem:[#allocation2 + $0x278] sm:$0xff] %v1504
        %1633 = vst [vmem:[#allocation2 + $0x280] sm:$0xff] %v1505
        %1634 = vst [vmem:[#allocation2 + $0x288] sm:$0xff] %v1506
        %1635 = vst [vmem:[#allocation2 + $0x290] sm:$0xff] %v1507
        %1636 = vst [vmem:[#allocation2 + $0x298] sm:$0xff] %v1508
        %1637 = vst [vmem:[#allocation2 + $0x2a0] sm:$0xff] %v1509
        %1638 = vst [vmem:[#allocation2 + $0x2a8] sm:$0xff] %v1510
        %1639 = vst [vmem:[#allocation2 + $0x2b0] sm:$0xff] %v1511
        %1640 = vst [vmem:[#allocation2 + $0x2b8] sm:$0xff] %v1512
        %1641 = vst [vmem:[#allocation2 + $0x2c0] sm:$0xff] %v1513
        %1642 = vst [vmem:[#allocation2 + $0x2c8] sm:$0xff] %v1514
        %1643 = vst [vmem:[#allocation2 + $0x2d0] sm:$0xff] %v1515
        %1644 = vst [vmem:[#allocation2 + $0x2d8] sm:$0xff] %v1516
        %1645 = vst [vmem:[#allocation2 + $0x2e0] sm:$0xff] %v1517
        %1646 = vst [vmem:[#allocation2 + $0x2e8] sm:$0xff] %v1518
        %1647 = vst [vmem:[#allocation2 + $0x2f0] sm:$0xff] %v1519
        %1648 = vst [vmem:[#allocation2 + $0x2f8] sm:$0xff] %v1520
        %1649 = vst [vmem:[#allocation2 + $0x300] sm:$0xff] %v1521
        %1650 = vst [vmem:[#allocation2 + $0x308] sm:$0xff] %v1522
        %1651 = vst [vmem:[#allocation2 + $0x310] sm:$0xff] %v1523
        %1652 = vst [vmem:[#allocation2 + $0x318] sm:$0xff] %v1524
        %1653 = vst [vmem:[#allocation2 + $0x320] sm:$0xff] %v1525
        %1654 = vst [vmem:[#allocation2 + $0x328] sm:$0xff] %v1526
        %1655 = vst [vmem:[#allocation2 + $0x330] sm:$0xff] %v1527
        %1656 = vst [vmem:[#allocation2 + $0x338] sm:$0xff] %v1528
        %1657 = vst [vmem:[#allocation2 + $0x340] sm:$0xff] %v1529
        %1658 = vst [vmem:[#allocation2 + $0x348] sm:$0xff] %v1530
        %1659 = vst [vmem:[#allocation2 + $0x350] sm:$0xff] %v1531
        %1660 = vst [vmem:[#allocation2 + $0x358] sm:$0xff] %v1532
        %1661 = vst [vmem:[#allocation2 + $0x360] sm:$0xff] %v1533
        %1662 = vst [vmem:[#allocation2 + $0x368] sm:$0xff] %v1534
        %1663 = vst [vmem:[#allocation2 + $0x370] sm:$0xff] %v1535
        %1664 = vst [vmem:[#allocation2 + $0x378] sm:$0xff] %v1536
        %1665 = vst [vmem:[#allocation2 + $0x380] sm:$0xff] %v1537
        %1666 = vst [vmem:[#allocation2 + $0x388] sm:$0xff] %v1538
        %1667 = vst [vmem:[#allocation2 + $0x390] sm:$0xff] %v1539
        %1668 = vst [vmem:[#allocation2 + $0x398] sm:$0xff] %v1540
        %1669 = vst [vmem:[#allocation2 + $0x3a0] sm:$0xff] %v1541
        %1670 = vst [vmem:[#allocation2 + $0x3a8] sm:$0xff] %v1542
        %1671 = vst [vmem:[#allocation2 + $0x3b0] sm:$0xff] %v1543
        %1672 = vst [vmem:[#allocation2 + $0x3b8] sm:$0xff] %v1544
        %1673 = vst [vmem:[#allocation2 + $0x3c0] sm:$0xff] %v1545
        %1674 = vst [vmem:[#allocation2 + $0x3c8] sm:$0xff] %v1546
        %1675 = vst [vmem:[#allocation2 + $0x3d0] sm:$0xff] %v1547
        %1676 = vst [vmem:[#allocation2 + $0x3d8] sm:$0xff] %v1548
        %1677 = vst [vmem:[#allocation2 + $0x3e0] sm:$0xff] %v1549
        %1678 = vst [vmem:[#allocation2 + $0x3e8] sm:$0xff] %v1550
        %1679 = vst [vmem:[#allocation2 + $0x3f0] sm:$0xff] %v1551
        %1680 = vst [vmem:[#allocation2 + $0x3f8] sm:$0xff] %v1552
        // Predicated region
        $region45: #{tpu_custom_call.1} parent=31 // pred_check
          %p1681 = pneg %p260
        $region46: #{tpu_custom_call.1} parent=31 // pred_check_branch
          %1683 = sbr.rel (%p1681) target = $region48
        $region47: #{tpu_custom_call.1} parent=31 // pred_region
          %v1684 = vld [vmem:[#allocation2] sm:$0xff]
          %v1685 = vld [vmem:[#allocation2 + $0x8] sm:$0xff]
          %v1686 = vld [vmem:[#allocation2 + $0x10] sm:$0xff]
          %v1687 = vld [vmem:[#allocation2 + $0x18] sm:$0xff]
          %v1688 = vld [vmem:[#allocation2 + $0x20] sm:$0xff]
          %v1689 = vld [vmem:[#allocation2 + $0x28] sm:$0xff]
          %v1690 = vld [vmem:[#allocation2 + $0x30] sm:$0xff]
          %v1691 = vld [vmem:[#allocation2 + $0x38] sm:$0xff]
          %v1692 = vld [vmem:[#allocation2 + $0x40] sm:$0xff]
          %v1693 = vld [vmem:[#allocation2 + $0x48] sm:$0xff]
          %v1694 = vld [vmem:[#allocation2 + $0x50] sm:$0xff]
          %v1695 = vld [vmem:[#allocation2 + $0x58] sm:$0xff]
          %v1696 = vld [vmem:[#allocation2 + $0x60] sm:$0xff]
          %v1697 = vld [vmem:[#allocation2 + $0x68] sm:$0xff]
          %v1698 = vld [vmem:[#allocation2 + $0x70] sm:$0xff]
          %v1699 = vld [vmem:[#allocation2 + $0x78] sm:$0xff]
          %v1700 = vld [vmem:[#allocation2 + $0x80] sm:$0xff]
          %v1701 = vld [vmem:[#allocation2 + $0x88] sm:$0xff]
          %v1702 = vld [vmem:[#allocation2 + $0x90] sm:$0xff]
          %v1703 = vld [vmem:[#allocation2 + $0x98] sm:$0xff]
          %v1704 = vld [vmem:[#allocation2 + $0xa0] sm:$0xff]
          %v1705 = vld [vmem:[#allocation2 + $0xa8] sm:$0xff]
          %v1706 = vld [vmem:[#allocation2 + $0xb0] sm:$0xff]
          %v1707 = vld [vmem:[#allocation2 + $0xb8] sm:$0xff]
          %v1708 = vld [vmem:[#allocation2 + $0xc0] sm:$0xff]
          %v1709 = vld [vmem:[#allocation2 + $0xc8] sm:$0xff]
          %v1710 = vld [vmem:[#allocation2 + $0xd0] sm:$0xff]
          %v1711 = vld [vmem:[#allocation2 + $0xd8] sm:$0xff]
          %v1712 = vld [vmem:[#allocation2 + $0xe0] sm:$0xff]
          %v1713 = vld [vmem:[#allocation2 + $0xe8] sm:$0xff]
          %v1714 = vld [vmem:[#allocation2 + $0xf0] sm:$0xff]
          %v1715 = vld [vmem:[#allocation2 + $0xf8] sm:$0xff]
          %v1716 = vld [vmem:[#allocation2 + $0x100] sm:$0xff]
          %v1717 = vld [vmem:[#allocation2 + $0x108] sm:$0xff]
          %v1718 = vld [vmem:[#allocation2 + $0x110] sm:$0xff]
          %v1719 = vld [vmem:[#allocation2 + $0x118] sm:$0xff]
          %v1720 = vld [vmem:[#allocation2 + $0x120] sm:$0xff]
          %v1721 = vld [vmem:[#allocation2 + $0x128] sm:$0xff]
          %v1722 = vld [vmem:[#allocation2 + $0x130] sm:$0xff]
          %v1723 = vld [vmem:[#allocation2 + $0x138] sm:$0xff]
          %v1724 = vld [vmem:[#allocation2 + $0x140] sm:$0xff]
          %v1725 = vld [vmem:[#allocation2 + $0x148] sm:$0xff]
          %v1726 = vld [vmem:[#allocation2 + $0x150] sm:$0xff]
          %v1727 = vld [vmem:[#allocation2 + $0x158] sm:$0xff]
          %v1728 = vld [vmem:[#allocation2 + $0x160] sm:$0xff]
          %v1729 = vld [vmem:[#allocation2 + $0x168] sm:$0xff]
          %v1730 = vld [vmem:[#allocation2 + $0x170] sm:$0xff]
          %v1731 = vld [vmem:[#allocation2 + $0x178] sm:$0xff]
          %v1732 = vld [vmem:[#allocation2 + $0x180] sm:$0xff]
          %v1733 = vld [vmem:[#allocation2 + $0x188] sm:$0xff]
          %v1734 = vld [vmem:[#allocation2 + $0x190] sm:$0xff]
          %v1735 = vld [vmem:[#allocation2 + $0x198] sm:$0xff]
          %v1736 = vld [vmem:[#allocation2 + $0x1a0] sm:$0xff]
          %v1737 = vld [vmem:[#allocation2 + $0x1a8] sm:$0xff]
          %v1738 = vld [vmem:[#allocation2 + $0x1b0] sm:$0xff]
          %v1739 = vld [vmem:[#allocation2 + $0x1b8] sm:$0xff]
          %v1740 = vld [vmem:[#allocation2 + $0x1c0] sm:$0xff]
          %v1741 = vld [vmem:[#allocation2 + $0x1c8] sm:$0xff]
          %v1742 = vld [vmem:[#allocation2 + $0x1d0] sm:$0xff]
          %v1743 = vld [vmem:[#allocation2 + $0x1d8] sm:$0xff]
          %v1744 = vld [vmem:[#allocation2 + $0x1e0] sm:$0xff]
          %v1745 = vld [vmem:[#allocation2 + $0x1e8] sm:$0xff]
          %v1746 = vld [vmem:[#allocation2 + $0x1f0] sm:$0xff]
          %v1747 = vld [vmem:[#allocation2 + $0x1f8] sm:$0xff]
          %v1748 = vld [vmem:[#allocation2 + $0x200] sm:$0xff]
          %v1749 = vld [vmem:[#allocation2 + $0x208] sm:$0xff]
          %v1750 = vld [vmem:[#allocation2 + $0x210] sm:$0xff]
          %v1751 = vld [vmem:[#allocation2 + $0x218] sm:$0xff]
          %v1752 = vld [vmem:[#allocation2 + $0x220] sm:$0xff]
          %v1753 = vld [vmem:[#allocation2 + $0x228] sm:$0xff]
          %v1754 = vld [vmem:[#allocation2 + $0x230] sm:$0xff]
          %v1755 = vld [vmem:[#allocation2 + $0x238] sm:$0xff]
          %v1756 = vld [vmem:[#allocation2 + $0x240] sm:$0xff]
          %v1757 = vld [vmem:[#allocation2 + $0x248] sm:$0xff]
          %v1758 = vld [vmem:[#allocation2 + $0x250] sm:$0xff]
          %v1759 = vld [vmem:[#allocation2 + $0x258] sm:$0xff]
          %v1760 = vld [vmem:[#allocation2 + $0x260] sm:$0xff]
          %v1761 = vld [vmem:[#allocation2 + $0x268] sm:$0xff]
          %v1762 = vld [vmem:[#allocation2 + $0x270] sm:$0xff]
          %v1763 = vld [vmem:[#allocation2 + $0x278] sm:$0xff]
          %v1764 = vld [vmem:[#allocation2 + $0x280] sm:$0xff]
          %v1765 = vld [vmem:[#allocation2 + $0x288] sm:$0xff]
          %v1766 = vld [vmem:[#allocation2 + $0x290] sm:$0xff]
          %v1767 = vld [vmem:[#allocation2 + $0x298] sm:$0xff]
          %v1768 = vld [vmem:[#allocation2 + $0x2a0] sm:$0xff]
          %v1769 = vld [vmem:[#allocation2 + $0x2a8] sm:$0xff]
          %v1770 = vld [vmem:[#allocation2 + $0x2b0] sm:$0xff]
          %v1771 = vld [vmem:[#allocation2 + $0x2b8] sm:$0xff]
          %v1772 = vld [vmem:[#allocation2 + $0x2c0] sm:$0xff]
          %v1773 = vld [vmem:[#allocation2 + $0x2c8] sm:$0xff]
          %v1774 = vld [vmem:[#allocation2 + $0x2d0] sm:$0xff]
          %v1775 = vld [vmem:[#allocation2 + $0x2d8] sm:$0xff]
          %v1776 = vld [vmem:[#allocation2 + $0x2e0] sm:$0xff]
          %v1777 = vld [vmem:[#allocation2 + $0x2e8] sm:$0xff]
          %v1778 = vld [vmem:[#allocation2 + $0x2f0] sm:$0xff]
          %v1779 = vld [vmem:[#allocation2 + $0x2f8] sm:$0xff]
          %v1780 = vld [vmem:[#allocation2 + $0x300] sm:$0xff]
          %v1781 = vld [vmem:[#allocation2 + $0x308] sm:$0xff]
          %v1782 = vld [vmem:[#allocation2 + $0x310] sm:$0xff]
          %v1783 = vld [vmem:[#allocation2 + $0x318] sm:$0xff]
          %v1784 = vld [vmem:[#allocation2 + $0x320] sm:$0xff]
          %v1785 = vld [vmem:[#allocation2 + $0x328] sm:$0xff]
          %v1786 = vld [vmem:[#allocation2 + $0x330] sm:$0xff]
          %v1787 = vld [vmem:[#allocation2 + $0x338] sm:$0xff]
          %v1788 = vld [vmem:[#allocation2 + $0x340] sm:$0xff]
          %v1789 = vld [vmem:[#allocation2 + $0x348] sm:$0xff]
          %v1790 = vld [vmem:[#allocation2 + $0x350] sm:$0xff]
          %v1791 = vld [vmem:[#allocation2 + $0x358] sm:$0xff]
          %v1792 = vld [vmem:[#allocation2 + $0x360] sm:$0xff]
          %v1793 = vld [vmem:[#allocation2 + $0x368] sm:$0xff]
          %v1794 = vld [vmem:[#allocation2 + $0x370] sm:$0xff]
          %v1795 = vld [vmem:[#allocation2 + $0x378] sm:$0xff]
          %v1796 = vld [vmem:[#allocation2 + $0x380] sm:$0xff]
          %v1797 = vld [vmem:[#allocation2 + $0x388] sm:$0xff]
          %v1798 = vld [vmem:[#allocation2 + $0x390] sm:$0xff]
          %v1799 = vld [vmem:[#allocation2 + $0x398] sm:$0xff]
          %v1800 = vld [vmem:[#allocation2 + $0x3a0] sm:$0xff]
          %v1801 = vld [vmem:[#allocation2 + $0x3a8] sm:$0xff]
          %v1802 = vld [vmem:[#allocation2 + $0x3b0] sm:$0xff]
          %v1803 = vld [vmem:[#allocation2 + $0x3b8] sm:$0xff]
          %v1804 = vld [vmem:[#allocation2 + $0x3c0] sm:$0xff]
          %v1805 = vld [vmem:[#allocation2 + $0x3c8] sm:$0xff]
          %v1806 = vld [vmem:[#allocation2 + $0x3d0] sm:$0xff]
          %v1807 = vld [vmem:[#allocation2 + $0x3d8] sm:$0xff]
          %v1808 = vld [vmem:[#allocation2 + $0x3e0] sm:$0xff]
          %v1809 = vld [vmem:[#allocation2 + $0x3e8] sm:$0xff]
          %v1810 = vld [vmem:[#allocation2 + $0x3f0] sm:$0xff]
          %v1811 = vld [vmem:[#allocation2 + $0x3f8] sm:$0xff]
          %v1812 = vld [vmem:[%s258] sm:$0x1]
          %v1814 = vperm.slane %v1812, 0
          %v1816 = vadd.f32 %v1684, %v1814
          %v1817 = vadd.f32 %v1685, %v1814
          %v1818 = vadd.f32 %v1686, %v1814
          %v1819 = vadd.f32 %v1687, %v1814
          %v1820 = vadd.f32 %v1688, %v1814
          %v1821 = vadd.f32 %v1689, %v1814
          %v1822 = vadd.f32 %v1690, %v1814
          %v1823 = vadd.f32 %v1691, %v1814
          %v1824 = vadd.f32 %v1692, %v1814
          %v1825 = vadd.f32 %v1693, %v1814
          %v1826 = vadd.f32 %v1694, %v1814
          %v1827 = vadd.f32 %v1695, %v1814
          %v1828 = vadd.f32 %v1696, %v1814
          %v1829 = vadd.f32 %v1697, %v1814
          %v1830 = vadd.f32 %v1698, %v1814
          %v1831 = vadd.f32 %v1699, %v1814
          %v1832 = vadd.f32 %v1700, %v1814
          %v1833 = vadd.f32 %v1701, %v1814
          %v1834 = vadd.f32 %v1702, %v1814
          %v1835 = vadd.f32 %v1703, %v1814
          %v1836 = vadd.f32 %v1704, %v1814
          %v1837 = vadd.f32 %v1705, %v1814
          %v1838 = vadd.f32 %v1706, %v1814
          %v1839 = vadd.f32 %v1707, %v1814
          %v1840 = vadd.f32 %v1708, %v1814
          %v1841 = vadd.f32 %v1709, %v1814
          %v1842 = vadd.f32 %v1710, %v1814
          %v1843 = vadd.f32 %v1711, %v1814
          %v1844 = vadd.f32 %v1712, %v1814
          %v1845 = vadd.f32 %v1713, %v1814
          %v1846 = vadd.f32 %v1714, %v1814
          %v1847 = vadd.f32 %v1715, %v1814
          %v1848 = vadd.f32 %v1716, %v1814
          %v1849 = vadd.f32 %v1717, %v1814
          %v1850 = vadd.f32 %v1718, %v1814
          %v1851 = vadd.f32 %v1719, %v1814
          %v1852 = vadd.f32 %v1720, %v1814
          %v1853 = vadd.f32 %v1721, %v1814
          %v1854 = vadd.f32 %v1722, %v1814
          %v1855 = vadd.f32 %v1723, %v1814
          %v1856 = vadd.f32 %v1724, %v1814
          %v1857 = vadd.f32 %v1725, %v1814
          %v1858 = vadd.f32 %v1726, %v1814
          %v1859 = vadd.f32 %v1727, %v1814
          %v1860 = vadd.f32 %v1728, %v1814
          %v1861 = vadd.f32 %v1729, %v1814
          %v1862 = vadd.f32 %v1730, %v1814
          %v1863 = vadd.f32 %v1731, %v1814
          %v1864 = vadd.f32 %v1732, %v1814
          %v1865 = vadd.f32 %v1733, %v1814
          %v1866 = vadd.f32 %v1734, %v1814
          %v1867 = vadd.f32 %v1735, %v1814
          %v1868 = vadd.f32 %v1736, %v1814
          %v1869 = vadd.f32 %v1737, %v1814
          %v1870 = vadd.f32 %v1738, %v1814
          %v1871 = vadd.f32 %v1739, %v1814
          %v1872 = vadd.f32 %v1740, %v1814
          %v1873 = vadd.f32 %v1741, %v1814
          %v1874 = vadd.f32 %v1742, %v1814
          %v1875 = vadd.f32 %v1743, %v1814
          %v1876 = vadd.f32 %v1744, %v1814
          %v1877 = vadd.f32 %v1745, %v1814
          %v1878 = vadd.f32 %v1746, %v1814
          %v1879 = vadd.f32 %v1747, %v1814
          %v1880 = vadd.f32 %v1748, %v1814
          %v1881 = vadd.f32 %v1749, %v1814
          %v1882 = vadd.f32 %v1750, %v1814
          %v1883 = vadd.f32 %v1751, %v1814
          %v1884 = vadd.f32 %v1752, %v1814
          %v1885 = vadd.f32 %v1753, %v1814
          %v1886 = vadd.f32 %v1754, %v1814
          %v1887 = vadd.f32 %v1755, %v1814
          %v1888 = vadd.f32 %v1756, %v1814
          %v1889 = vadd.f32 %v1757, %v1814
          %v1890 = vadd.f32 %v1758, %v1814
          %v1891 = vadd.f32 %v1759, %v1814
          %v1892 = vadd.f32 %v1760, %v1814
          %v1893 = vadd.f32 %v1761, %v1814
          %v1894 = vadd.f32 %v1762, %v1814
          %v1895 = vadd.f32 %v1763, %v1814
          %v1896 = vadd.f32 %v1764, %v1814
          %v1897 = vadd.f32 %v1765, %v1814
          %v1898 = vadd.f32 %v1766, %v1814
          %v1899 = vadd.f32 %v1767, %v1814
          %v1900 = vadd.f32 %v1768, %v1814
          %v1901 = vadd.f32 %v1769, %v1814
          %v1902 = vadd.f32 %v1770, %v1814
          %v1903 = vadd.f32 %v1771, %v1814
          %v1904 = vadd.f32 %v1772, %v1814
          %v1905 = vadd.f32 %v1773, %v1814
          %v1906 = vadd.f32 %v1774, %v1814
          %v1907 = vadd.f32 %v1775, %v1814
          %v1908 = vadd.f32 %v1776, %v1814
          %v1909 = vadd.f32 %v1777, %v1814
          %v1910 = vadd.f32 %v1778, %v1814
          %v1911 = vadd.f32 %v1779, %v1814
          %v1912 = vadd.f32 %v1780, %v1814
          %v1913 = vadd.f32 %v1781, %v1814
          %v1914 = vadd.f32 %v1782, %v1814
          %v1915 = vadd.f32 %v1783, %v1814
          %v1916 = vadd.f32 %v1784, %v1814
          %v1917 = vadd.f32 %v1785, %v1814
          %v1918 = vadd.f32 %v1786, %v1814
          %v1919 = vadd.f32 %v1787, %v1814
          %v1920 = vadd.f32 %v1788, %v1814
          %v1921 = vadd.f32 %v1789, %v1814
          %v1922 = vadd.f32 %v1790, %v1814
          %v1923 = vadd.f32 %v1791, %v1814
          %v1924 = vadd.f32 %v1792, %v1814
          %v1925 = vadd.f32 %v1793, %v1814
          %v1926 = vadd.f32 %v1794, %v1814
          %v1927 = vadd.f32 %v1795, %v1814
          %v1928 = vadd.f32 %v1796, %v1814
          %v1929 = vadd.f32 %v1797, %v1814
          %v1930 = vadd.f32 %v1798, %v1814
          %v1931 = vadd.f32 %v1799, %v1814
          %v1932 = vadd.f32 %v1800, %v1814
          %v1933 = vadd.f32 %v1801, %v1814
          %v1934 = vadd.f32 %v1802, %v1814
          %v1935 = vadd.f32 %v1803, %v1814
          %v1936 = vadd.f32 %v1804, %v1814
          %v1937 = vadd.f32 %v1805, %v1814
          %v1938 = vadd.f32 %v1806, %v1814
          %v1939 = vadd.f32 %v1807, %v1814
          %v1940 = vadd.f32 %v1808, %v1814
          %v1941 = vadd.f32 %v1809, %v1814
          %v1942 = vadd.f32 %v1810, %v1814
          %v1943 = vadd.f32 %v1811, %v1814
          %v1944 = vsub.f32 0.0, %v1816
          %v1945 = vsub.f32 0.0, %v1817
          %v1946 = vsub.f32 0.0, %v1818
          %v1947 = vsub.f32 0.0, %v1819
          %v1948 = vsub.f32 0.0, %v1820
          %v1949 = vsub.f32 0.0, %v1821
          %v1950 = vsub.f32 0.0, %v1822
          %v1951 = vsub.f32 0.0, %v1823
          %v1952 = vsub.f32 0.0, %v1824
          %v1953 = vsub.f32 0.0, %v1825
          %v1954 = vsub.f32 0.0, %v1826
          %v1955 = vsub.f32 0.0, %v1827
          %v1956 = vsub.f32 0.0, %v1828
          %v1957 = vsub.f32 0.0, %v1829
          %v1958 = vsub.f32 0.0, %v1830
          %v1959 = vsub.f32 0.0, %v1831
          %v1960 = vsub.f32 0.0, %v1832
          %v1961 = vsub.f32 0.0, %v1833
          %v1962 = vsub.f32 0.0, %v1834
          %v1963 = vsub.f32 0.0, %v1835
          %v1964 = vsub.f32 0.0, %v1836
          %v1965 = vsub.f32 0.0, %v1837
          %v1966 = vsub.f32 0.0, %v1838
          %v1967 = vsub.f32 0.0, %v1839
          %v1968 = vsub.f32 0.0, %v1840
          %v1969 = vsub.f32 0.0, %v1841
          %v1970 = vsub.f32 0.0, %v1842
          %v1971 = vsub.f32 0.0, %v1843
          %v1972 = vsub.f32 0.0, %v1844
          %v1973 = vsub.f32 0.0, %v1845
          %v1974 = vsub.f32 0.0, %v1846
          %v1975 = vsub.f32 0.0, %v1847
          %v1976 = vsub.f32 0.0, %v1848
          %v1977 = vsub.f32 0.0, %v1849
          %v1978 = vsub.f32 0.0, %v1850
          %v1979 = vsub.f32 0.0, %v1851
          %v1980 = vsub.f32 0.0, %v1852
          %v1981 = vsub.f32 0.0, %v1853
          %v1982 = vsub.f32 0.0, %v1854
          %v1983 = vsub.f32 0.0, %v1855
          %v1984 = vsub.f32 0.0, %v1856
          %v1985 = vsub.f32 0.0, %v1857
          %v1986 = vsub.f32 0.0, %v1858
          %v1987 = vsub.f32 0.0, %v1859
          %v1988 = vsub.f32 0.0, %v1860
          %v1989 = vsub.f32 0.0, %v1861
          %v1990 = vsub.f32 0.0, %v1862
          %v1991 = vsub.f32 0.0, %v1863
          %v1992 = vsub.f32 0.0, %v1864
          %v1993 = vsub.f32 0.0, %v1865
          %v1994 = vsub.f32 0.0, %v1866
          %v1995 = vsub.f32 0.0, %v1867
          %v1996 = vsub.f32 0.0, %v1868
          %v1997 = vsub.f32 0.0, %v1869
          %v1998 = vsub.f32 0.0, %v1870
          %v1999 = vsub.f32 0.0, %v1871
          %v2000 = vsub.f32 0.0, %v1872
          %v2001 = vsub.f32 0.0, %v1873
          %v2002 = vsub.f32 0.0, %v1874
          %v2003 = vsub.f32 0.0, %v1875
          %v2004 = vsub.f32 0.0, %v1876
          %v2005 = vsub.f32 0.0, %v1877
          %v2006 = vsub.f32 0.0, %v1878
          %v2007 = vsub.f32 0.0, %v1879
          %v2008 = vsub.f32 0.0, %v1880
          %v2009 = vsub.f32 0.0, %v1881
          %v2010 = vsub.f32 0.0, %v1882
          %v2011 = vsub.f32 0.0, %v1883
          %v2012 = vsub.f32 0.0, %v1884
          %v2013 = vsub.f32 0.0, %v1885
          %v2014 = vsub.f32 0.0, %v1886
          %v2015 = vsub.f32 0.0, %v1887
          %v2016 = vsub.f32 0.0, %v1888
          %v2017 = vsub.f32 0.0, %v1889
          %v2018 = vsub.f32 0.0, %v1890
          %v2019 = vsub.f32 0.0, %v1891
          %v2020 = vsub.f32 0.0, %v1892
          %v2021 = vsub.f32 0.0, %v1893
          %v2022 = vsub.f32 0.0, %v1894
          %v2023 = vsub.f32 0.0, %v1895
          %v2024 = vsub.f32 0.0, %v1896
          %v2025 = vsub.f32 0.0, %v1897
          %v2026 = vsub.f32 0.0, %v1898
          %v2027 = vsub.f32 0.0, %v1899
          %v2028 = vsub.f32 0.0, %v1900
          %v2029 = vsub.f32 0.0, %v1901
          %v2030 = vsub.f32 0.0, %v1902
          %v2031 = vsub.f32 0.0, %v1903
          %v2032 = vsub.f32 0.0, %v1904
          %v2033 = vsub.f32 0.0, %v1905
          %v2034 = vsub.f32 0.0, %v1906
          %v2035 = vsub.f32 0.0, %v1907
          %v2036 = vsub.f32 0.0, %v1908
          %v2037 = vsub.f32 0.0, %v1909
          %v2038 = vsub.f32 0.0, %v1910
          %v2039 = vsub.f32 0.0, %v1911
          %v2040 = vsub.f32 0.0, %v1912
          %v2041 = vsub.f32 0.0, %v1913
          %v2042 = vsub.f32 0.0, %v1914
          %v2043 = vsub.f32 0.0, %v1915
          %v2044 = vsub.f32 0.0, %v1916
          %v2045 = vsub.f32 0.0, %v1917
          %v2046 = vsub.f32 0.0, %v1918
          %v2047 = vsub.f32 0.0, %v1919
          %v2048 = vsub.f32 0.0, %v1920
          %v2049 = vsub.f32 0.0, %v1921
          %v2050 = vsub.f32 0.0, %v1922
          %v2051 = vsub.f32 0.0, %v1923
          %v2052 = vsub.f32 0.0, %v1924
          %v2053 = vsub.f32 0.0, %v1925
          %v2054 = vsub.f32 0.0, %v1926
          %v2055 = vsub.f32 0.0, %v1927
          %v2056 = vsub.f32 0.0, %v1928
          %v2057 = vsub.f32 0.0, %v1929
          %v2058 = vsub.f32 0.0, %v1930
          %v2059 = vsub.f32 0.0, %v1931
          %v2060 = vsub.f32 0.0, %v1932
          %v2061 = vsub.f32 0.0, %v1933
          %v2062 = vsub.f32 0.0, %v1934
          %v2063 = vsub.f32 0.0, %v1935
          %v2064 = vsub.f32 0.0, %v1936
          %v2065 = vsub.f32 0.0, %v1937
          %v2066 = vsub.f32 0.0, %v1938
          %v2067 = vsub.f32 0.0, %v1939
          %v2068 = vsub.f32 0.0, %v1940
          %v2069 = vsub.f32 0.0, %v1941
          %v2070 = vsub.f32 0.0, %v1942
          %v2071 = vsub.f32 0.0, %v1943
          %v2072 = vmul.f32 %v1944, 1.442695
          %v2073 = vpow.pop %v2072
          %v2074 = vmul.f32 %v1945, 1.442695
          %v2075 = vpow.pop %v2074
          %v2076 = vmul.f32 %v1946, 1.442695
          %v2077 = vpow.pop %v2076
          %v2078 = vmul.f32 %v1947, 1.442695
          %v2079 = vpow.pop %v2078
          %v2080 = vmul.f32 %v1948, 1.442695
          %v2081 = vpow.pop %v2080
          %v2082 = vmul.f32 %v1949, 1.442695
          %v2083 = vpow.pop %v2082
          %v2084 = vmul.f32 %v1950, 1.442695
          %v2085 = vpow.pop %v2084
          %v2086 = vmul.f32 %v1951, 1.442695
          %v2087 = vpow.pop %v2086
          %v2088 = vmul.f32 %v1952, 1.442695
          %v2089 = vpow.pop %v2088
          %v2090 = vmul.f32 %v1953, 1.442695
          %v2091 = vpow.pop %v2090
          %v2092 = vmul.f32 %v1954, 1.442695
          %v2093 = vpow.pop %v2092
          %v2094 = vmul.f32 %v1955, 1.442695
          %v2095 = vpow.pop %v2094
          %v2096 = vmul.f32 %v1956, 1.442695
          %v2097 = vpow.pop %v2096
          %v2098 = vmul.f32 %v1957, 1.442695
          %v2099 = vpow.pop %v2098
          %v2100 = vmul.f32 %v1958, 1.442695
          %v2101 = vpow.pop %v2100
          %v2102 = vmul.f32 %v1959, 1.442695
          %v2103 = vpow.pop %v2102
          %v2104 = vmul.f32 %v1960, 1.442695
          %v2105 = vpow.pop %v2104
          %v2106 = vmul.f32 %v1961, 1.442695
          %v2107 = vpow.pop %v2106
          %v2108 = vmul.f32 %v1962, 1.442695
          %v2109 = vpow.pop %v2108
          %v2110 = vmul.f32 %v1963, 1.442695
          %v2111 = vpow.pop %v2110
          %v2112 = vmul.f32 %v1964, 1.442695
          %v2113 = vpow.pop %v2112
          %v2114 = vmul.f32 %v1965, 1.442695
          %v2115 = vpow.pop %v2114
          %v2116 = vmul.f32 %v1966, 1.442695
          %v2117 = vpow.pop %v2116
          %v2118 = vmul.f32 %v1967, 1.442695
          %v2119 = vpow.pop %v2118
          %v2120 = vmul.f32 %v1968, 1.442695
          %v2121 = vpow.pop %v2120
          %v2122 = vmul.f32 %v1969, 1.442695
          %v2123 = vpow.pop %v2122
          %v2124 = vmul.f32 %v1970, 1.442695
          %v2125 = vpow.pop %v2124
          %v2126 = vmul.f32 %v1971, 1.442695
          %v2127 = vpow.pop %v2126
          %v2128 = vmul.f32 %v1972, 1.442695
          %v2129 = vpow.pop %v2128
          %v2130 = vmul.f32 %v1973, 1.442695
          %v2131 = vpow.pop %v2130
          %v2132 = vmul.f32 %v1974, 1.442695
          %v2133 = vpow.pop %v2132
          %v2134 = vmul.f32 %v1975, 1.442695
          %v2135 = vpow.pop %v2134
          %v2136 = vmul.f32 %v1976, 1.442695
          %v2137 = vpow.pop %v2136
          %v2138 = vmul.f32 %v1977, 1.442695
          %v2139 = vpow.pop %v2138
          %v2140 = vmul.f32 %v1978, 1.442695
          %v2141 = vpow.pop %v2140
          %v2142 = vmul.f32 %v1979, 1.442695
          %v2143 = vpow.pop %v2142
          %v2144 = vmul.f32 %v1980, 1.442695
          %v2145 = vpow.pop %v2144
          %v2146 = vmul.f32 %v1981, 1.442695
          %v2147 = vpow.pop %v2146
          %v2148 = vmul.f32 %v1982, 1.442695
          %v2149 = vpow.pop %v2148
          %v2150 = vmul.f32 %v1983, 1.442695
          %v2151 = vpow.pop %v2150
          %v2152 = vmul.f32 %v1984, 1.442695
          %v2153 = vpow.pop %v2152
          %v2154 = vmul.f32 %v1985, 1.442695
          %v2155 = vpow.pop %v2154
          %v2156 = vmul.f32 %v1986, 1.442695
          %v2157 = vpow.pop %v2156
          %v2158 = vmul.f32 %v1987, 1.442695
          %v2159 = vpow.pop %v2158
          %v2160 = vmul.f32 %v1988, 1.442695
          %v2161 = vpow.pop %v2160
          %v2162 = vmul.f32 %v1989, 1.442695
          %v2163 = vpow.pop %v2162
          %v2164 = vmul.f32 %v1990, 1.442695
          %v2165 = vpow.pop %v2164
          %v2166 = vmul.f32 %v1991, 1.442695
          %v2167 = vpow.pop %v2166
          %v2168 = vmul.f32 %v1992, 1.442695
          %v2169 = vpow.pop %v2168
          %v2170 = vmul.f32 %v1993, 1.442695
          %v2171 = vpow.pop %v2170
          %v2172 = vmul.f32 %v1994, 1.442695
          %v2173 = vpow.pop %v2172
          %v2174 = vmul.f32 %v1995, 1.442695
          %v2175 = vpow.pop %v2174
          %v2176 = vmul.f32 %v1996, 1.442695
          %v2177 = vpow.pop %v2176
          %v2178 = vmul.f32 %v1997, 1.442695
          %v2179 = vpow.pop %v2178
          %v2180 = vmul.f32 %v1998, 1.442695
          %v2181 = vpow.pop %v2180
          %v2182 = vmul.f32 %v1999, 1.442695
          %v2183 = vpow.pop %v2182
          %v2184 = vmul.f32 %v2000, 1.442695
          %v2185 = vpow.pop %v2184
          %v2186 = vmul.f32 %v2001, 1.442695
          %v2187 = vpow.pop %v2186
          %v2188 = vmul.f32 %v2002, 1.442695
          %v2189 = vpow.pop %v2188
          %v2190 = vmul.f32 %v2003, 1.442695
          %v2191 = vpow.pop %v2190
          %v2192 = vmul.f32 %v2004, 1.442695
          %v2193 = vpow.pop %v2192
          %v2194 = vmul.f32 %v2005, 1.442695
          %v2195 = vpow.pop %v2194
          %v2196 = vmul.f32 %v2006, 1.442695
          %v2197 = vpow.pop %v2196
          %v2198 = vmul.f32 %v2007, 1.442695
          %v2199 = vpow.pop %v2198
          %v2200 = vmul.f32 %v2008, 1.442695
          %v2201 = vpow.pop %v2200
          %v2202 = vmul.f32 %v2009, 1.442695
          %v2203 = vpow.pop %v2202
          %v2204 = vmul.f32 %v2010, 1.442695
          %v2205 = vpow.pop %v2204
          %v2206 = vmul.f32 %v2011, 1.442695
          %v2207 = vpow.pop %v2206
          %v2208 = vmul.f32 %v2012, 1.442695
          %v2209 = vpow.pop %v2208
          %v2210 = vmul.f32 %v2013, 1.442695
          %v2211 = vpow.pop %v2210
          %v2212 = vmul.f32 %v2014, 1.442695
          %v2213 = vpow.pop %v2212
          %v2214 = vmul.f32 %v2015, 1.442695
          %v2215 = vpow.pop %v2214
          %v2216 = vmul.f32 %v2016, 1.442695
          %v2217 = vpow.pop %v2216
          %v2218 = vmul.f32 %v2017, 1.442695
          %v2219 = vpow.pop %v2218
          %v2220 = vmul.f32 %v2018, 1.442695
          %v2221 = vpow.pop %v2220
          %v2222 = vmul.f32 %v2019, 1.442695
          %v2223 = vpow.pop %v2222
          %v2224 = vmul.f32 %v2020, 1.442695
          %v2225 = vpow.pop %v2224
          %v2226 = vmul.f32 %v2021, 1.442695
          %v2227 = vpow.pop %v2226
          %v2228 = vmul.f32 %v2022, 1.442695
          %v2229 = vpow.pop %v2228
          %v2230 = vmul.f32 %v2023, 1.442695
          %v2231 = vpow.pop %v2230
          %v2232 = vmul.f32 %v2024, 1.442695
          %v2233 = vpow.pop %v2232
          %v2234 = vmul.f32 %v2025, 1.442695
          %v2235 = vpow.pop %v2234
          %v2236 = vmul.f32 %v2026, 1.442695
          %v2237 = vpow.pop %v2236
          %v2238 = vmul.f32 %v2027, 1.442695
          %v2239 = vpow.pop %v2238
          %v2240 = vmul.f32 %v2028, 1.442695
          %v2241 = vpow.pop %v2240
          %v2242 = vmul.f32 %v2029, 1.442695
          %v2243 = vpow.pop %v2242
          %v2244 = vmul.f32 %v2030, 1.442695
          %v2245 = vpow.pop %v2244
          %v2246 = vmul.f32 %v2031, 1.442695
          %v2247 = vpow.pop %v2246
          %v2248 = vmul.f32 %v2032, 1.442695
          %v2249 = vpow.pop %v2248
          %v2250 = vmul.f32 %v2033, 1.442695
          %v2251 = vpow.pop %v2250
          %v2252 = vmul.f32 %v2034, 1.442695
          %v2253 = vpow.pop %v2252
          %v2254 = vmul.f32 %v2035, 1.442695
          %v2255 = vpow.pop %v2254
          %v2256 = vmul.f32 %v2036, 1.442695
          %v2257 = vpow.pop %v2256
          %v2258 = vmul.f32 %v2037, 1.442695
          %v2259 = vpow.pop %v2258
          %v2260 = vmul.f32 %v2038, 1.442695
          %v2261 = vpow.pop %v2260
          %v2262 = vmul.f32 %v2039, 1.442695
          %v2263 = vpow.pop %v2262
          %v2264 = vmul.f32 %v2040, 1.442695
          %v2265 = vpow.pop %v2264
          %v2266 = vmul.f32 %v2041, 1.442695
          %v2267 = vpow.pop %v2266
          %v2268 = vmul.f32 %v2042, 1.442695
          %v2269 = vpow.pop %v2268
          %v2270 = vmul.f32 %v2043, 1.442695
          %v2271 = vpow.pop %v2270
          %v2272 = vmul.f32 %v2044, 1.442695
          %v2273 = vpow.pop %v2272
          %v2274 = vmul.f32 %v2045, 1.442695
          %v2275 = vpow.pop %v2274
          %v2276 = vmul.f32 %v2046, 1.442695
          %v2277 = vpow.pop %v2276
          %v2278 = vmul.f32 %v2047, 1.442695
          %v2279 = vpow.pop %v2278
          %v2280 = vmul.f32 %v2048, 1.442695
          %v2281 = vpow.pop %v2280
          %v2282 = vmul.f32 %v2049, 1.442695
          %v2283 = vpow.pop %v2282
          %v2284 = vmul.f32 %v2050, 1.442695
          %v2285 = vpow.pop %v2284
          %v2286 = vmul.f32 %v2051, 1.442695
          %v2287 = vpow.pop %v2286
          %v2288 = vmul.f32 %v2052, 1.442695
          %v2289 = vpow.pop %v2288
          %v2290 = vmul.f32 %v2053, 1.442695
          %v2291 = vpow.pop %v2290
          %v2292 = vmul.f32 %v2054, 1.442695
          %v2293 = vpow.pop %v2292
          %v2294 = vmul.f32 %v2055, 1.442695
          %v2295 = vpow.pop %v2294
          %v2296 = vmul.f32 %v2056, 1.442695
          %v2297 = vpow.pop %v2296
          %v2298 = vmul.f32 %v2057, 1.442695
          %v2299 = vpow.pop %v2298
          %v2300 = vmul.f32 %v2058, 1.442695
          %v2301 = vpow.pop %v2300
          %v2302 = vmul.f32 %v2059, 1.442695
          %v2303 = vpow.pop %v2302
          %v2304 = vmul.f32 %v2060, 1.442695
          %v2305 = vpow.pop %v2304
          %v2306 = vmul.f32 %v2061, 1.442695
          %v2307 = vpow.pop %v2306
          %v2308 = vmul.f32 %v2062, 1.442695
          %v2309 = vpow.pop %v2308
          %v2310 = vmul.f32 %v2063, 1.442695
          %v2311 = vpow.pop %v2310
          %v2312 = vmul.f32 %v2064, 1.442695
          %v2313 = vpow.pop %v2312
          %v2314 = vmul.f32 %v2065, 1.442695
          %v2315 = vpow.pop %v2314
          %v2316 = vmul.f32 %v2066, 1.442695
          %v2317 = vpow.pop %v2316
          %v2318 = vmul.f32 %v2067, 1.442695
          %v2319 = vpow.pop %v2318
          %v2320 = vmul.f32 %v2068, 1.442695
          %v2321 = vpow.pop %v2320
          %v2322 = vmul.f32 %v2069, 1.442695
          %v2323 = vpow.pop %v2322
          %v2324 = vmul.f32 %v2070, 1.442695
          %v2325 = vpow.pop %v2324
          %v2326 = vmul.f32 %v2071, 1.442695
          %v2327 = vpow.pop %v2326
          %v2328 = vadd.f32 %v2073, 1.0
          %v2329 = vadd.f32 %v2075, 1.0
          %v2330 = vadd.f32 %v2077, 1.0
          %v2331 = vadd.f32 %v2079, 1.0
          %v2332 = vadd.f32 %v2081, 1.0
          %v2333 = vadd.f32 %v2083, 1.0
          %v2334 = vadd.f32 %v2085, 1.0
          %v2335 = vadd.f32 %v2087, 1.0
          %v2336 = vadd.f32 %v2089, 1.0
          %v2337 = vadd.f32 %v2091, 1.0
          %v2338 = vadd.f32 %v2093, 1.0
          %v2339 = vadd.f32 %v2095, 1.0
          %v2340 = vadd.f32 %v2097, 1.0
          %v2341 = vadd.f32 %v2099, 1.0
          %v2342 = vadd.f32 %v2101, 1.0
          %v2343 = vadd.f32 %v2103, 1.0
          %v2344 = vadd.f32 %v2105, 1.0
          %v2345 = vadd.f32 %v2107, 1.0
          %v2346 = vadd.f32 %v2109, 1.0
          %v2347 = vadd.f32 %v2111, 1.0
          %v2348 = vadd.f32 %v2113, 1.0
          %v2349 = vadd.f32 %v2115, 1.0
          %v2350 = vadd.f32 %v2117, 1.0
          %v2351 = vadd.f32 %v2119, 1.0
          %v2352 = vadd.f32 %v2121, 1.0
          %v2353 = vadd.f32 %v2123, 1.0
          %v2354 = vadd.f32 %v2125, 1.0
          %v2355 = vadd.f32 %v2127, 1.0
          %v2356 = vadd.f32 %v2129, 1.0
          %v2357 = vadd.f32 %v2131, 1.0
          %v2358 = vadd.f32 %v2133, 1.0
          %v2359 = vadd.f32 %v2135, 1.0
          %v2360 = vadd.f32 %v2137, 1.0
          %v2361 = vadd.f32 %v2139, 1.0
          %v2362 = vadd.f32 %v2141, 1.0
          %v2363 = vadd.f32 %v2143, 1.0
          %v2364 = vadd.f32 %v2145, 1.0
          %v2365 = vadd.f32 %v2147, 1.0
          %v2366 = vadd.f32 %v2149, 1.0
          %v2367 = vadd.f32 %v2151, 1.0
          %v2368 = vadd.f32 %v2153, 1.0
          %v2369 = vadd.f32 %v2155, 1.0
          %v2370 = vadd.f32 %v2157, 1.0
          %v2371 = vadd.f32 %v2159, 1.0
          %v2372 = vadd.f32 %v2161, 1.0
          %v2373 = vadd.f32 %v2163, 1.0
          %v2374 = vadd.f32 %v2165, 1.0
          %v2375 = vadd.f32 %v2167, 1.0
          %v2376 = vadd.f32 %v2169, 1.0
          %v2377 = vadd.f32 %v2171, 1.0
          %v2378 = vadd.f32 %v2173, 1.0
          %v2379 = vadd.f32 %v2175, 1.0
          %v2380 = vadd.f32 %v2177, 1.0
          %v2381 = vadd.f32 %v2179, 1.0
          %v2382 = vadd.f32 %v2181, 1.0
          %v2383 = vadd.f32 %v2183, 1.0
          %v2384 = vadd.f32 %v2185, 1.0
          %v2385 = vadd.f32 %v2187, 1.0
          %v2386 = vadd.f32 %v2189, 1.0
          %v2387 = vadd.f32 %v2191, 1.0
          %v2388 = vadd.f32 %v2193, 1.0
          %v2389 = vadd.f32 %v2195, 1.0
          %v2390 = vadd.f32 %v2197, 1.0
          %v2391 = vadd.f32 %v2199, 1.0
          %v2392 = vadd.f32 %v2201, 1.0
          %v2393 = vadd.f32 %v2203, 1.0
          %v2394 = vadd.f32 %v2205, 1.0
          %v2395 = vadd.f32 %v2207, 1.0
          %v2396 = vadd.f32 %v2209, 1.0
          %v2397 = vadd.f32 %v2211, 1.0
          %v2398 = vadd.f32 %v2213, 1.0
          %v2399 = vadd.f32 %v2215, 1.0
          %v2400 = vadd.f32 %v2217, 1.0
          %v2401 = vadd.f32 %v2219, 1.0
          %v2402 = vadd.f32 %v2221, 1.0
          %v2403 = vadd.f32 %v2223, 1.0
          %v2404 = vadd.f32 %v2225, 1.0
          %v2405 = vadd.f32 %v2227, 1.0
          %v2406 = vadd.f32 %v2229, 1.0
          %v2407 = vadd.f32 %v2231, 1.0
          %v2408 = vadd.f32 %v2233, 1.0
          %v2409 = vadd.f32 %v2235, 1.0
          %v2410 = vadd.f32 %v2237, 1.0
          %v2411 = vadd.f32 %v2239, 1.0
          %v2412 = vadd.f32 %v2241, 1.0
          %v2413 = vadd.f32 %v2243, 1.0
          %v2414 = vadd.f32 %v2245, 1.0
          %v2415 = vadd.f32 %v2247, 1.0
          %v2416 = vadd.f32 %v2249, 1.0
          %v2417 = vadd.f32 %v2251, 1.0
          %v2418 = vadd.f32 %v2253, 1.0
          %v2419 = vadd.f32 %v2255, 1.0
          %v2420 = vadd.f32 %v2257, 1.0
          %v2421 = vadd.f32 %v2259, 1.0
          %v2422 = vadd.f32 %v2261, 1.0
          %v2423 = vadd.f32 %v2263, 1.0
          %v2424 = vadd.f32 %v2265, 1.0
          %v2425 = vadd.f32 %v2267, 1.0
          %v2426 = vadd.f32 %v2269, 1.0
          %v2427 = vadd.f32 %v2271, 1.0
          %v2428 = vadd.f32 %v2273, 1.0
          %v2429 = vadd.f32 %v2275, 1.0
          %v2430 = vadd.f32 %v2277, 1.0
          %v2431 = vadd.f32 %v2279, 1.0
          %v2432 = vadd.f32 %v2281, 1.0
          %v2433 = vadd.f32 %v2283, 1.0
          %v2434 = vadd.f32 %v2285, 1.0
          %v2435 = vadd.f32 %v2287, 1.0
          %v2436 = vadd.f32 %v2289, 1.0
          %v2437 = vadd.f32 %v2291, 1.0
          %v2438 = vadd.f32 %v2293, 1.0
          %v2439 = vadd.f32 %v2295, 1.0
          %v2440 = vadd.f32 %v2297, 1.0
          %v2441 = vadd.f32 %v2299, 1.0
          %v2442 = vadd.f32 %v2301, 1.0
          %v2443 = vadd.f32 %v2303, 1.0
          %v2444 = vadd.f32 %v2305, 1.0
          %v2445 = vadd.f32 %v2307, 1.0
          %v2446 = vadd.f32 %v2309, 1.0
          %v2447 = vadd.f32 %v2311, 1.0
          %v2448 = vadd.f32 %v2313, 1.0
          %v2449 = vadd.f32 %v2315, 1.0
          %v2450 = vadd.f32 %v2317, 1.0
          %v2451 = vadd.f32 %v2319, 1.0
          %v2452 = vadd.f32 %v2321, 1.0
          %v2453 = vadd.f32 %v2323, 1.0
          %v2454 = vadd.f32 %v2325, 1.0
          %v2455 = vadd.f32 %v2327, 1.0
          %v2456 = vrcp.pop %v2328
          %v2457 = vrcp.pop %v2329
          %v2458 = vrcp.pop %v2330
          %v2459 = vrcp.pop %v2331
          %v2460 = vrcp.pop %v2332
          %v2461 = vrcp.pop %v2333
          %v2462 = vrcp.pop %v2334
          %v2463 = vrcp.pop %v2335
          %v2464 = vrcp.pop %v2336
          %v2465 = vrcp.pop %v2337
          %v2466 = vrcp.pop %v2338
          %v2467 = vrcp.pop %v2339
          %v2468 = vrcp.pop %v2340
          %v2469 = vrcp.pop %v2341
          %v2470 = vrcp.pop %v2342
          %v2471 = vrcp.pop %v2343
          %v2472 = vrcp.pop %v2344
          %v2473 = vrcp.pop %v2345
          %v2474 = vrcp.pop %v2346
          %v2475 = vrcp.pop %v2347
          %v2476 = vrcp.pop %v2348
          %v2477 = vrcp.pop %v2349
          %v2478 = vrcp.pop %v2350
          %v2479 = vrcp.pop %v2351
          %v2480 = vrcp.pop %v2352
          %v2481 = vrcp.pop %v2353
          %v2482 = vrcp.pop %v2354
          %v2483 = vrcp.pop %v2355
          %v2484 = vrcp.pop %v2356
          %v2485 = vrcp.pop %v2357
          %v2486 = vrcp.pop %v2358
          %v2487 = vrcp.pop %v2359
          %v2488 = vrcp.pop %v2360
          %v2489 = vrcp.pop %v2361
          %v2490 = vrcp.pop %v2362
          %v2491 = vrcp.pop %v2363
          %v2492 = vrcp.pop %v2364
          %v2493 = vrcp.pop %v2365
          %v2494 = vrcp.pop %v2366
          %v2495 = vrcp.pop %v2367
          %v2496 = vrcp.pop %v2368
          %v2497 = vrcp.pop %v2369
          %v2498 = vrcp.pop %v2370
          %v2499 = vrcp.pop %v2371
          %v2500 = vrcp.pop %v2372
          %v2501 = vrcp.pop %v2373
          %v2502 = vrcp.pop %v2374
          %v2503 = vrcp.pop %v2375
          %v2504 = vrcp.pop %v2376
          %v2505 = vrcp.pop %v2377
          %v2506 = vrcp.pop %v2378
          %v2507 = vrcp.pop %v2379
          %v2508 = vrcp.pop %v2380
          %v2509 = vrcp.pop %v2381
          %v2510 = vrcp.pop %v2382
          %v2511 = vrcp.pop %v2383
          %v2512 = vrcp.pop %v2384
          %v2513 = vrcp.pop %v2385
          %v2514 = vrcp.pop %v2386
          %v2515 = vrcp.pop %v2387
          %v2516 = vrcp.pop %v2388
          %v2517 = vrcp.pop %v2389
          %v2518 = vrcp.pop %v2390
          %v2519 = vrcp.pop %v2391
          %v2520 = vrcp.pop %v2392
          %v2521 = vrcp.pop %v2393
          %v2522 = vrcp.pop %v2394
          %v2523 = vrcp.pop %v2395
          %v2524 = vrcp.pop %v2396
          %v2525 = vrcp.pop %v2397
          %v2526 = vrcp.pop %v2398
          %v2527 = vrcp.pop %v2399
          %v2528 = vrcp.pop %v2400
          %v2529 = vrcp.pop %v2401
          %v2530 = vrcp.pop %v2402
          %v2531 = vrcp.pop %v2403
          %v2532 = vrcp.pop %v2404
          %v2533 = vrcp.pop %v2405
          %v2534 = vrcp.pop %v2406
          %v2535 = vrcp.pop %v2407
          %v2536 = vrcp.pop %v2408
          %v2537 = vrcp.pop %v2409
          %v2538 = vrcp.pop %v2410
          %v2539 = vrcp.pop %v2411
          %v2540 = vrcp.pop %v2412
          %v2541 = vrcp.pop %v2413
          %v2542 = vrcp.pop %v2414
          %v2543 = vrcp.pop %v2415
          %v2544 = vrcp.pop %v2416
          %v2545 = vrcp.pop %v2417
          %v2546 = vrcp.pop %v2418
          %v2547 = vrcp.pop %v2419
          %v2548 = vrcp.pop %v2420
          %v2549 = vrcp.pop %v2421
          %v2550 = vrcp.pop %v2422
          %v2551 = vrcp.pop %v2423
          %v2552 = vrcp.pop %v2424
          %v2553 = vrcp.pop %v2425
          %v2554 = vrcp.pop %v2426
          %v2555 = vrcp.pop %v2427
          %v2556 = vrcp.pop %v2428
          %v2557 = vrcp.pop %v2429
          %v2558 = vrcp.pop %v2430
          %v2559 = vrcp.pop %v2431
          %v2560 = vrcp.pop %v2432
          %v2561 = vrcp.pop %v2433
          %v2562 = vrcp.pop %v2434
          %v2563 = vrcp.pop %v2435
          %v2564 = vrcp.pop %v2436
          %v2565 = vrcp.pop %v2437
          %v2566 = vrcp.pop %v2438
          %v2567 = vrcp.pop %v2439
          %v2568 = vrcp.pop %v2440
          %v2569 = vrcp.pop %v2441
          %v2570 = vrcp.pop %v2442
          %v2571 = vrcp.pop %v2443
          %v2572 = vrcp.pop %v2444
          %v2573 = vrcp.pop %v2445
          %v2574 = vrcp.pop %v2446
          %v2575 = vrcp.pop %v2447
          %v2576 = vrcp.pop %v2448
          %v2577 = vrcp.pop %v2449
          %v2578 = vrcp.pop %v2450
          %v2579 = vrcp.pop %v2451
          %v2580 = vrcp.pop %v2452
          %v2581 = vrcp.pop %v2453
          %v2582 = vrcp.pop %v2454
          %v2583 = vrcp.pop %v2455
          %v2584 = vmul.f32 %v1816, %v2456
          %v2585 = vmul.f32 %v1817, %v2457
          %v2586 = vmul.f32 %v1818, %v2458
          %v2587 = vmul.f32 %v1819, %v2459
          %v2588 = vmul.f32 %v1820, %v2460
          %v2589 = vmul.f32 %v1821, %v2461
          %v2590 = vmul.f32 %v1822, %v2462
          %v2591 = vmul.f32 %v1823, %v2463
          %v2592 = vmul.f32 %v1824, %v2464
          %v2593 = vmul.f32 %v1825, %v2465
          %v2594 = vmul.f32 %v1826, %v2466
          %v2595 = vmul.f32 %v1827, %v2467
          %v2596 = vmul.f32 %v1828, %v2468
          %v2597 = vmul.f32 %v1829, %v2469
          %v2598 = vmul.f32 %v1830, %v2470
          %v2599 = vmul.f32 %v1831, %v2471
          %v2600 = vmul.f32 %v1832, %v2472
          %v2601 = vmul.f32 %v1833, %v2473
          %v2602 = vmul.f32 %v1834, %v2474
          %v2603 = vmul.f32 %v1835, %v2475
          %v2604 = vmul.f32 %v1836, %v2476
          %v2605 = vmul.f32 %v1837, %v2477
          %v2606 = vmul.f32 %v1838, %v2478
          %v2607 = vmul.f32 %v1839, %v2479
          %v2608 = vmul.f32 %v1840, %v2480
          %v2609 = vmul.f32 %v1841, %v2481
          %v2610 = vmul.f32 %v1842, %v2482
          %v2611 = vmul.f32 %v1843, %v2483
          %v2612 = vmul.f32 %v1844, %v2484
          %v2613 = vmul.f32 %v1845, %v2485
          %v2614 = vmul.f32 %v1846, %v2486
          %v2615 = vmul.f32 %v1847, %v2487
          %v2616 = vmul.f32 %v1848, %v2488
          %v2617 = vmul.f32 %v1849, %v2489
          %v2618 = vmul.f32 %v1850, %v2490
          %v2619 = vmul.f32 %v1851, %v2491
          %v2620 = vmul.f32 %v1852, %v2492
          %v2621 = vmul.f32 %v1853, %v2493
          %v2622 = vmul.f32 %v1854, %v2494
          %v2623 = vmul.f32 %v1855, %v2495
          %v2624 = vmul.f32 %v1856, %v2496
          %v2625 = vmul.f32 %v1857, %v2497
          %v2626 = vmul.f32 %v1858, %v2498
          %v2627 = vmul.f32 %v1859, %v2499
          %v2628 = vmul.f32 %v1860, %v2500
          %v2629 = vmul.f32 %v1861, %v2501
          %v2630 = vmul.f32 %v1862, %v2502
          %v2631 = vmul.f32 %v1863, %v2503
          %v2632 = vmul.f32 %v1864, %v2504
          %v2633 = vmul.f32 %v1865, %v2505
          %v2634 = vmul.f32 %v1866, %v2506
          %v2635 = vmul.f32 %v1867, %v2507
          %v2636 = vmul.f32 %v1868, %v2508
          %v2637 = vmul.f32 %v1869, %v2509
          %v2638 = vmul.f32 %v1870, %v2510
          %v2639 = vmul.f32 %v1871, %v2511
          %v2640 = vmul.f32 %v1872, %v2512
          %v2641 = vmul.f32 %v1873, %v2513
          %v2642 = vmul.f32 %v1874, %v2514
          %v2643 = vmul.f32 %v1875, %v2515
          %v2644 = vmul.f32 %v1876, %v2516
          %v2645 = vmul.f32 %v1877, %v2517
          %v2646 = vmul.f32 %v1878, %v2518
          %v2647 = vmul.f32 %v1879, %v2519
          %v2648 = vmul.f32 %v1880, %v2520
          %v2649 = vmul.f32 %v1881, %v2521
          %v2650 = vmul.f32 %v1882, %v2522
          %v2651 = vmul.f32 %v1883, %v2523
          %v2652 = vmul.f32 %v1884, %v2524
          %v2653 = vmul.f32 %v1885, %v2525
          %v2654 = vmul.f32 %v1886, %v2526
          %v2655 = vmul.f32 %v1887, %v2527
          %v2656 = vmul.f32 %v1888, %v2528
          %v2657 = vmul.f32 %v1889, %v2529
          %v2658 = vmul.f32 %v1890, %v2530
          %v2659 = vmul.f32 %v1891, %v2531
          %v2660 = vmul.f32 %v1892, %v2532
          %v2661 = vmul.f32 %v1893, %v2533
          %v2662 = vmul.f32 %v1894, %v2534
          %v2663 = vmul.f32 %v1895, %v2535
          %v2664 = vmul.f32 %v1896, %v2536
          %v2665 = vmul.f32 %v1897, %v2537
          %v2666 = vmul.f32 %v1898, %v2538
          %v2667 = vmul.f32 %v1899, %v2539
          %v2668 = vmul.f32 %v1900, %v2540
          %v2669 = vmul.f32 %v1901, %v2541
          %v2670 = vmul.f32 %v1902, %v2542
          %v2671 = vmul.f32 %v1903, %v2543
          %v2672 = vmul.f32 %v1904, %v2544
          %v2673 = vmul.f32 %v1905, %v2545
          %v2674 = vmul.f32 %v1906, %v2546
          %v2675 = vmul.f32 %v1907, %v2547
          %v2676 = vmul.f32 %v1908, %v2548
          %v2677 = vmul.f32 %v1909, %v2549
          %v2678 = vmul.f32 %v1910, %v2550
          %v2679 = vmul.f32 %v1911, %v2551
          %v2680 = vmul.f32 %v1912, %v2552
          %v2681 = vmul.f32 %v1913, %v2553
          %v2682 = vmul.f32 %v1914, %v2554
          %v2683 = vmul.f32 %v1915, %v2555
          %v2684 = vmul.f32 %v1916, %v2556
          %v2685 = vmul.f32 %v1917, %v2557
          %v2686 = vmul.f32 %v1918, %v2558
          %v2687 = vmul.f32 %v1919, %v2559
          %v2688 = vmul.f32 %v1920, %v2560
          %v2689 = vmul.f32 %v1921, %v2561
          %v2690 = vmul.f32 %v1922, %v2562
          %v2691 = vmul.f32 %v1923, %v2563
          %v2692 = vmul.f32 %v1924, %v2564
          %v2693 = vmul.f32 %v1925, %v2565
          %v2694 = vmul.f32 %v1926, %v2566
          %v2695 = vmul.f32 %v1927, %v2567
          %v2696 = vmul.f32 %v1928, %v2568
          %v2697 = vmul.f32 %v1929, %v2569
          %v2698 = vmul.f32 %v1930, %v2570
          %v2699 = vmul.f32 %v1931, %v2571
          %v2700 = vmul.f32 %v1932, %v2572
          %v2701 = vmul.f32 %v1933, %v2573
          %v2702 = vmul.f32 %v1934, %v2574
          %v2703 = vmul.f32 %v1935, %v2575
          %v2704 = vmul.f32 %v1936, %v2576
          %v2705 = vmul.f32 %v1937, %v2577
          %v2706 = vmul.f32 %v1938, %v2578
          %v2707 = vmul.f32 %v1939, %v2579
          %v2708 = vmul.f32 %v1940, %v2580
          %v2709 = vmul.f32 %v1941, %v2581
          %v2710 = vmul.f32 %v1942, %v2582
          %v2711 = vmul.f32 %v1943, %v2583
          %v2712 = vpack.c.bf16 %v2584, %v2584
          %v2713 = vpack.c.bf16 %v2585, %v2585
          %v2714 = vpack.c.bf16 %v2586, %v2586
          %v2715 = vpack.c.bf16 %v2587, %v2587
          %v2716 = vpack.c.bf16 %v2588, %v2588
          %v2717 = vpack.c.bf16 %v2589, %v2589
          %v2718 = vpack.c.bf16 %v2590, %v2590
          %v2719 = vpack.c.bf16 %v2591, %v2591
          %v2720 = vpack.c.bf16 %v2592, %v2592
          %v2721 = vpack.c.bf16 %v2593, %v2593
          %v2722 = vpack.c.bf16 %v2594, %v2594
          %v2723 = vpack.c.bf16 %v2595, %v2595
          %v2724 = vpack.c.bf16 %v2596, %v2596
          %v2725 = vpack.c.bf16 %v2597, %v2597
          %v2726 = vpack.c.bf16 %v2598, %v2598
          %v2727 = vpack.c.bf16 %v2599, %v2599
          %v2728 = vpack.c.bf16 %v2600, %v2600
          %v2729 = vpack.c.bf16 %v2601, %v2601
          %v2730 = vpack.c.bf16 %v2602, %v2602
          %v2731 = vpack.c.bf16 %v2603, %v2603
          %v2732 = vpack.c.bf16 %v2604, %v2604
          %v2733 = vpack.c.bf16 %v2605, %v2605
          %v2734 = vpack.c.bf16 %v2606, %v2606
          %v2735 = vpack.c.bf16 %v2607, %v2607
          %v2736 = vpack.c.bf16 %v2608, %v2608
          %v2737 = vpack.c.bf16 %v2609, %v2609
          %v2738 = vpack.c.bf16 %v2610, %v2610
          %v2739 = vpack.c.bf16 %v2611, %v2611
          %v2740 = vpack.c.bf16 %v2612, %v2612
          %v2741 = vpack.c.bf16 %v2613, %v2613
          %v2742 = vpack.c.bf16 %v2614, %v2614
          %v2743 = vpack.c.bf16 %v2615, %v2615
          %v2744 = vpack.c.bf16 %v2616, %v2616
          %v2745 = vpack.c.bf16 %v2617, %v2617
          %v2746 = vpack.c.bf16 %v2618, %v2618
          %v2747 = vpack.c.bf16 %v2619, %v2619
          %v2748 = vpack.c.bf16 %v2620, %v2620
          %v2749 = vpack.c.bf16 %v2621, %v2621
          %v2750 = vpack.c.bf16 %v2622, %v2622
          %v2751 = vpack.c.bf16 %v2623, %v2623
          %v2752 = vpack.c.bf16 %v2624, %v2624
          %v2753 = vpack.c.bf16 %v2625, %v2625
          %v2754 = vpack.c.bf16 %v2626, %v2626
          %v2755 = vpack.c.bf16 %v2627, %v2627
          %v2756 = vpack.c.bf16 %v2628, %v2628
          %v2757 = vpack.c.bf16 %v2629, %v2629
          %v2758 = vpack.c.bf16 %v2630, %v2630
          %v2759 = vpack.c.bf16 %v2631, %v2631
          %v2760 = vpack.c.bf16 %v2632, %v2632
          %v2761 = vpack.c.bf16 %v2633, %v2633
          %v2762 = vpack.c.bf16 %v2634, %v2634
          %v2763 = vpack.c.bf16 %v2635, %v2635
          %v2764 = vpack.c.bf16 %v2636, %v2636
          %v2765 = vpack.c.bf16 %v2637, %v2637
          %v2766 = vpack.c.bf16 %v2638, %v2638
          %v2767 = vpack.c.bf16 %v2639, %v2639
          %v2768 = vpack.c.bf16 %v2640, %v2640
          %v2769 = vpack.c.bf16 %v2641, %v2641
          %v2770 = vpack.c.bf16 %v2642, %v2642
          %v2771 = vpack.c.bf16 %v2643, %v2643
          %v2772 = vpack.c.bf16 %v2644, %v2644
          %v2773 = vpack.c.bf16 %v2645, %v2645
          %v2774 = vpack.c.bf16 %v2646, %v2646
          %v2775 = vpack.c.bf16 %v2647, %v2647
          %v2776 = vpack.c.bf16 %v2648, %v2648
          %v2777 = vpack.c.bf16 %v2649, %v2649
          %v2778 = vpack.c.bf16 %v2650, %v2650
          %v2779 = vpack.c.bf16 %v2651, %v2651
          %v2780 = vpack.c.bf16 %v2652, %v2652
          %v2781 = vpack.c.bf16 %v2653, %v2653
          %v2782 = vpack.c.bf16 %v2654, %v2654
          %v2783 = vpack.c.bf16 %v2655, %v2655
          %v2784 = vpack.c.bf16 %v2656, %v2656
          %v2785 = vpack.c.bf16 %v2657, %v2657
          %v2786 = vpack.c.bf16 %v2658, %v2658
          %v2787 = vpack.c.bf16 %v2659, %v2659
          %v2788 = vpack.c.bf16 %v2660, %v2660
          %v2789 = vpack.c.bf16 %v2661, %v2661
          %v2790 = vpack.c.bf16 %v2662, %v2662
          %v2791 = vpack.c.bf16 %v2663, %v2663
          %v2792 = vpack.c.bf16 %v2664, %v2664
          %v2793 = vpack.c.bf16 %v2665, %v2665
          %v2794 = vpack.c.bf16 %v2666, %v2666
          %v2795 = vpack.c.bf16 %v2667, %v2667
          %v2796 = vpack.c.bf16 %v2668, %v2668
          %v2797 = vpack.c.bf16 %v2669, %v2669
          %v2798 = vpack.c.bf16 %v2670, %v2670
          %v2799 = vpack.c.bf16 %v2671, %v2671
          %v2800 = vpack.c.bf16 %v2672, %v2672
          %v2801 = vpack.c.bf16 %v2673, %v2673
          %v2802 = vpack.c.bf16 %v2674, %v2674
          %v2803 = vpack.c.bf16 %v2675, %v2675
          %v2804 = vpack.c.bf16 %v2676, %v2676
          %v2805 = vpack.c.bf16 %v2677, %v2677
          %v2806 = vpack.c.bf16 %v2678, %v2678
          %v2807 = vpack.c.bf16 %v2679, %v2679
          %v2808 = vpack.c.bf16 %v2680, %v2680
          %v2809 = vpack.c.bf16 %v2681, %v2681
          %v2810 = vpack.c.bf16 %v2682, %v2682
          %v2811 = vpack.c.bf16 %v2683, %v2683
          %v2812 = vpack.c.bf16 %v2684, %v2684
          %v2813 = vpack.c.bf16 %v2685, %v2685
          %v2814 = vpack.c.bf16 %v2686, %v2686
          %v2815 = vpack.c.bf16 %v2687, %v2687
          %v2816 = vpack.c.bf16 %v2688, %v2688
          %v2817 = vpack.c.bf16 %v2689, %v2689
          %v2818 = vpack.c.bf16 %v2690, %v2690
          %v2819 = vpack.c.bf16 %v2691, %v2691
          %v2820 = vpack.c.bf16 %v2692, %v2692
          %v2821 = vpack.c.bf16 %v2693, %v2693
          %v2822 = vpack.c.bf16 %v2694, %v2694
          %v2823 = vpack.c.bf16 %v2695, %v2695
          %v2824 = vpack.c.bf16 %v2696, %v2696
          %v2825 = vpack.c.bf16 %v2697, %v2697
          %v2826 = vpack.c.bf16 %v2698, %v2698
          %v2827 = vpack.c.bf16 %v2699, %v2699
          %v2828 = vpack.c.bf16 %v2700, %v2700
          %v2829 = vpack.c.bf16 %v2701, %v2701
          %v2830 = vpack.c.bf16 %v2702, %v2702
          %v2831 = vpack.c.bf16 %v2703, %v2703
          %v2832 = vpack.c.bf16 %v2704, %v2704
          %v2833 = vpack.c.bf16 %v2705, %v2705
          %v2834 = vpack.c.bf16 %v2706, %v2706
          %v2835 = vpack.c.bf16 %v2707, %v2707
          %v2836 = vpack.c.bf16 %v2708, %v2708
          %v2837 = vpack.c.bf16 %v2709, %v2709
          %v2838 = vpack.c.bf16 %v2710, %v2710
          %v2839 = vpack.c.bf16 %v2711, %v2711
          %2840 = vst [vmem:[%s253] sm:$0xf] %v2712
          %2841 = vst [vmem:[%s253 + $0x4] sm:$0xf] %v2713
          %2842 = vst [vmem:[%s253 + $0x8] sm:$0xf] %v2714
          %2843 = vst [vmem:[%s253 + $0xc] sm:$0xf] %v2715
          %2844 = vst [vmem:[%s253 + $0x10] sm:$0xf] %v2716
          %2845 = vst [vmem:[%s253 + $0x14] sm:$0xf] %v2717
          %2846 = vst [vmem:[%s253 + $0x18] sm:$0xf] %v2718
          %2847 = vst [vmem:[%s253 + $0x1c] sm:$0xf] %v2719
          %2848 = vst [vmem:[%s253 + $0x20] sm:$0xf] %v2720
          %2849 = vst [vmem:[%s253 + $0x24] sm:$0xf] %v2721
          %2850 = vst [vmem:[%s253 + $0x28] sm:$0xf] %v2722
          %2851 = vst [vmem:[%s253 + $0x2c] sm:$0xf] %v2723
          %2852 = vst [vmem:[%s253 + $0x30] sm:$0xf] %v2724
          %2853 = vst [vmem:[%s253 + $0x34] sm:$0xf] %v2725
          %2854 = vst [vmem:[%s253 + $0x38] sm:$0xf] %v2726
          %2855 = vst [vmem:[%s253 + $0x3c] sm:$0xf] %v2727
          %2856 = vst [vmem:[%s253 + $0x40] sm:$0xf] %v2728
          %2857 = vst [vmem:[%s253 + $0x44] sm:$0xf] %v2729
          %2858 = vst [vmem:[%s253 + $0x48] sm:$0xf] %v2730
          %2859 = vst [vmem:[%s253 + $0x4c] sm:$0xf] %v2731
          %2860 = vst [vmem:[%s253 + $0x50] sm:$0xf] %v2732
          %2861 = vst [vmem:[%s253 + $0x54] sm:$0xf] %v2733
          %2862 = vst [vmem:[%s253 + $0x58] sm:$0xf] %v2734
          %2863 = vst [vmem:[%s253 + $0x5c] sm:$0xf] %v2735
          %2864 = vst [vmem:[%s253 + $0x60] sm:$0xf] %v2736
          %2865 = vst [vmem:[%s253 + $0x64] sm:$0xf] %v2737
          %2866 = vst [vmem:[%s253 + $0x68] sm:$0xf] %v2738
          %2867 = vst [vmem:[%s253 + $0x6c] sm:$0xf] %v2739
          %2868 = vst [vmem:[%s253 + $0x70] sm:$0xf] %v2740
          %2869 = vst [vmem:[%s253 + $0x74] sm:$0xf] %v2741
          %2870 = vst [vmem:[%s253 + $0x78] sm:$0xf] %v2742
          %2871 = vst [vmem:[%s253 + $0x7c] sm:$0xf] %v2743
          %2872 = vst [vmem:[%s253 + $0x80] sm:$0xf] %v2744
          %2873 = vst [vmem:[%s253 + $0x84] sm:$0xf] %v2745
          %2874 = vst [vmem:[%s253 + $0x88] sm:$0xf] %v2746
          %2875 = vst [vmem:[%s253 + $0x8c] sm:$0xf] %v2747
          %2876 = vst [vmem:[%s253 + $0x90] sm:$0xf] %v2748
          %2877 = vst [vmem:[%s253 + $0x94] sm:$0xf] %v2749
          %2878 = vst [vmem:[%s253 + $0x98] sm:$0xf] %v2750
          %2879 = vst [vmem:[%s253 + $0x9c] sm:$0xf] %v2751
          %2880 = vst [vmem:[%s253 + $0xa0] sm:$0xf] %v2752
          %2881 = vst [vmem:[%s253 + $0xa4] sm:$0xf] %v2753
          %2882 = vst [vmem:[%s253 + $0xa8] sm:$0xf] %v2754
          %2883 = vst [vmem:[%s253 + $0xac] sm:$0xf] %v2755
          %2884 = vst [vmem:[%s253 + $0xb0] sm:$0xf] %v2756
          %2885 = vst [vmem:[%s253 + $0xb4] sm:$0xf] %v2757
          %2886 = vst [vmem:[%s253 + $0xb8] sm:$0xf] %v2758
          %2887 = vst [vmem:[%s253 + $0xbc] sm:$0xf] %v2759
          %2888 = vst [vmem:[%s253 + $0xc0] sm:$0xf] %v2760
          %2889 = vst [vmem:[%s253 + $0xc4] sm:$0xf] %v2761
          %2890 = vst [vmem:[%s253 + $0xc8] sm:$0xf] %v2762
          %2891 = vst [vmem:[%s253 + $0xcc] sm:$0xf] %v2763
          %2892 = vst [vmem:[%s253 + $0xd0] sm:$0xf] %v2764
          %2893 = vst [vmem:[%s253 + $0xd4] sm:$0xf] %v2765
          %2894 = vst [vmem:[%s253 + $0xd8] sm:$0xf] %v2766
          %2895 = vst [vmem:[%s253 + $0xdc] sm:$0xf] %v2767
          %2896 = vst [vmem:[%s253 + $0xe0] sm:$0xf] %v2768
          %2897 = vst [vmem:[%s253 + $0xe4] sm:$0xf] %v2769
          %2898 = vst [vmem:[%s253 + $0xe8] sm:$0xf] %v2770
          %2899 = vst [vmem:[%s253 + $0xec] sm:$0xf] %v2771
          %2900 = vst [vmem:[%s253 + $0xf0] sm:$0xf] %v2772
          %2901 = vst [vmem:[%s253 + $0xf4] sm:$0xf] %v2773
          %2902 = vst [vmem:[%s253 + $0xf8] sm:$0xf] %v2774
          %2903 = vst [vmem:[%s253 + $0xfc] sm:$0xf] %v2775
          %2904 = vst [vmem:[%s253 + $0x100] sm:$0xf] %v2776
          %2905 = vst [vmem:[%s253 + $0x104] sm:$0xf] %v2777
          %2906 = vst [vmem:[%s253 + $0x108] sm:$0xf] %v2778
          %2907 = vst [vmem:[%s253 + $0x10c] sm:$0xf] %v2779
          %2908 = vst [vmem:[%s253 + $0x110] sm:$0xf] %v2780
          %2909 = vst [vmem:[%s253 + $0x114] sm:$0xf] %v2781
          %2910 = vst [vmem:[%s253 + $0x118] sm:$0xf] %v2782
          %2911 = vst [vmem:[%s253 + $0x11c] sm:$0xf] %v2783
          %2912 = vst [vmem:[%s253 + $0x120] sm:$0xf] %v2784
          %2913 = vst [vmem:[%s253 + $0x124] sm:$0xf] %v2785
          %2914 = vst [vmem:[%s253 + $0x128] sm:$0xf] %v2786
          %2915 = vst [vmem:[%s253 + $0x12c] sm:$0xf] %v2787
          %2916 = vst [vmem:[%s253 + $0x130] sm:$0xf] %v2788
          %2917 = vst [vmem:[%s253 + $0x134] sm:$0xf] %v2789
          %2918 = vst [vmem:[%s253 + $0x138] sm:$0xf] %v2790
          %2919 = vst [vmem:[%s253 + $0x13c] sm:$0xf] %v2791
          %2920 = vst [vmem:[%s253 + $0x140] sm:$0xf] %v2792
          %2921 = vst [vmem:[%s253 + $0x144] sm:$0xf] %v2793
          %2922 = vst [vmem:[%s253 + $0x148] sm:$0xf] %v2794
          %2923 = vst [vmem:[%s253 + $0x14c] sm:$0xf] %v2795
          %2924 = vst [vmem:[%s253 + $0x150] sm:$0xf] %v2796
          %2925 = vst [vmem:[%s253 + $0x154] sm:$0xf] %v2797
          %2926 = vst [vmem:[%s253 + $0x158] sm:$0xf] %v2798
          %2927 = vst [vmem:[%s253 + $0x15c] sm:$0xf] %v2799
          %2928 = vst [vmem:[%s253 + $0x160] sm:$0xf] %v2800
          %2929 = vst [vmem:[%s253 + $0x164] sm:$0xf] %v2801
          %2930 = vst [vmem:[%s253 + $0x168] sm:$0xf] %v2802
          %2931 = vst [vmem:[%s253 + $0x16c] sm:$0xf] %v2803
          %2932 = vst [vmem:[%s253 + $0x170] sm:$0xf] %v2804
          %2933 = vst [vmem:[%s253 + $0x174] sm:$0xf] %v2805
          %2934 = vst [vmem:[%s253 + $0x178] sm:$0xf] %v2806
          %2935 = vst [vmem:[%s253 + $0x17c] sm:$0xf] %v2807
          %2936 = vst [vmem:[%s253 + $0x180] sm:$0xf] %v2808
          %2937 = vst [vmem:[%s253 + $0x184] sm:$0xf] %v2809
          %2938 = vst [vmem:[%s253 + $0x188] sm:$0xf] %v2810
          %2939 = vst [vmem:[%s253 + $0x18c] sm:$0xf] %v2811
          %2940 = vst [vmem:[%s253 + $0x190] sm:$0xf] %v2812
          %2941 = vst [vmem:[%s253 + $0x194] sm:$0xf] %v2813
          %2942 = vst [vmem:[%s253 + $0x198] sm:$0xf] %v2814
          %2943 = vst [vmem:[%s253 + $0x19c] sm:$0xf] %v2815
          %2944 = vst [vmem:[%s253 + $0x1a0] sm:$0xf] %v2816
          %2945 = vst [vmem:[%s253 + $0x1a4] sm:$0xf] %v2817
          %2946 = vst [vmem:[%s253 + $0x1a8] sm:$0xf] %v2818
          %2947 = vst [vmem:[%s253 + $0x1ac] sm:$0xf] %v2819
          %2948 = vst [vmem:[%s253 + $0x1b0] sm:$0xf] %v2820
          %2949 = vst [vmem:[%s253 + $0x1b4] sm:$0xf] %v2821
          %2950 = vst [vmem:[%s253 + $0x1b8] sm:$0xf] %v2822
          %2951 = vst [vmem:[%s253 + $0x1bc] sm:$0xf] %v2823
          %2952 = vst [vmem:[%s253 + $0x1c0] sm:$0xf] %v2824
          %2953 = vst [vmem:[%s253 + $0x1c4] sm:$0xf] %v2825
          %2954 = vst [vmem:[%s253 + $0x1c8] sm:$0xf] %v2826
          %2955 = vst [vmem:[%s253 + $0x1cc] sm:$0xf] %v2827
          %2956 = vst [vmem:[%s253 + $0x1d0] sm:$0xf] %v2828
          %2957 = vst [vmem:[%s253 + $0x1d4] sm:$0xf] %v2829
          %2958 = vst [vmem:[%s253 + $0x1d8] sm:$0xf] %v2830
          %2959 = vst [vmem:[%s253 + $0x1dc] sm:$0xf] %v2831
          %2960 = vst [vmem:[%s253 + $0x1e0] sm:$0xf] %v2832
          %2961 = vst [vmem:[%s253 + $0x1e4] sm:$0xf] %v2833
          %2962 = vst [vmem:[%s253 + $0x1e8] sm:$0xf] %v2834
          %2963 = vst [vmem:[%s253 + $0x1ec] sm:$0xf] %v2835
          %2964 = vst [vmem:[%s253 + $0x1f0] sm:$0xf] %v2836
          %2965 = vst [vmem:[%s253 + $0x1f4] sm:$0xf] %v2837
          %2966 = vst [vmem:[%s253 + $0x1f8] sm:$0xf] %v2838
          %2967 = vst [vmem:[%s253 + $0x1fc] sm:$0xf] %v2839
        $region48: #{tpu_custom_call.1} parent=31 // pred_fallthru
          _
        %s2968 = sand.u32 %s132, 1
        %s2969 = scalar_lea.sflag [#allocation5], %s2968
        %s2970 = sand.u32 %s132, 1
        %s2971 = smul.addr %s2970, 512
        %s2972 = scalar_lea.vmem [#allocation8], %s2971
        // Predicated region
        $region49: #{tpu_custom_call.1} parent=31 // pred_check
          %p2973 = pneg %p142
        $region50: #{tpu_custom_call.1} parent=31 // pred_check_branch
          %2975 = sbr.rel (%p2973) target = $region52
        $region51: #{tpu_custom_call.1} parent=31 // pred_region
          %s2976 = smul.u32 128, %s26
          %2978 = vsyncadd %s2969, 0
          %s2979 = sadd.s32 %s27, %s2976
          %s2980 = smul.addr %s2979, 4
          %s2981 = scalar_lea.hbm %s3, %s2980
          %s2982 = sshll.u32 %s2972, 4
          %s2983 = int_to_ptr.vmem [resolvable:$true] %s2982
          %s2984 = sshll.u32 %s2981, 4
          %s2985 = int_to_ptr.hbm [resolvable:$true] %s2984
          %2990 = dma.vmem_to_hbm [thread:$0]  %s2983, 8192, %s2985, %s2969, 64, 64, 4
        $region52: #{tpu_custom_call.1} parent=31 // pred_fallthru
          _
      $region32: #{tpu_custom_call.1} parent=5 // pred_fallthru
        _
      %p2991 = scmp.le.s32.totalorder 2, %s16
      // Predicated region
      $region53: #{tpu_custom_call.1} parent=5 // pred_check
        %p2992 = pneg %p2991
      $region54: #{tpu_custom_call.1} parent=5 // pred_check_branch
        %2994 = sbr.rel (%p2992) target = $region56
      $region55: #{tpu_custom_call.1} parent=5 // pred_region
        %s2995 = ssub.s32 %s16, 2
        // Predicated region
        $region57: #{tpu_custom_call.1} parent=55 // pred_check
          %p2996 = pneg %p148
        $region58: #{tpu_custom_call.1} parent=55 // pred_check_branch
          %2998 = sbr.rel (%p2996) target = $region60
        $region59: #{tpu_custom_call.1} parent=55 // pred_region
          %s2999 = sand.u32 %s133, 1
          %s3000 = scalar_lea.sflag [#allocation5], %s2999
          %s3001 = sand.u32 %s133, 1
          %s3002 = smul.addr %s3001, 512
          %s3003 = scalar_lea.vmem [#allocation8], %s3002
          %3005 = dma.done %s3000, 8192
        $region60: #{tpu_custom_call.1} parent=55 // pred_fallthru
          _
      $region56: #{tpu_custom_call.1} parent=5 // pred_fallthru
        _
    $region6: #{tpu_custom_call.1} parent=1 // loop_footer
      %s20 = sadd.s32 1, %s16
    $region7: #{tpu_custom_call.1} parent=1 // loop_footer_branch
      %15 = sbr.rel target = $region3
    $region8: #{tpu_custom_call.1} parent=1 // loop_exit
      _
    %3006 = vsyncpa [#allocation4], 1
    %s3007 = scalar_lea.sflag [#allocation4], 1
    %3008 = vsyncpa %s3007, 1
    %3009 = vsyncpa [#allocation7], 1
    %3010 = vsyncpa [#allocation5], 1
    %s3011 = scalar_lea.sflag [#allocation5], 1
    %3012 = vsyncpa %s3011, 1

</llo_original>
